<compile_context>
chip_gen: v7x
topology: tpu7x:2x2x1
jax: 0.10.0
libtpu: 0.0.40
codegen_flags: <defaults>
</compile_context>

<pallas_src>
import jax
import jax.numpy as jnp
from jax.experimental import pallas as pl
from jax.experimental.pallas import tpu as pltpu

INPUT = 200
HIDDEN = 200
label_list = ["a", "b", "c", "d", "e"]   # stand-in for the script-level label_list
NUM_CLASS = len(label_list)


# --------------------------------------------------------------------------------------
# Kernel 1: batched input-to-hidden gate precompute.
#   gi[d] = x_flat @ Wih_all[d] + b_comb[d]      (T*B, 600), f32 accumulation.
# --------------------------------------------------------------------------------------
def _gates_kernel(x_ref, wih_ref, bcomb_ref, gi_ref):
    gi_ref[...] = (
        jnp.dot(x_ref[...], wih_ref[...], preferred_element_type=jnp.float32)
        + bcomb_ref[...]
    )


# --------------------------------------------------------------------------------------
# Kernel 2: sequential GRU recurrence.  Grid = (2 directions, C time-chunks).
#   Each grid step consumes a (T_CHUNK, B, 600) gi tile and runs T_CHUNK unrolled steps:
#       gh = h @ Whh_all                       (one fused bf16 matmul, f32 acc)
#       r  = sigmoid(gi_r + gh_r)
#       z  = sigmoid(gi_z + gh_z)
#       n  = tanh(gi_n + r * (gh_n + bhh_n))
#       h  = (1 - z) * n + z * h
#   Direction 1 walks time in reverse (index_map reverses chunks, loop reverses in-chunk).
# --------------------------------------------------------------------------------------
def _gru_kernel(gi_ref, whh_ref, bhhn_ref, hout_ref, h_scr):
    d = pl.program_id(0)
    c = pl.program_id(1)
    n_chunks = pl.num_programs(1)
    tc = gi_ref.shape[0]                      # timesteps in this chunk (static)

    @pl.when(c == 0)
    def _():
        h_scr[...] = jnp.zeros_like(h_scr)

    whh = whh_ref[...]                        # (HIDDEN, 3*HIDDEN), bf16
    bhh_n = bhhn_ref[...]                     # (1, HIDDEN), f32

    rev = 1 - 2 * d                           # +1 forward, -1 backward
    base = d * (tc - 1)

    def step(t, h):
        gi = gi_ref[base + rev * t]           # (B, 3*HIDDEN), f32
        gh = jnp.dot(h.astype(jnp.bfloat16), whh,
                     preferred_element_type=jnp.float32)          # (B, 3*HIDDEN)
        r = jax.nn.sigmoid(gi[:, :HIDDEN] + gh[:, :HIDDEN])
        z = jax.nn.sigmoid(gi[:, HIDDEN:2 * HIDDEN] + gh[:, HIDDEN:2 * HIDDEN])
        n = jnp.tanh(gi[:, 2 * HIDDEN:] + r * (gh[:, 2 * HIDDEN:] + bhh_n))
        return (1.0 - z) * n + z * h

    h = jax.lax.fori_loop(0, tc, step, h_scr[...], unroll=True)
    h_scr[...] = h

    @pl.when(c == n_chunks - 1)
    def _():
        hout_ref[...] = h.astype(hout_ref.dtype)


def _pick_chunk(T, max_chunk=16):
    """Largest divisor of T that is <= max_chunk (whole direction per step for small T)."""
    for c in range(min(T, max_chunk), 0, -1):
        if T % c == 0:
            return c
    return 1


def han2_forward(x_emb, kp, *, t_chunk=None):
    """x_emb: (B, T, INPUT) float32 -> (logits (B, NUM_CLASS), h_n (B, 2*HIDDEN))."""
    B, T, _ = x_emb.shape
    x_tm = jnp.transpose(x_emb, (1, 0, 2))                       # time-major (T, B, IN)
    x_flat = x_tm.reshape(T * B, INPUT).astype(jnp.bfloat16)     # bf16 matmul operand

    # --- batched gate precompute (both directions share the same x tile) -------------
    # NOTE: for very long sequences this single block should be tiled along T*B; at the
    # sizes this classifier runs at, one block per direction fits VMEM comfortably.
    gi_flat = pl.pallas_call(
        _gates_kernel,
        out_shape=jax.ShapeDtypeStruct((2, T * B, 3 * HIDDEN), jnp.float32),
        grid=(2,),
        in_specs=[
            pl.BlockSpec((T * B, INPUT), lambda d: (0, 0)),
            pl.BlockSpec((None, INPUT, 3 * HIDDEN), lambda d: (d, 0, 0)),
            pl.BlockSpec((None, 1, 3 * HIDDEN), lambda d: (d, 0, 0)),
        ],
        out_specs=pl.BlockSpec((None, T * B, 3 * HIDDEN), lambda d: (d, 0, 0)),
        compiler_params=pltpu.CompilerParams(dimension_semantics=("parallel",)),
    )(x_flat, kp["wih_all"], kp["b_comb"])

    gi = gi_flat.reshape(2, T, B, 3 * HIDDEN)                    # row-major split: free

    # --- sequential recurrence, chunked over time -------------------------------------
    tc = t_chunk if t_chunk is not None else _pick_chunk(T)
    C = T // tc

    h_dirs = pl.pallas_call(
        _gru_kernel,
        out_shape=jax.ShapeDtypeStruct((2, B, HIDDEN), jnp.float32),
        grid=(2, C),
        in_specs=[
            # dir 0: chunks 0..C-1 forward; dir 1: chunks C-1..0 (reversed time)
            pl.BlockSpec((None, tc, B, 3 * HIDDEN),
                         lambda d, c: (d, d * (C - 1) + (1 - 2 * d) * c, 0, 0)),
            pl.BlockSpec((None, HIDDEN, 3 * HIDDEN), lambda d, c: (d, 0, 0)),
            pl.BlockSpec((None, 1, HIDDEN), lambda d, c: (d, 0, 0)),
        ],
        out_specs=pl.BlockSpec((None, B, HIDDEN), lambda d, c: (d, 0, 0)),
        scratch_shapes=[pltpu.VMEM((B, HIDDEN), jnp.float32)],
        compiler_params=pltpu.CompilerParams(
            dimension_semantics=("parallel", "arbitrary")),
    )(gi, kp["whh_all"], kp["bhh_n"])

    # torch.cat([h_n[0], h_n[1]], dim=-1) and the 400->NUM_CLASS classifier: left to XLA
    # per the perf review (a Pallas call for a (B,400)x(400,5) matmul is pure overhead).
    h_n = jnp.concatenate([h_dirs[0], h_dirs[1]], axis=-1)       # (B, 2*HIDDEN)
    o = jnp.dot(h_n, kp["w_lin"]) + kp["b_lin"]
    return o, h_n


# --------------------------------------------------------------------------------------
# Parameters
# --------------------------------------------------------------------------------------
def init_params(key):
    """Deterministic f32 init matching the PyTorch module's parameter shapes
    (GRU weights stored pre-transposed as (dir, gate[r,z,n], in, out))."""
    ks = jax.random.split(key, 6)
    k = 1.0 / jnp.sqrt(jnp.float32(HIDDEN))
    kl = 1.0 / jnp.sqrt(jnp.float32(2 * HIDDEN))
    return {
        "wih": jax.random.uniform(ks[0], (2, 3, INPUT, HIDDEN), jnp.float32, -k, k),
        "whh": jax.random.uniform(ks[1], (2, 3, HIDDEN, HIDDEN), jnp.float32, -k, k),
        "bih": jax.random.uniform(ks[2], (2, 3, HIDDEN), jnp.float32, -k, k),
        "bhh": jax.random.uniform(ks[3], (2, 3, HIDDEN), jnp.float32, -k, k),
        "w_lin": jax.random.uniform(ks[4], (2 * HIDDEN, NUM_CLASS), jnp.float32, -kl, kl),
        "b_lin": jax.random.uniform(ks[5], (NUM_CLASS,), jnp.float32, -kl, kl),
    }


def prepare_kernel_params(p):
    """Host-side repack: fuse gates along the output dim, fold r/z biases, cast matmul
    operands to bf16 (f32 accumulation happens in-kernel)."""
    wih_all = jnp.concatenate([p["wih"][:, 0], p["wih"][:, 1], p["wih"][:, 2]], axis=-1)
    whh_all = jnp.concatenate([p["whh"][:, 0], p["whh"][:, 1], p["whh"][:, 2]], axis=-1)
    b_r = p["bih"][:, 0] + p["bhh"][:, 0]          # bih_r + bhh_r folded
    b_z = p["bih"][:, 1] + p["bhh"][:, 1]          # bih_z + bhh_z folded
    b_n = p["bih"][:, 2]                           # bhh_n stays inside r * (.) term
    b_comb = jnp.concatenate([b_r, b_z, b_n], axis=-1)[:, None, :]   # (2, 1, 3*HIDDEN)
    bhh_n = p["bhh"][:, 2][:, None, :]                               # (2, 1, HIDDEN)
    return {
        "wih_all": wih_all.astype(jnp.bfloat16),   # (2, INPUT, 3*HIDDEN)
        "whh_all": whh_all.astype(jnp.bfloat16),   # (2, HIDDEN, 3*HIDDEN)
        "b_comb": b_comb.astype(jnp.float32),
        "bhh_n": bhh_n.astype(jnp.float32),
        "w_lin": p["w_lin"],
        "b_lin": p["b_lin"],
    }


# --------------------------------------------------------------------------------------
# Pure-JAX f32 reference (PyTorch semantics; correctness check only)
# --------------------------------------------------------------------------------------
_PREC = jax.lax.Precision.HIGHEST


def _gru_dir_ref(x_tm, wih, whh, bih, bhh):
    h0 = jnp.zeros((x_tm.shape[1], HIDDEN), jnp.float32)

    def step(h, x):
        gi_r = jnp.dot(x, wih[0], precision=_PREC) + bih[0]
        gi_z = jnp.dot(x, wih[1], precision=_PREC) + bih[1]
        gi_n = jnp.dot(x, wih[2], precision=_PREC) + bih[2]
        gh_r = jnp.dot(h, whh[0], precision=_PREC) + bhh[0]
        gh_z = jnp.dot(h, whh[1], precision=_PREC) + bhh[1]
        gh_n = jnp.dot(h, whh[2], precision=_PREC) + bhh[2]
        r = jax.nn.sigmoid(gi_r + gh_r)
        z = jax.nn.sigmoid(gi_z + gh_z)
        n = jnp.tanh(gi_n + r * gh_n)
        return (1.0 - z) * n + z * h, None

    h_last, _ = jax.lax.scan(step, h0, x_tm)
    return h_last


def han2_ref(x_emb, p):
    x_tm = jnp.transpose(x_emb, (1, 0, 2))
    h_f = _gru_dir_ref(x_tm, p["wih"][0], p["whh"][0], p["bih"][0], p["bhh"][0])
    h_b = _gru_dir_ref(x_tm[::-1], p["wih"][1], p["whh"][1], p["bih"][1], p["bhh"][1])
    h_n = jnp.concatenate([h_f, h_b], axis=-1)
    o = jnp.dot(h_n, p["w_lin"], precision=_PREC) + p["b_lin"]
    return o, h_n


if __name__ == "__main__":
    key = jax.random.PRNGKey(0)
    k_param, k_x = jax.random.split(key)

    B, T = 2, 8
    params = init_params(k_param)
    kparams = prepare_kernel_params(params)
    x_emb = jax.random.normal(k_x, (B, T, INPUT), jnp.float32)

    o, h_n = jax.jit(han2_forward)(x_emb, kparams)
    jax.block_until_ready((o, h_n))

    o_ref, h_ref = jax.jit(han2_ref)(x_emb, params)
    assert o.shape == (B, NUM_CLASS) and h_n.shape == (B, 2 * HIDDEN)
    # bf16 matmul operands (f32 accumulate) vs f32-HIGHEST reference -> relaxed tolerance.
    assert jnp.allclose(h_n, h_ref, atol=3e-2, rtol=3e-2), float(jnp.max(jnp.abs(h_n - h_ref)))
    assert jnp.allclose(o, o_ref, atol=3e-2, rtol=3e-2), float(jnp.max(jnp.abs(o - o_ref)))

    print("KERNEL_OK")
</pallas_src>

<mosaic_0001>
module attributes {stable_mosaic.version = 11 : i64} {
  func.func @_gates_kernel(%arg0: i32, %arg1: memref<16x200xbf16, #tpu.memory_space<vmem>>, %arg2: memref<1x200x600xbf16, #tpu.memory_space<vmem>>, %arg3: memref<1x1x600xf32, #tpu.memory_space<vmem>>, %arg4: memref<1x16x600xf32, #tpu.memory_space<vmem>>) attributes {dimension_semantics = [#tpu.dimension_semantics<parallel>], iteration_bounds = array<i64: 2>, scalar_prefetch = 0 : i64, scratch_operands = 0 : i64, tpu.core_type = #tpu.core_type<tc>, window_params = [{pipeline_mode = #tpu.pipeline_mode<synchronous>, transform_indices = @transform_0, window_bounds = array<i64: 16, 200>}, {transform_indices = @transform_1, window_bounds = array<i64: 1, 200, 600>}, {transform_indices = @transform_2, window_bounds = array<i64: 1, 1, 600>}, {transform_indices = @transform_3, window_bounds = array<i64: 1, 16, 600>}]} {
    %c0 = arith.constant 0 : index
    %c0_0 = arith.constant 0 : index
    %0 = vector.load %arg1[%c0, %c0_0] : memref<16x200xbf16, #tpu.memory_space<vmem>>, vector<16x200xbf16>
    %c0_1 = arith.constant 0 : index
    %c0_2 = arith.constant 0 : index
    %c0_3 = arith.constant 0 : index
    %1 = vector.load %arg2[%c0_1, %c0_2, %c0_3] : memref<1x200x600xbf16, #tpu.memory_space<vmem>>, vector<1x200x600xbf16>
    %2 = vector.shape_cast %1 : vector<1x200x600xbf16> to vector<200x600xbf16>
    %cst = arith.constant dense<0.000000e+00> : vector<16x600xf32>
    %3 = tpu.matmul %0, %2, %cst {dimension_numbers = #tpu.dot_dimension_numbers<[1], [0], [0], [1], [0, 0, 1, 1], [], []>} : vector<16x200xbf16>, vector<200x600xbf16>, vector<16x600xf32> -> vector<16x600xf32>
    %c0_4 = arith.constant 0 : index
    %c0_5 = arith.constant 0 : index
    %c0_6 = arith.constant 0 : index
    %4 = vector.load %arg3[%c0_4, %c0_5, %c0_6] : memref<1x1x600xf32, #tpu.memory_space<vmem>>, vector<1x1x600xf32>
    %5 = vector.shape_cast %4 : vector<1x1x600xf32> to vector<1x600xf32>
    %6 = vector.broadcast %5 : vector<1x600xf32> to vector<16x600xf32>
    %7 = arith.addf %3, %6 : vector<16x600xf32>
    %c0_7 = arith.constant 0 : index
    %c0_8 = arith.constant 0 : index
    %c0_9 = arith.constant 0 : index
    %8 = vector.load %arg4[%c0_7, %c0_8, %c0_9] : memref<1x16x600xf32, #tpu.memory_space<vmem>>, vector<1x16x600xf32>
    %9 = vector.shape_cast %8 : vector<1x16x600xf32> to vector<16x600xf32>
    %10 = vector.shape_cast %7 : vector<16x600xf32> to vector<1x16x600xf32>
    tpu.vector_store %arg4[%c0_7, %c0_8, %c0_9], %10 {strides = array<i32>} : memref<1x16x600xf32, #tpu.memory_space<vmem>>, vector<1x16x600xf32>,
    return
  }
  func.func @transform_0(%arg0: i32) -> (i32, i32) {
    %c0_i32 = arith.constant 0 : i32
    %c0_i32_0 = arith.constant 0 : i32
    %c0_i32_1 = arith.constant 0 : i32
    return %c0_i32, %c0_i32_0 : i32, i32
  }
  func.func @transform_1(%arg0: i32) -> (i32, i32, i32) {
    %c0_i32 = arith.constant 0 : i32
    %c0_i32_0 = arith.constant 0 : i32
    %c0_i32_1 = arith.constant 0 : i32
    return %arg0, %c0_i32, %c0_i32_0 : i32, i32, i32
  }
  func.func @transform_2(%arg0: i32) -> (i32, i32, i32) {
    %c0_i32 = arith.constant 0 : i32
    %c0_i32_0 = arith.constant 0 : i32
    %c0_i32_1 = arith.constant 0 : i32
    return %arg0, %c0_i32, %c0_i32_0 : i32, i32, i32
  }
  func.func @transform_3(%arg0: i32) -> (i32, i32, i32) {
    %c0_i32 = arith.constant 0 : i32
    %c0_i32_0 = arith.constant 0 : i32
    %c0_i32_1 = arith.constant 0 : i32
    return %arg0, %c0_i32, %c0_i32_0 : i32, i32, i32
  }
}

module attributes {stable_mosaic.version = 11 : i64} {
  func.func @_gru_kernel(%arg0: i32, %arg1: i32, %arg2: memref<1x8x2x600xf32, #tpu.memory_space<vmem>>, %arg3: memref<1x200x600xbf16, #tpu.memory_space<vmem>>, %arg4: memref<1x1x200xf32, #tpu.memory_space<vmem>>, %arg5: memref<1x2x200xf32, #tpu.memory_space<vmem>>, %arg6: memref<2x200xf32, #tpu.memory_space<vmem>>) attributes {dimension_semantics = [#tpu.dimension_semantics<parallel>, #tpu.dimension_semantics<arbitrary>], iteration_bounds = array<i64: 2, 1>, scalar_prefetch = 0 : i64, scratch_operands = 1 : i64, tpu.core_type = #tpu.core_type<tc>, window_params = [{transform_indices = @transform_0, window_bounds = array<i64: 1, 8, 2, 600>}, {transform_indices = @transform_1, window_bounds = array<i64: 1, 200, 600>}, {transform_indices = @transform_2, window_bounds = array<i64: 1, 1, 200>}, {transform_indices = @transform_3, window_bounds = array<i64: 1, 2, 200>}]} {
    %c0_i32 = arith.constant 0 : i32
    %0 = arith.cmpi eq, %arg1, %c0_i32 : i32
    %1 = arith.extui %0 : i1 to i32
    %c0_i32_0 = arith.constant 0 : i32
    %2 = arith.cmpi ne, %1, %c0_i32_0 : i32
    scf.if %2 {
      %cst_71 = arith.constant 0.000000e+00 : f32
      %295 = vector.broadcast %cst_71 : f32 to vector<2x200xf32>
      %c0_72 = arith.constant 0 : index
      %c0_73 = arith.constant 0 : index
      %296 = vector.load %arg6[%c0_72, %c0_73] : memref<2x200xf32, #tpu.memory_space<vmem>>, vector<2x200xf32>
      tpu.vector_store %arg6[%c0_72, %c0_73], %295 {strides = array<i32>} : memref<2x200xf32, #tpu.memory_space<vmem>>, vector<2x200xf32>,
    } else {
    }
    %c0 = arith.constant 0 : index
    %c0_1 = arith.constant 0 : index
    %c0_2 = arith.constant 0 : index
    %3 = vector.load %arg3[%c0, %c0_1, %c0_2] : memref<1x200x600xbf16, #tpu.memory_space<vmem>>, vector<1x200x600xbf16>
    %4 = vector.shape_cast %3 : vector<1x200x600xbf16> to vector<200x600xbf16>
    %c0_3 = arith.constant 0 : index
    %c0_4 = arith.constant 0 : index
    %c0_5 = arith.constant 0 : index
    %5 = vector.load %arg4[%c0_3, %c0_4, %c0_5] : memref<1x1x200xf32, #tpu.memory_space<vmem>>, vector<1x1x200xf32>
    %6 = vector.shape_cast %5 : vector<1x1x200xf32> to vector<1x200xf32>
    %c2_i32 = arith.constant 2 : i32
    %7 = arith.muli %c2_i32, %arg0 : i32
    %c1_i32 = arith.constant 1 : i32
    %8 = arith.subi %c1_i32, %7 : i32
    %c7_i32 = arith.constant 7 : i32
    %9 = arith.muli %arg0, %c7_i32 : i32
    %c0_6 = arith.constant 0 : index
    %c0_7 = arith.constant 0 : index
    %10 = vector.load %arg6[%c0_6, %c0_7] : memref<2x200xf32, #tpu.memory_space<vmem>>, vector<2x200xf32>
    %c0_i32_8 = arith.constant 0 : i32
    %11 = arith.muli %8, %c0_i32_8 : i32
    %12 = arith.addi %9, %11 : i32
    %c0_9 = arith.constant 0 : index
    %13 = arith.index_cast %12 : i32 to index
    %c0_10 = arith.constant 0 : index
    %c0_11 = arith.constant 0 : index
    %14 = vector.load %arg2[%c0_9, %13, %c0_10, %c0_11] : memref<1x8x2x600xf32, #tpu.memory_space<vmem>>, vector<1x1x2x600xf32>
    %15 = vector.shape_cast %14 : vector<1x1x2x600xf32> to vector<2x600xf32>
    %16 = arith.truncf %10 : vector<2x200xf32> to vector<2x200xbf16>
    %cst = arith.constant dense<0.000000e+00> : vector<2x600xf32>
    %17 = tpu.matmul %16, %4, %cst {dimension_numbers = #tpu.dot_dimension_numbers<[1], [0], [0], [1], [0, 0, 1, 1], [], []>} : vector<2x200xbf16>, vector<200x600xbf16>, vector<2x600xf32> -> vector<2x600xf32>
    %18 = vector.extract_strided_slice %15 {offsets = [0, 0], sizes = [2, 200], strides = [1, 1]} : vector<2x600xf32> to vector<2x200xf32>
    %19 = vector.extract_strided_slice %17 {offsets = [0, 0], sizes = [2, 200], strides = [1, 1]} : vector<2x600xf32> to vector<2x200xf32>
    %20 = arith.addf %18, %19 : vector<2x200xf32>
    %21 = arith.negf %20 : vector<2x200xf32>
    %22 = math.exp %21 : vector<2x200xf32>
    %cst_12 = arith.constant 1.000000e+00 : f32
    %23 = vector.broadcast %cst_12 : f32 to vector<2x200xf32>
    %24 = arith.addf %23, %22 : vector<2x200xf32>
    %25 = arith.divf %23, %24 : vector<2x200xf32>
    %26 = vector.extract_strided_slice %15 {offsets = [0, 200], sizes = [2, 200], strides = [1, 1]} : vector<2x600xf32> to vector<2x200xf32>
    %27 = vector.extract_strided_slice %17 {offsets = [0, 200], sizes = [2, 200], strides = [1, 1]} : vector<2x600xf32> to vector<2x200xf32>
    %28 = arith.addf %26, %27 : vector<2x200xf32>
    %29 = arith.negf %28 : vector<2x200xf32>
    %30 = math.exp %29 : vector<2x200xf32>
    %cst_13 = arith.constant 1.000000e+00 : f32
    %31 = vector.broadcast %cst_13 : f32 to vector<2x200xf32>
    %32 = arith.addf %31, %30 : vector<2x200xf32>
    %33 = arith.divf %31, %32 : vector<2x200xf32>
    %34 = vector.extract_strided_slice %15 {offsets = [0, 400], sizes = [2, 200], strides = [1, 1]} : vector<2x600xf32> to vector<2x200xf32>
    %35 = vector.extract_strided_slice %17 {offsets = [0, 400], sizes = [2, 200], strides = [1, 1]} : vector<2x600xf32> to vector<2x200xf32>
    %36 = vector.broadcast %6 : vector<1x200xf32> to vector<2x200xf32>
    %37 = arith.addf %35, %36 : vector<2x200xf32>
    %38 = arith.mulf %25, %37 : vector<2x200xf32>
    %39 = arith.addf %34, %38 : vector<2x200xf32>
    %40 = math.tanh %39 : vector<2x200xf32>
    %cst_14 = arith.constant 1.000000e+00 : f32
    %41 = vector.broadcast %cst_14 : f32 to vector<2x200xf32>
    %42 = arith.subf %41, %33 : vector<2x200xf32>
    %43 = arith.mulf %42, %40 : vector<2x200xf32>
    %44 = arith.mulf %33, %10 : vector<2x200xf32>
    %45 = arith.addf %43, %44 : vector<2x200xf32>
    %c1_i32_15 = arith.constant 1 : i32
    %46 = arith.muli %8, %c1_i32_15 : i32
    %47 = arith.addi %9, %46 : i32
    %c0_16 = arith.constant 0 : index
    %48 = arith.index_cast %47 : i32 to index
    %c0_17 = arith.constant 0 : index
    %c0_18 = arith.constant 0 : index
    %49 = vector.load %arg2[%c0_16, %48, %c0_17, %c0_18] : memref<1x8x2x600xf32, #tpu.memory_space<vmem>>, vector<1x1x2x600xf32>
    %50 = vector.shape_cast %49 : vector<1x1x2x600xf32> to vector<2x600xf32>
    %51 = arith.truncf %45 : vector<2x200xf32> to vector<2x200xbf16>
    %cst_19 = arith.constant dense<0.000000e+00> : vector<2x600xf32>
    %52 = tpu.matmul %51, %4, %cst_19 {dimension_numbers = #tpu.dot_dimension_numbers<[1], [0], [0], [1], [0, 0, 1, 1], [], []>} : vector<2x200xbf16>, vector<200x600xbf16>, vector<2x600xf32> -> vector<2x600xf32>
    %53 = vector.extract_strided_slice %50 {offsets = [0, 0], sizes = [2, 200], strides = [1, 1]} : vector<2x600xf32> to vector<2x200xf32>
    %54 = vector.extract_strided_slice %52 {offsets = [0, 0], sizes = [2, 200], strides = [1, 1]} : vector<2x600xf32> to vector<2x200xf32>
    %55 = arith.addf %53, %54 : vector<2x200xf32>
    %56 = arith.negf %55 : vector<2x200xf32>
    %57 = math.exp %56 : vector<2x200xf32>
    %cst_20 = arith.constant 1.000000e+00 : f32
    %58 = vector.broadcast %cst_20 : f32 to vector<2x200xf32>
    %59 = arith.addf %58, %57 : vector<2x200xf32>
    %60 = arith.divf %58, %59 : vector<2x200xf32>
    %61 = vector.extract_strided_slice %50 {offsets = [0, 200], sizes = [2, 200], strides = [1, 1]} : vector<2x600xf32> to vector<2x200xf32>
    %62 = vector.extract_strided_slice %52 {offsets = [0, 200], sizes = [2, 200], strides = [1, 1]} : vector<2x600xf32> to vector<2x200xf32>
    %63 = arith.addf %61, %62 : vector<2x200xf32>
    %64 = arith.negf %63 : vector<2x200xf32>
    %65 = math.exp %64 : vector<2x200xf32>
    %cst_21 = arith.constant 1.000000e+00 : f32
    %66 = vector.broadcast %cst_21 : f32 to vector<2x200xf32>
    %67 = arith.addf %66, %65 : vector<2x200xf32>
    %68 = arith.divf %66, %67 : vector<2x200xf32>
    %69 = vector.extract_strided_slice %50 {offsets = [0, 400], sizes = [2, 200], strides = [1, 1]} : vector<2x600xf32> to vector<2x200xf32>
    %70 = vector.extract_strided_slice %52 {offsets = [0, 400], sizes = [2, 200], strides = [1, 1]} : vector<2x600xf32> to vector<2x200xf32>
    %71 = vector.broadcast %6 : vector<1x200xf32> to vector<2x200xf32>
    %72 = arith.addf %70, %71 : vector<2x200xf32>
    %73 = arith.mulf %60, %72 : vector<2x200xf32>
    %74 = arith.addf %69, %73 : vector<2x200xf32>
    %75 = math.tanh %74 : vector<2x200xf32>
    %cst_22 = arith.constant 1.000000e+00 : f32
    %76 = vector.broadcast %cst_22 : f32 to vector<2x200xf32>
    %77 = arith.subf %76, %68 : vector<2x200xf32>
    %78 = arith.mulf %77, %75 : vector<2x200xf32>
    %79 = arith.mulf %68, %45 : vector<2x200xf32>
    %80 = arith.addf %78, %79 : vector<2x200xf32>
    %c2_i32_23 = arith.constant 2 : i32
    %81 = arith.muli %8, %c2_i32_23 : i32
    %82 = arith.addi %9, %81 : i32
    %c0_24 = arith.constant 0 : index
    %83 = arith.index_cast %82 : i32 to index
    %c0_25 = arith.constant 0 : index
    %c0_26 = arith.constant 0 : index
    %84 = vector.load %arg2[%c0_24, %83, %c0_25, %c0_26] : memref<1x8x2x600xf32, #tpu.memory_space<vmem>>, vector<1x1x2x600xf32>
    %85 = vector.shape_cast %84 : vector<1x1x2x600xf32> to vector<2x600xf32>
    %86 = arith.truncf %80 : vector<2x200xf32> to vector<2x200xbf16>
    %cst_27 = arith.constant dense<0.000000e+00> : vector<2x600xf32>
    %87 = tpu.matmul %86, %4, %cst_27 {dimension_numbers = #tpu.dot_dimension_numbers<[1], [0], [0], [1], [0, 0, 1, 1], [], []>} : vector<2x200xbf16>, vector<200x600xbf16>, vector<2x600xf32> -> vector<2x600xf32>
    %88 = vector.extract_strided_slice %85 {offsets = [0, 0], sizes = [2, 200], strides = [1, 1]} : vector<2x600xf32> to vector<2x200xf32>
    %89 = vector.extract_strided_slice %87 {offsets = [0, 0], sizes = [2, 200], strides = [1, 1]} : vector<2x600xf32> to vector<2x200xf32>
    %90 = arith.addf %88, %89 : vector<2x200xf32>
    %91 = arith.negf %90 : vector<2x200xf32>
    %92 = math.exp %91 : vector<2x200xf32>
    %cst_28 = arith.constant 1.000000e+00 : f32
    %93 = vector.broadcast %cst_28 : f32 to vector<2x200xf32>
    %94 = arith.addf %93, %92 : vector<2x200xf32>
    %95 = arith.divf %93, %94 : vector<2x200xf32>
    %96 = vector.extract_strided_slice %85 {offsets = [0, 200], sizes = [2, 200], strides = [1, 1]} : vector<2x600xf32> to vector<2x200xf32>
    %97 = vector.extract_strided_slice %87 {offsets = [0, 200], sizes = [2, 200], strides = [1, 1]} : vector<2x600xf32> to vector<2x200xf32>
    %98 = arith.addf %96, %97 : vector<2x200xf32>
    %99 = arith.negf %98 : vector<2x200xf32>
    %100 = math.exp %99 : vector<2x200xf32>
    %cst_29 = arith.constant 1.000000e+00 : f32
    %101 = vector.broadcast %cst_29 : f32 to vector<2x200xf32>
    %102 = arith.addf %101, %100 : vector<2x200xf32>
    %103 = arith.divf %101, %102 : vector<2x200xf32>
    %104 = vector.extract_strided_slice %85 {offsets = [0, 400], sizes = [2, 200], strides = [1, 1]} : vector<2x600xf32> to vector<2x200xf32>
    %105 = vector.extract_strided_slice %87 {offsets = [0, 400], sizes = [2, 200], strides = [1, 1]} : vector<2x600xf32> to vector<2x200xf32>
    %106 = vector.broadcast %6 : vector<1x200xf32> to vector<2x200xf32>
    %107 = arith.addf %105, %106 : vector<2x200xf32>
    %108 = arith.mulf %95, %107 : vector<2x200xf32>
    %109 = arith.addf %104, %108 : vector<2x200xf32>
    %110 = math.tanh %109 : vector<2x200xf32>
    %cst_30 = arith.constant 1.000000e+00 : f32
    %111 = vector.broadcast %cst_30 : f32 to vector<2x200xf32>
    %112 = arith.subf %111, %103 : vector<2x200xf32>
    %113 = arith.mulf %112, %110 : vector<2x200xf32>
    %114 = arith.mulf %103, %80 : vector<2x200xf32>
    %115 = arith.addf %113, %114 : vector<2x200xf32>
    %c3_i32 = arith.constant 3 : i32
    %116 = arith.muli %8, %c3_i32 : i32
    %117 = arith.addi %9, %116 : i32
    %c0_31 = arith.constant 0 : index
    %118 = arith.index_cast %117 : i32 to index
    %c0_32 = arith.constant 0 : index
    %c0_33 = arith.constant 0 : index
    %119 = vector.load %arg2[%c0_31, %118, %c0_32, %c0_33] : memref<1x8x2x600xf32, #tpu.memory_space<vmem>>, vector<1x1x2x600xf32>
    %120 = vector.shape_cast %119 : vector<1x1x2x600xf32> to vector<2x600xf32>
    %121 = arith.truncf %115 : vector<2x200xf32> to vector<2x200xbf16>
    %cst_34 = arith.constant dense<0.000000e+00> : vector<2x600xf32>
    %122 = tpu.matmul %121, %4, %cst_34 {dimension_numbers = #tpu.dot_dimension_numbers<[1], [0], [0], [1], [0, 0, 1, 1], [], []>} : vector<2x200xbf16>, vector<200x600xbf16>, vector<2x600xf32> -> vector<2x600xf32>
    %123 = vector.extract_strided_slice %120 {offsets = [0, 0], sizes = [2, 200], strides = [1, 1]} : vector<2x600xf32> to vector<2x200xf32>
    %124 = vector.extract_strided_slice %122 {offsets = [0, 0], sizes = [2, 200], strides = [1, 1]} : vector<2x600xf32> to vector<2x200xf32>
    %125 = arith.addf %123, %124 : vector<2x200xf32>
    %126 = arith.negf %125 : vector<2x200xf32>
    %127 = math.exp %126 : vector<2x200xf32>
    %cst_35 = arith.constant 1.000000e+00 : f32
    %128 = vector.broadcast %cst_35 : f32 to vector<2x200xf32>
    %129 = arith.addf %128, %127 : vector<2x200xf32>
    %130 = arith.divf %128, %129 : vector<2x200xf32>
    %131 = vector.extract_strided_slice %120 {offsets = [0, 200], sizes = [2, 200], strides = [1, 1]} : vector<2x600xf32> to vector<2x200xf32>
    %132 = vector.extract_strided_slice %122 {offsets = [0, 200], sizes = [2, 200], strides = [1, 1]} : vector<2x600xf32> to vector<2x200xf32>
    %133 = arith.addf %131, %132 : vector<2x200xf32>
    %134 = arith.negf %133 : vector<2x200xf32>
    %135 = math.exp %134 : vector<2x200xf32>
    %cst_36 = arith.constant 1.000000e+00 : f32
    %136 = vector.broadcast %cst_36 : f32 to vector<2x200xf32>
    %137 = arith.addf %136, %135 : vector<2x200xf32>
    %138 = arith.divf %136, %137 : vector<2x200xf32>
    %139 = vector.extract_strided_slice %120 {offsets = [0, 400], sizes = [2, 200], strides = [1, 1]} : vector<2x600xf32> to vector<2x200xf32>
    %140 = vector.extract_strided_slice %122 {offsets = [0, 400], sizes = [2, 200], strides = [1, 1]} : vector<2x600xf32> to vector<2x200xf32>
    %141 = vector.broadcast %6 : vector<1x200xf32> to vector<2x200xf32>
    %142 = arith.addf %140, %141 : vector<2x200xf32>
    %143 = arith.mulf %130, %142 : vector<2x200xf32>
    %144 = arith.addf %139, %143 : vector<2x200xf32>
    %145 = math.tanh %144 : vector<2x200xf32>
    %cst_37 = arith.constant 1.000000e+00 : f32
    %146 = vector.broadcast %cst_37 : f32 to vector<2x200xf32>
    %147 = arith.subf %146, %138 : vector<2x200xf32>
    %148 = arith.mulf %147, %145 : vector<2x200xf32>
    %149 = arith.mulf %138, %115 : vector<2x200xf32>
    %150 = arith.addf %148, %149 : vector<2x200xf32>
    %c4_i32 = arith.constant 4 : i32
    %151 = arith.muli %8, %c4_i32 : i32
    %152 = arith.addi %9, %151 : i32
    %c0_38 = arith.constant 0 : index
    %153 = arith.index_cast %152 : i32 to index
    %c0_39 = arith.constant 0 : index
    %c0_40 = arith.constant 0 : index
    %154 = vector.load %arg2[%c0_38, %153, %c0_39, %c0_40] : memref<1x8x2x600xf32, #tpu.memory_space<vmem>>, vector<1x1x2x600xf32>
    %155 = vector.shape_cast %154 : vector<1x1x2x600xf32> to vector<2x600xf32>
    %156 = arith.truncf %150 : vector<2x200xf32> to vector<2x200xbf16>
    %cst_41 = arith.constant dense<0.000000e+00> : vector<2x600xf32>
    %157 = tpu.matmul %156, %4, %cst_41 {dimension_numbers = #tpu.dot_dimension_numbers<[1], [0], [0], [1], [0, 0, 1, 1], [], []>} : vector<2x200xbf16>, vector<200x600xbf16>, vector<2x600xf32> -> vector<2x600xf32>
    %158 = vector.extract_strided_slice %155 {offsets = [0, 0], sizes = [2, 200], strides = [1, 1]} : vector<2x600xf32> to vector<2x200xf32>
    %159 = vector.extract_strided_slice %157 {offsets = [0, 0], sizes = [2, 200], strides = [1, 1]} : vector<2x600xf32> to vector<2x200xf32>
    %160 = arith.addf %158, %159 : vector<2x200xf32>
    %161 = arith.negf %160 : vector<2x200xf32>
    %162 = math.exp %161 : vector<2x200xf32>
    %cst_42 = arith.constant 1.000000e+00 : f32
    %163 = vector.broadcast %cst_42 : f32 to vector<2x200xf32>
    %164 = arith.addf %163, %162 : vector<2x200xf32>
    %165 = arith.divf %163, %164 : vector<2x200xf32>
    %166 = vector.extract_strided_slice %155 {offsets = [0, 200], sizes = [2, 200], strides = [1, 1]} : vector<2x600xf32> to vector<2x200xf32>
    %167 = vector.extract_strided_slice %157 {offsets = [0, 200], sizes = [2, 200], strides = [1, 1]} : vector<2x600xf32> to vector<2x200xf32>
    %168 = arith.addf %166, %167 : vector<2x200xf32>
    %169 = arith.negf %168 : vector<2x200xf32>
    %170 = math.exp %169 : vector<2x200xf32>
    %cst_43 = arith.constant 1.000000e+00 : f32
    %171 = vector.broadcast %cst_43 : f32 to vector<2x200xf32>
    %172 = arith.addf %171, %170 : vector<2x200xf32>
    %173 = arith.divf %171, %172 : vector<2x200xf32>
    %174 = vector.extract_strided_slice %155 {offsets = [0, 400], sizes = [2, 200], strides = [1, 1]} : vector<2x600xf32> to vector<2x200xf32>
    %175 = vector.extract_strided_slice %157 {offsets = [0, 400], sizes = [2, 200], strides = [1, 1]} : vector<2x600xf32> to vector<2x200xf32>
    %176 = vector.broadcast %6 : vector<1x200xf32> to vector<2x200xf32>
    %177 = arith.addf %175, %176 : vector<2x200xf32>
    %178 = arith.mulf %165, %177 : vector<2x200xf32>
    %179 = arith.addf %174, %178 : vector<2x200xf32>
    %180 = math.tanh %179 : vector<2x200xf32>
    %cst_44 = arith.constant 1.000000e+00 : f32
    %181 = vector.broadcast %cst_44 : f32 to vector<2x200xf32>
    %182 = arith.subf %181, %173 : vector<2x200xf32>
    %183 = arith.mulf %182, %180 : vector<2x200xf32>
    %184 = arith.mulf %173, %150 : vector<2x200xf32>
    %185 = arith.addf %183, %184 : vector<2x200xf32>
    %c5_i32 = arith.constant 5 : i32
    %186 = arith.muli %8, %c5_i32 : i32
    %187 = arith.addi %9, %186 : i32
    %c0_45 = arith.constant 0 : index
    %188 = arith.index_cast %187 : i32 to index
    %c0_46 = arith.constant 0 : index
    %c0_47 = arith.constant 0 : index
    %189 = vector.load %arg2[%c0_45, %188, %c0_46, %c0_47] : memref<1x8x2x600xf32, #tpu.memory_space<vmem>>, vector<1x1x2x600xf32>
    %190 = vector.shape_cast %189 : vector<1x1x2x600xf32> to vector<2x600xf32>
    %191 = arith.truncf %185 : vector<2x200xf32> to vector<2x200xbf16>
    %cst_48 = arith.constant dense<0.000000e+00> : vector<2x600xf32>
    %192 = tpu.matmul %191, %4, %cst_48 {dimension_numbers = #tpu.dot_dimension_numbers<[1], [0], [0], [1], [0, 0, 1, 1], [], []>} : vector<2x200xbf16>, vector<200x600xbf16>, vector<2x600xf32> -> vector<2x600xf32>
    %193 = vector.extract_strided_slice %190 {offsets = [0, 0], sizes = [2, 200], strides = [1, 1]} : vector<2x600xf32> to vector<2x200xf32>
    %194 = vector.extract_strided_slice %192 {offsets = [0, 0], sizes = [2, 200], strides = [1, 1]} : vector<2x600xf32> to vector<2x200xf32>
    %195 = arith.addf %193, %194 : vector<2x200xf32>
    %196 = arith.negf %195 : vector<2x200xf32>
    %197 = math.exp %196 : vector<2x200xf32>
    %cst_49 = arith.constant 1.000000e+00 : f32
    %198 = vector.broadcast %cst_49 : f32 to vector<2x200xf32>
    %199 = arith.addf %198, %197 : vector<2x200xf32>
    %200 = arith.divf %198, %199 : vector<2x200xf32>
    %201 = vector.extract_strided_slice %190 {offsets = [0, 200], sizes = [2, 200], strides = [1, 1]} : vector<2x600xf32> to vector<2x200xf32>
    %202 = vector.extract_strided_slice %192 {offsets = [0, 200], sizes = [2, 200], strides = [1, 1]} : vector<2x600xf32> to vector<2x200xf32>
    %203 = arith.addf %201, %202 : vector<2x200xf32>
    %204 = arith.negf %203 : vector<2x200xf32>
    %205 = math.exp %204 : vector<2x200xf32>
    %cst_50 = arith.constant 1.000000e+00 : f32
    %206 = vector.broadcast %cst_50 : f32 to vector<2x200xf32>
    %207 = arith.addf %206, %205 : vector<2x200xf32>
    %208 = arith.divf %206, %207 : vector<2x200xf32>
    %209 = vector.extract_strided_slice %190 {offsets = [0, 400], sizes = [2, 200], strides = [1, 1]} : vector<2x600xf32> to vector<2x200xf32>
    %210 = vector.extract_strided_slice %192 {offsets = [0, 400], sizes = [2, 200], strides = [1, 1]} : vector<2x600xf32> to vector<2x200xf32>
    %211 = vector.broadcast %6 : vector<1x200xf32> to vector<2x200xf32>
    %212 = arith.addf %210, %211 : vector<2x200xf32>
    %213 = arith.mulf %200, %212 : vector<2x200xf32>
    %214 = arith.addf %209, %213 : vector<2x200xf32>
    %215 = math.tanh %214 : vector<2x200xf32>
    %cst_51 = arith.constant 1.000000e+00 : f32
    %216 = vector.broadcast %cst_51 : f32 to vector<2x200xf32>
    %217 = arith.subf %216, %208 : vector<2x200xf32>
    %218 = arith.mulf %217, %215 : vector<2x200xf32>
    %219 = arith.mulf %208, %185 : vector<2x200xf32>
    %220 = arith.addf %218, %219 : vector<2x200xf32>
    %c6_i32 = arith.constant 6 : i32
    %221 = arith.muli %8, %c6_i32 : i32
    %222 = arith.addi %9, %221 : i32
    %c0_52 = arith.constant 0 : index
    %223 = arith.index_cast %222 : i32 to index
    %c0_53 = arith.constant 0 : index
    %c0_54 = arith.constant 0 : index
    %224 = vector.load %arg2[%c0_52, %223, %c0_53, %c0_54] : memref<1x8x2x600xf32, #tpu.memory_space<vmem>>, vector<1x1x2x600xf32>
    %225 = vector.shape_cast %224 : vector<1x1x2x600xf32> to vector<2x600xf32>
    %226 = arith.truncf %220 : vector<2x200xf32> to vector<2x200xbf16>
    %cst_55 = arith.constant dense<0.000000e+00> : vector<2x600xf32>
    %227 = tpu.matmul %226, %4, %cst_55 {dimension_numbers = #tpu.dot_dimension_numbers<[1], [0], [0], [1], [0, 0, 1, 1], [], []>} : vector<2x200xbf16>, vector<200x600xbf16>, vector<2x600xf32> -> vector<2x600xf32>
    %228 = vector.extract_strided_slice %225 {offsets = [0, 0], sizes = [2, 200], strides = [1, 1]} : vector<2x600xf32> to vector<2x200xf32>
    %229 = vector.extract_strided_slice %227 {offsets = [0, 0], sizes = [2, 200], strides = [1, 1]} : vector<2x600xf32> to vector<2x200xf32>
    %230 = arith.addf %228, %229 : vector<2x200xf32>
    %231 = arith.negf %230 : vector<2x200xf32>
    %232 = math.exp %231 : vector<2x200xf32>
    %cst_56 = arith.constant 1.000000e+00 : f32
    %233 = vector.broadcast %cst_56 : f32 to vector<2x200xf32>
    %234 = arith.addf %233, %232 : vector<2x200xf32>
    %235 = arith.divf %233, %234 : vector<2x200xf32>
    %236 = vector.extract_strided_slice %225 {offsets = [0, 200], sizes = [2, 200], strides = [1, 1]} : vector<2x600xf32> to vector<2x200xf32>
    %237 = vector.extract_strided_slice %227 {offsets = [0, 200], sizes = [2, 200], strides = [1, 1]} : vector<2x600xf32> to vector<2x200xf32>
    %238 = arith.addf %236, %237 : vector<2x200xf32>
    %239 = arith.negf %238 : vector<2x200xf32>
    %240 = math.exp %239 : vector<2x200xf32>
    %cst_57 = arith.constant 1.000000e+00 : f32
    %241 = vector.broadcast %cst_57 : f32 to vector<2x200xf32>
    %242 = arith.addf %241, %240 : vector<2x200xf32>
    %243 = arith.divf %241, %242 : vector<2x200xf32>
    %244 = vector.extract_strided_slice %225 {offsets = [0, 400], sizes = [2, 200], strides = [1, 1]} : vector<2x600xf32> to vector<2x200xf32>
    %245 = vector.extract_strided_slice %227 {offsets = [0, 400], sizes = [2, 200], strides = [1, 1]} : vector<2x600xf32> to vector<2x200xf32>
    %246 = vector.broadcast %6 : vector<1x200xf32> to vector<2x200xf32>
    %247 = arith.addf %245, %246 : vector<2x200xf32>
    %248 = arith.mulf %235, %247 : vector<2x200xf32>
    %249 = arith.addf %244, %248 : vector<2x200xf32>
    %250 = math.tanh %249 : vector<2x200xf32>
    %cst_58 = arith.constant 1.000000e+00 : f32
    %251 = vector.broadcast %cst_58 : f32 to vector<2x200xf32>
    %252 = arith.subf %251, %243 : vector<2x200xf32>
    %253 = arith.mulf %252, %250 : vector<2x200xf32>
    %254 = arith.mulf %243, %220 : vector<2x200xf32>
    %255 = arith.addf %253, %254 : vector<2x200xf32>
    %c7_i32_59 = arith.constant 7 : i32
    %256 = arith.muli %8, %c7_i32_59 : i32
    %257 = arith.addi %9, %256 : i32
    %c0_60 = arith.constant 0 : index
    %258 = arith.index_cast %257 : i32 to index
    %c0_61 = arith.constant 0 : index
    %c0_62 = arith.constant 0 : index
    %259 = vector.load %arg2[%c0_60, %258, %c0_61, %c0_62] : memref<1x8x2x600xf32, #tpu.memory_space<vmem>>, vector<1x1x2x600xf32>
    %260 = vector.shape_cast %259 : vector<1x1x2x600xf32> to vector<2x600xf32>
    %261 = arith.truncf %255 : vector<2x200xf32> to vector<2x200xbf16>
    %cst_63 = arith.constant dense<0.000000e+00> : vector<2x600xf32>
    %262 = tpu.matmul %261, %4, %cst_63 {dimension_numbers = #tpu.dot_dimension_numbers<[1], [0], [0], [1], [0, 0, 1, 1], [], []>} : vector<2x200xbf16>, vector<200x600xbf16>, vector<2x600xf32> -> vector<2x600xf32>
    %263 = vector.extract_strided_slice %260 {offsets = [0, 0], sizes = [2, 200], strides = [1, 1]} : vector<2x600xf32> to vector<2x200xf32>
    %264 = vector.extract_strided_slice %262 {offsets = [0, 0], sizes = [2, 200], strides = [1, 1]} : vector<2x600xf32> to vector<2x200xf32>
    %265 = arith.addf %263, %264 : vector<2x200xf32>
    %266 = arith.negf %265 : vector<2x200xf32>
    %267 = math.exp %266 : vector<2x200xf32>
    %cst_64 = arith.constant 1.000000e+00 : f32
    %268 = vector.broadcast %cst_64 : f32 to vector<2x200xf32>
    %269 = arith.addf %268, %267 : vector<2x200xf32>
    %270 = arith.divf %268, %269 : vector<2x200xf32>
    %271 = vector.extract_strided_slice %260 {offsets = [0, 200], sizes = [2, 200], strides = [1, 1]} : vector<2x600xf32> to vector<2x200xf32>
    %272 = vector.extract_strided_slice %262 {offsets = [0, 200], sizes = [2, 200], strides = [1, 1]} : vector<2x600xf32> to vector<2x200xf32>
    %273 = arith.addf %271, %272 : vector<2x200xf32>
    %274 = arith.negf %273 : vector<2x200xf32>
    %275 = math.exp %274 : vector<2x200xf32>
    %cst_65 = arith.constant 1.000000e+00 : f32
    %276 = vector.broadcast %cst_65 : f32 to vector<2x200xf32>
    %277 = arith.addf %276, %275 : vector<2x200xf32>
    %278 = arith.divf %276, %277 : vector<2x200xf32>
    %279 = vector.extract_strided_slice %260 {offsets = [0, 400], sizes = [2, 200], strides = [1, 1]} : vector<2x600xf32> to vector<2x200xf32>
    %280 = vector.extract_strided_slice %262 {offsets = [0, 400], sizes = [2, 200], strides = [1, 1]} : vector<2x600xf32> to vector<2x200xf32>
    %281 = vector.broadcast %6 : vector<1x200xf32> to vector<2x200xf32>
    %282 = arith.addf %280, %281 : vector<2x200xf32>
    %283 = arith.mulf %270, %282 : vector<2x200xf32>
    %284 = arith.addf %279, %283 : vector<2x200xf32>
    %285 = math.tanh %284 : vector<2x200xf32>
    %cst_66 = arith.constant 1.000000e+00 : f32
    %286 = vector.broadcast %cst_66 : f32 to vector<2x200xf32>
    %287 = arith.subf %286, %278 : vector<2x200xf32>
    %288 = arith.mulf %287, %285 : vector<2x200xf32>
    %289 = arith.mulf %278, %255 : vector<2x200xf32>
    %290 = arith.addf %288, %289 : vector<2x200xf32>
    %c8_i32 = arith.constant 8 : i32
    %c0_67 = arith.constant 0 : index
    %c0_68 = arith.constant 0 : index
    %291 = vector.load %arg6[%c0_67, %c0_68] : memref<2x200xf32, #tpu.memory_space<vmem>>, vector<2x200xf32>
    tpu.vector_store %arg6[%c0_67, %c0_68], %290 {strides = array<i32>} : memref<2x200xf32, #tpu.memory_space<vmem>>, vector<2x200xf32>,
    %c0_i32_69 = arith.constant 0 : i32
    %292 = arith.cmpi eq, %arg1, %c0_i32_69 : i32
    %293 = arith.extui %292 : i1 to i32
    %c0_i32_70 = arith.constant 0 : i32
    %294 = arith.cmpi ne, %293, %c0_i32_70 : i32
    scf.if %294 {
      %c0_71 = arith.constant 0 : index
      %c0_72 = arith.constant 0 : index
      %c0_73 = arith.constant 0 : index
      %295 = vector.load %arg5[%c0_71, %c0_72, %c0_73] : memref<1x2x200xf32, #tpu.memory_space<vmem>>, vector<1x2x200xf32>
      %296 = vector.shape_cast %295 : vector<1x2x200xf32> to vector<2x200xf32>
      %297 = vector.shape_cast %290 : vector<2x200xf32> to vector<1x2x200xf32>
      tpu.vector_store %arg5[%c0_71, %c0_72, %c0_73], %297 {strides = array<i32>} : memref<1x2x200xf32, #tpu.memory_space<vmem>>, vector<1x2x200xf32>,
    } else {
    }
    return
  }
  func.func @transform_0(%arg0: i32, %arg1: i32) -> (i32, i32, i32, i32) {
    %c0_i32 = arith.constant 0 : i32
    %0 = arith.muli %arg0, %c0_i32 : i32
    %c2_i32 = arith.constant 2 : i32
    %1 = arith.muli %c2_i32, %arg0 : i32
    %c1_i32 = arith.constant 1 : i32
    %2 = arith.subi %c1_i32, %1 : i32
    %3 = arith.muli %2, %arg1 : i32
    %4 = arith.addi %0, %3 : i32
    %c0_i32_0 = arith.constant 0 : i32
    %c0_i32_1 = arith.constant 0 : i32
    %c0_i32_2 = arith.constant 0 : i32
    return %arg0, %4, %c0_i32_0, %c0_i32_1 : i32, i32, i32, i32
  }
  func.func @transform_1(%arg0: i32, %arg1: i32) -> (i32, i32, i32) {
    %c0_i32 = arith.constant 0 : i32
    %c0_i32_0 = arith.constant 0 : i32
    %c0_i32_1 = arith.constant 0 : i32
    return %arg0, %c0_i32, %c0_i32_0 : i32, i32, i32
  }
  func.func @transform_2(%arg0: i32, %arg1: i32) -> (i32, i32, i32) {
    %c0_i32 = arith.constant 0 : i32
    %c0_i32_0 = arith.constant 0 : i32
    %c0_i32_1 = arith.constant 0 : i32
    return %arg0, %c0_i32, %c0_i32_0 : i32, i32, i32
  }
  func.func @transform_3(%arg0: i32, %arg1: i32) -> (i32, i32, i32) {
    %c0_i32 = arith.constant 0 : i32
    %c0_i32_0 = arith.constant 0 : i32
    %c0_i32_1 = arith.constant 0 : i32
    return %arg0, %c0_i32, %c0_i32_0 : i32, i32, i32
  }
}

</mosaic_0001>

<llo_original>
// kernel: han2_forward.2
$region0: #{han2_forward.2}
  #allocation0 [shape = 'u32[]', space=smem, size = 0x4, offset = 0x4, fixed_abs, tag = 'smem constant byte address 0x4 - core index']
  #allocation1 [shape = 'u32[144,128]{1,0:T(1,128)}', space=vmem, size = 0x12000, scoped, tag = 'internal scratch']
  %s0 = inlined_call_operand.vmem [shape: bf16[16,200], index: 0, kind: input, shape index: {}]
  %s1 = inlined_call_operand.hbm [shape: bf16[2,200,600], index: 1, kind: input, shape index: {}]
  %s2 = inlined_call_operand.hbm [shape: f32[2,1,600], index: 2, kind: input, shape index: {}]
  %s3 = inlined_call_operand.vmem [shape: f32[2,16,600], index: 3, kind: output, shape index: {}]
  %s4 = sld [smem:[#allocation0]]
  $region53: #{han2_forward.2} parent=0
    _
  %s6 = ssub.s32 1, %s4
  %s7 = scalar_select 0, %s6, %s4
  $region1: #{han2_forward.2} parent=0
    #allocation2 [shape = 'u8[512000]{0}', space=vmem, size = 0x7d000, scoped, tag = 'input window, operand 1']
    #allocation3 [shape = 's32[2]{0}', space=sflag, size = 0x8, scoped, tag = 'scoped memory for han2_forward.2']
    #allocation4 [shape = 'u8[5120]{0}', space=vmem, size = 0x1400, scoped, tag = 'input window, operand 2']
    #allocation5 [shape = 's32[2]{0}', space=sflag, size = 0x8, scoped, tag = 'scoped memory for han2_forward.2']
    %8 = vsyncpa [#allocation3], 0
    %s9 = scalar_lea.sflag [#allocation3], 1
    %10 = vsyncpa %s9, 0
    %11 = vsyncpa [#allocation5], 0
    %s12 = scalar_lea.sflag [#allocation5], 1
    %13 = vsyncpa %s12, 0
    loop: start=0, step=1, limit=4
    $region2: #{han2_forward.2} parent=1 // loop_pre_header
      _
    $region3: #{han2_forward.2} parent=1 // loop_header
      %s15 = sphi 0, %s19
      %p16 = scmp.ge.s32.totalorder %s15, 4
      %s23 = sphi 0, %s23
      %s25 = sphi 0, %s23
      %s26 = sphi 0, %s25
      %s40 = sphi 0, %s26
      %s46 = sphi 0, %s48
      %s49 = sphi 0, %s46
      %s50 = sphi 0, %s49
      %s66 = sphi 0, %s50
      %s72 = sphi 0, %s74
      %s75 = sphi 0, %s72
      %s76 = sphi 0, %s75
      %s92 = sphi 0, %s76
      %s98 = sphi 0, %s100
      %s101 = sphi 0, %s98
      %s102 = sphi 0, %s101
      %s118 = sphi 0, %s102
    $region4: #{han2_forward.2} parent=1 // loop_header_branch
      %18 = sbr.rel (%p16) target = $region8
    $region5: #{han2_forward.2} parent=1 // loop_body
      %s20 = ssub.s32 %s15, 1
      %s21 = ssub.s32 %s15, 2
      %s22 = sadd.s32 %s15, 1
      %s24 = sadd.s32 %s23, 1
      %p27 = scmp.eq.s32.totalorder %s15, 1
      %p28 = scmp.ne.s32.totalorder %s23, %s25
      %p29 = scmp.eq.s32.totalorder %s15, 0
      %p30 = por %p28, %p29
      %p31 = scmp.ne.s32.totalorder %s23, %s25
      %p32 = scmp.eq.s32.totalorder %s20, 1
      %p33 = por %p31, %p32
      %p34 = scmp.ne.s32.totalorder %s25, %s26
      %p35 = scmp.eq.s32.totalorder %s20, 0
      %p36 = por %p34, %p35
      %p37 = scmp.ne.s32.totalorder %s25, %s26
      %p38 = scmp.eq.s32.totalorder %s21, 1
      %p39 = por %p37, %p38
      %p41 = scmp.ne.s32.totalorder %s26, %s40
      %p42 = scmp.eq.s32.totalorder %s21, 0
      %p43 = por %p41, %p42
      %s44 = ssub.s32 %s15, %s22
      %p45 = scmp.eq.s32.totalorder %s44, 0
      %s47 = sadd.s32 %s46, 1
      %s48 = scalar_select %p45, %s46, %s47
      %p51 = pneg %p45
      %p52 = scmp.eq.s32.totalorder %s15, 1
      %p53 = por %p51, %p52
      %p54 = scmp.ne.s32.totalorder %s46, %s49
      %p55 = scmp.eq.s32.totalorder %s15, 0
      %p56 = por %p54, %p55
      %p57 = scmp.ne.s32.totalorder %s46, %s49
      %p58 = scmp.eq.s32.totalorder %s20, 1
      %p59 = por %p57, %p58
      %p60 = scmp.ne.s32.totalorder %s49, %s50
      %p61 = scmp.eq.s32.totalorder %s20, 0
      %p62 = por %p60, %p61
      %p63 = scmp.ne.s32.totalorder %s49, %s50
      %p64 = scmp.eq.s32.totalorder %s21, 1
      %p65 = por %p63, %p64
      %p67 = scmp.ne.s32.totalorder %s50, %s66
      %p68 = scmp.eq.s32.totalorder %s21, 0
      %p69 = por %p67, %p68
      %s70 = ssub.s32 %s15, %s22
      %p71 = scmp.eq.s32.totalorder %s70, 0
      %s73 = sadd.s32 %s72, 1
      %s74 = scalar_select %p71, %s72, %s73
      %p77 = pneg %p71
      %p78 = scmp.eq.s32.totalorder %s15, 1
      %p79 = por %p77, %p78
      %p80 = scmp.ne.s32.totalorder %s72, %s75
      %p81 = scmp.eq.s32.totalorder %s15, 0
      %p82 = por %p80, %p81
      %p83 = scmp.ne.s32.totalorder %s72, %s75
      %p84 = scmp.eq.s32.totalorder %s20, 1
      %p85 = por %p83, %p84
      %p86 = scmp.ne.s32.totalorder %s75, %s76
      %p87 = scmp.eq.s32.totalorder %s20, 0
      %p88 = por %p86, %p87
      %p89 = scmp.ne.s32.totalorder %s75, %s76
      %p90 = scmp.eq.s32.totalorder %s21, 1
      %p91 = por %p89, %p90
      %p93 = scmp.ne.s32.totalorder %s76, %s92
      %p94 = scmp.eq.s32.totalorder %s21, 0
      %p95 = por %p93, %p94
      %s96 = ssub.s32 %s15, %s22
      %p97 = scmp.eq.s32.totalorder %s96, 0
      %s99 = sadd.s32 %s98, 1
      %s100 = scalar_select %p97, %s98, %s99
      %p103 = pneg %p97
      %p104 = scmp.eq.s32.totalorder %s15, 1
      %p105 = por %p103, %p104
      %p106 = scmp.ne.s32.totalorder %s98, %s101
      %p107 = scmp.eq.s32.totalorder %s15, 0
      %p108 = por %p106, %p107
      %p109 = scmp.ne.s32.totalorder %s98, %s101
      %p110 = scmp.eq.s32.totalorder %s20, 1
      %p111 = por %p109, %p110
      %p112 = scmp.ne.s32.totalorder %s101, %s102
      %p113 = scmp.eq.s32.totalorder %s20, 0
      %p114 = por %p112, %p113
      %p115 = scmp.ne.s32.totalorder %s101, %s102
      %p116 = scmp.eq.s32.totalorder %s21, 1
      %p117 = por %p115, %p116
      %p119 = scmp.ne.s32.totalorder %s102, %s118
      %p120 = scmp.eq.s32.totalorder %s21, 0
      %p121 = por %p119, %p120
      %p122 = scmp.le.s32.totalorder 1, %s15
      %p123 = scmp.lt.s32.totalorder %s15, 3
      %p124 = pnand %p122, %p123
      %p125 = pneg %p124
      // Predicated region
      $region9: #{han2_forward.2} parent=5 // pred_check
        _
      $region10: #{han2_forward.2} parent=5 // pred_check_branch
        %127 = sbr.rel (%p124) target = $region12
      $region11: #{han2_forward.2} parent=5 // pred_region
        %s128 = ssub.s32 %s15, 1
        // Predicated region
        $region13: #{han2_forward.2} parent=11 // pred_check
          %p129 = pneg %p36
        $region14: #{han2_forward.2} parent=11 // pred_check_branch
          %131 = sbr.rel (%p129) target = $region16
        $region15: #{han2_forward.2} parent=11 // pred_region
          _
        $region16: #{han2_forward.2} parent=11 // pred_fallthru
          _
      $region12: #{han2_forward.2} parent=5 // pred_fallthru
        _
      %p132 = scmp.lt.s32.totalorder %s15, 2
      // Predicated region
      $region17: #{han2_forward.2} parent=5 // pred_check
        %p133 = pneg %p132
      $region18: #{han2_forward.2} parent=5 // pred_check_branch
        %135 = sbr.rel (%p133) target = $region20
      $region19: #{han2_forward.2} parent=5 // pred_region
        // Predicated region
        $region21: #{han2_forward.2} parent=19 // pred_check
          %p136 = pneg %p56
        $region22: #{han2_forward.2} parent=19 // pred_check_branch
          %138 = sbr.rel (%p136) target = $region24
        $region23: #{han2_forward.2} parent=19 // pred_region
          %s139 = sand.u32 %s46, 1
          %s140 = scalar_lea.sflag [#allocation3], %s139
          %s141 = sand.u32 %s46, 1
          %s142 = smul.addr %s141, 500
          %s143 = scalar_lea.vmem [#allocation2], %s142
          %s145 = ssub.s32 8000, 8000
          %146 = vsyncadd %s140, %s145
          %s147 = smul.addr %s15, 125
          %s148 = smul.addr %s147, 64
          %s149 = scalar_lea.hbm %s1, %s148
          %s150 = sshll.u32 %s143, 4
          %s151 = int_to_ptr.vmem [resolvable:$true] %s150
          %156 = dma.hbm_to_vmem [thread:$0]  %s149, 8000, %s151, %s140, 320, 320, 20
        $region24: #{han2_forward.2} parent=19 // pred_fallthru
          _
        // Predicated region
        $region25: #{han2_forward.2} parent=19 // pred_check
          %p157 = pneg %p82
        $region26: #{han2_forward.2} parent=19 // pred_check_branch
          %159 = sbr.rel (%p157) target = $region28
        $region27: #{han2_forward.2} parent=19 // pred_region
          %s160 = sand.u32 %s72, 1
          %s161 = scalar_lea.sflag [#allocation5], %s160
          %s162 = sand.u32 %s72, 1
          %s163 = smul.addr %s162, 5
          %s164 = scalar_lea.vmem [#allocation4], %s163
          %s166 = ssub.s32 80, 80
          %167 = vsyncadd %s161, %s166
          %s168 = smul.addr %s15, 5
          %s169 = smul.addr %s168, 16
          %s170 = scalar_lea.hbm %s2, %s169
          %s172 = sshll.u32 %s164, 4
          %s173 = int_to_ptr.vmem [resolvable:$true] %s172
          %175 = dma.hbm_to_vmem [thread:$0]  %s170, 80, %s173, %s161
        $region28: #{han2_forward.2} parent=19 // pred_fallthru
          _
      $region20: #{han2_forward.2} parent=5 // pred_fallthru
        _
      %p176 = scmp.le.s32.totalorder 1, %s15
      %p177 = scmp.lt.s32.totalorder %s15, 3
      %p178 = pnand %p176, %p177
      %p179 = pneg %p178
      // Predicated region
      $region29: #{han2_forward.2} parent=5 // pred_check
        _
      $region30: #{han2_forward.2} parent=5 // pred_check_branch
        %181 = sbr.rel (%p178) target = $region32
      $region31: #{han2_forward.2} parent=5 // pred_region
        %s182 = ssub.s32 %s15, 1
        %s183 = sand.u32 %s49, 1
        %s184 = scalar_lea.sflag [#allocation3], %s183
        %s185 = sand.u32 %s49, 1
        %s186 = smul.addr %s185, 500
        %s187 = scalar_lea.vmem [#allocation2], %s186
        // Predicated region
        $region33: #{han2_forward.2} parent=31 // pred_check
          %p188 = pneg %p62
        $region34: #{han2_forward.2} parent=31 // pred_check_branch
          %190 = sbr.rel (%p188) target = $region36
        $region35: #{han2_forward.2} parent=31 // pred_region
          %191 = dma.done %s184, 8000
        $region36: #{han2_forward.2} parent=31 // pred_fallthru
          _
        %s192 = sand.u32 %s75, 1
        %s193 = scalar_lea.sflag [#allocation5], %s192
        %s194 = sand.u32 %s75, 1
        %s195 = smul.addr %s194, 5
        %s196 = scalar_lea.vmem [#allocation4], %s195
        // Predicated region
        $region37: #{han2_forward.2} parent=31 // pred_check
          %p197 = pneg %p88
        $region38: #{han2_forward.2} parent=31 // pred_check_branch
          %199 = sbr.rel (%p197) target = $region40
        $region39: #{han2_forward.2} parent=31 // pred_region
          %200 = dma.done %s193, 80
        $region40: #{han2_forward.2} parent=31 // pred_fallthru
          _
        %p201 = pneg %p36
        %p202 = pneg %p33
        %s203 = sand.u32 %s49, 1
        %s204 = scalar_lea.sflag [#allocation3], %s203
        %s205 = sand.u32 %s49, 1
        %s206 = smul.addr %s205, 500
        %s207 = scalar_lea.vmem [#allocation2], %s206
        %p208 = pneg %p62
        %p209 = pneg %p59
        %s210 = sand.u32 %s75, 1
        %s211 = scalar_lea.sflag [#allocation5], %s210
        %s212 = sand.u32 %s75, 1
        %s213 = smul.addr %s212, 5
        %s214 = scalar_lea.vmem [#allocation4], %s213
        %p215 = pneg %p88
        %p216 = pneg %p85
        %p217 = pneg %p114
        %p218 = pneg %p111
        %p219 = scmp.lt.s32.totalorder %s20, 1
        %s220 = scalar_select %p219, %s20, 1
        %s221 = smul.addr %s220, 10
        %s222 = smul.addr %s221, 8
        %s223 = scalar_lea.vmem %s3, %s222
        %p224 = scmp.lt.s32.totalorder %s20, 1
        %s225 = scalar_select %p224, %s20, 1
        %s226 = smul.addr %s225, 10
        %s227 = smul.addr %s226, 8
        %s228 = scalar_lea.vmem %s3, %s227
        %v230 = vld [vmem:[%s0] sm:$0xff]
        %v231 = vld [vmem:[%s0 + $0x8] sm:$0xff]
        %v232 = vld [vmem:[%s187] sm:$0xff]
        %v233 = vld [vmem:[%s187 + $0x8] sm:$0xff]
        %v234 = vld [vmem:[%s187 + $0x10] sm:$0xf]
        %v235 = vld [vmem:[%s187 + $0x14] sm:$0xff]
        %v236 = vld [vmem:[%s187 + $0x1c] sm:$0xff]
        %v237 = vld [vmem:[%s187 + $0x24] sm:$0xf]
        %v238 = vld [vmem:[%s187 + $0x28] sm:$0xff]
        %v239 = vld [vmem:[%s187 + $0x30] sm:$0xff]
        %v240 = vld [vmem:[%s187 + $0x38] sm:$0xf]
        %v241 = vld [vmem:[%s187 + $0x3c] sm:$0xff]
        %v242 = vld [vmem:[%s187 + $0x44] sm:$0xff]
        %v243 = vld [vmem:[%s187 + $0x4c] sm:$0xf]
        %v244 = vld [vmem:[%s187 + $0x50] sm:$0xff]
        %v245 = vld [vmem:[%s187 + $0x58] sm:$0xff]
        %v246 = vld [vmem:[%s187 + $0x60] sm:$0xf]
        %v247 = vld [vmem:[%s187 + $0x64] sm:$0xff]
        %v248 = vld [vmem:[%s187 + $0x6c] sm:$0xff]
        %v249 = vld [vmem:[%s187 + $0x74] sm:$0xf]
        %v250 = vld [vmem:[%s187 + $0x78] sm:$0xff]
        %v251 = vld [vmem:[%s187 + $0x80] sm:$0xff]
        %v252 = vld [vmem:[%s187 + $0x88] sm:$0xf]
        %v253 = vld [vmem:[%s187 + $0x8c] sm:$0xff]
        %v254 = vld [vmem:[%s187 + $0x94] sm:$0xff]
        %v255 = vld [vmem:[%s187 + $0x9c] sm:$0xf]
        %v256 = vld [vmem:[%s187 + $0xa0] sm:$0xff]
        %v257 = vld [vmem:[%s187 + $0xa8] sm:$0xff]
        %v258 = vld [vmem:[%s187 + $0xb0] sm:$0xf]
        %v259 = vld [vmem:[%s187 + $0xb4] sm:$0xff]
        %v260 = vld [vmem:[%s187 + $0xbc] sm:$0xff]
        %v261 = vld [vmem:[%s187 + $0xc4] sm:$0xf]
        %v262 = vld [vmem:[%s187 + $0xc8] sm:$0xff]
        %v263 = vld [vmem:[%s187 + $0xd0] sm:$0xff]
        %v264 = vld [vmem:[%s187 + $0xd8] sm:$0xf]
        %v265 = vld [vmem:[%s187 + $0xdc] sm:$0xff]
        %v266 = vld [vmem:[%s187 + $0xe4] sm:$0xff]
        %v267 = vld [vmem:[%s187 + $0xec] sm:$0xf]
        %v268 = vld [vmem:[%s187 + $0xf0] sm:$0xff]
        %v269 = vld [vmem:[%s187 + $0xf8] sm:$0xff]
        %v270 = vld [vmem:[%s187 + $0x100] sm:$0xf]
        %v271 = vld [vmem:[%s187 + $0x104] sm:$0xff]
        %v272 = vld [vmem:[%s187 + $0x10c] sm:$0xff]
        %v273 = vld [vmem:[%s187 + $0x114] sm:$0xf]
        %v274 = vld [vmem:[%s187 + $0x118] sm:$0xff]
        %v275 = vld [vmem:[%s187 + $0x120] sm:$0xff]
        %v276 = vld [vmem:[%s187 + $0x128] sm:$0xf]
        %v277 = vld [vmem:[%s187 + $0x12c] sm:$0xff]
        %v278 = vld [vmem:[%s187 + $0x134] sm:$0xff]
        %v279 = vld [vmem:[%s187 + $0x13c] sm:$0xf]
        %v280 = vld [vmem:[%s187 + $0x140] sm:$0xff]
        %v281 = vld [vmem:[%s187 + $0x148] sm:$0xff]
        %v282 = vld [vmem:[%s187 + $0x150] sm:$0xf]
        %v283 = vld [vmem:[%s187 + $0x154] sm:$0xff]
        %v284 = vld [vmem:[%s187 + $0x15c] sm:$0xff]
        %v285 = vld [vmem:[%s187 + $0x164] sm:$0xf]
        %v286 = vld [vmem:[%s187 + $0x168] sm:$0xff]
        %v287 = vld [vmem:[%s187 + $0x170] sm:$0xff]
        %v288 = vld [vmem:[%s187 + $0x178] sm:$0xf]
        %v289 = vld [vmem:[%s187 + $0x17c] sm:$0xff]
        %v290 = vld [vmem:[%s187 + $0x184] sm:$0xff]
        %v291 = vld [vmem:[%s187 + $0x18c] sm:$0xf]
        %v292 = vld [vmem:[%s187 + $0x190] sm:$0xff]
        %v293 = vld [vmem:[%s187 + $0x198] sm:$0xff]
        %v294 = vld [vmem:[%s187 + $0x1a0] sm:$0xf]
        %v295 = vld [vmem:[%s187 + $0x1a4] sm:$0xff]
        %v296 = vld [vmem:[%s187 + $0x1ac] sm:$0xff]
        %v297 = vld [vmem:[%s187 + $0x1b4] sm:$0xf]
        %v298 = vld [vmem:[%s187 + $0x1b8] sm:$0xff]
        %v299 = vld [vmem:[%s187 + $0x1c0] sm:$0xff]
        %v300 = vld [vmem:[%s187 + $0x1c8] sm:$0xf]
        %v301 = vld [vmem:[%s187 + $0x1cc] sm:$0xff]
        %v302 = vld [vmem:[%s187 + $0x1d4] sm:$0xff]
        %v303 = vld [vmem:[%s187 + $0x1dc] sm:$0xf]
        %v304 = vld [vmem:[%s187 + $0x1e0] sm:$0xff]
        %v305 = vld [vmem:[%s187 + $0x1e8] sm:$0xff]
        %v306 = vld [vmem:[%s187 + $0x1f0] sm:$0xf]
        %v307 = vld [vmem:[%s196] sm:$0x1f]
        %v309 = vlaneseq
        %v310 = vshrl.u32 %v309, 7
        %v311 = vsub.s32 0, %v310
        %v312 = vrot.slane %v307, %v311
        %v313 = vlaneseq
        %v314 = vshrl.u32 %v313, 7
        %v315 = vsub.s32 1, %v314
        %v316 = vrot.slane %v307, %v315
        %v317 = vlaneseq
        %v318 = vshrl.u32 %v317, 7
        %v319 = vsub.s32 2, %v318
        %v320 = vrot.slane %v307, %v319
        %v321 = vlaneseq
        %v322 = vshrl.u32 %v321, 7
        %v323 = vsub.s32 3, %v322
        %v324 = vrot.slane %v307, %v323
        %v325 = vlaneseq
        %v326 = vshrl.u32 %v325, 7
        %v327 = vsub.s32 4, %v326
        %v328 = vrot.slane %v307, %v327
        %v336 = vunpack.c.l.b16 %v230
        %v337 = vunpack.c.h.b16 %v230
        %v338 = vunpack.c.l.b16 %v231
        %v339 = vunpack.c.h.b16 %v231
        %v340 = vpack.c.b16 %v338, %v336
        %v341 = vpack.c.b16 %v339, %v337
        %v418 = vunpack.c.l.b16 %v232
        %v419 = vunpack.c.h.b16 %v232
        %v420 = vunpack.c.l.b16 %v233
        %v421 = vunpack.c.h.b16 %v233
        %v422 = vunpack.c.l.b16 %v234
        %v423 = vunpack.c.l.b16 %v235
        %v424 = vunpack.c.h.b16 %v235
        %v425 = vunpack.c.l.b16 %v236
        %v426 = vunpack.c.h.b16 %v236
        %v427 = vunpack.c.l.b16 %v237
        %v428 = vunpack.c.l.b16 %v238
        %v429 = vunpack.c.h.b16 %v238
        %v430 = vunpack.c.l.b16 %v239
        %v431 = vunpack.c.h.b16 %v239
        %v432 = vunpack.c.l.b16 %v240
        %v433 = vunpack.c.l.b16 %v241
        %v434 = vunpack.c.h.b16 %v241
        %v435 = vunpack.c.l.b16 %v242
        %v436 = vunpack.c.h.b16 %v242
        %v437 = vunpack.c.l.b16 %v243
        %v438 = vunpack.c.l.b16 %v244
        %v439 = vunpack.c.h.b16 %v244
        %v440 = vunpack.c.l.b16 %v245
        %v441 = vunpack.c.h.b16 %v245
        %v442 = vunpack.c.l.b16 %v246
        %v443 = vunpack.c.l.b16 %v247
        %v444 = vunpack.c.h.b16 %v247
        %v445 = vunpack.c.l.b16 %v248
        %v446 = vunpack.c.h.b16 %v248
        %v447 = vunpack.c.l.b16 %v249
        %v448 = vunpack.c.l.b16 %v250
        %v449 = vunpack.c.h.b16 %v250
        %v450 = vunpack.c.l.b16 %v251
        %v451 = vunpack.c.h.b16 %v251
        %v452 = vunpack.c.l.b16 %v252
        %v453 = vunpack.c.l.b16 %v253
        %v454 = vunpack.c.h.b16 %v253
        %v455 = vunpack.c.l.b16 %v254
        %v456 = vunpack.c.h.b16 %v254
        %v457 = vunpack.c.l.b16 %v255
        %v458 = vunpack.c.l.b16 %v256
        %v459 = vunpack.c.h.b16 %v256
        %v460 = vunpack.c.l.b16 %v257
        %v461 = vunpack.c.h.b16 %v257
        %v462 = vunpack.c.l.b16 %v258
        %v463 = vunpack.c.l.b16 %v259
        %v464 = vunpack.c.h.b16 %v259
        %v465 = vunpack.c.l.b16 %v260
        %v466 = vunpack.c.h.b16 %v260
        %v467 = vunpack.c.l.b16 %v261
        %v468 = vunpack.c.l.b16 %v262
        %v469 = vunpack.c.h.b16 %v262
        %v470 = vunpack.c.l.b16 %v263
        %v471 = vunpack.c.h.b16 %v263
        %v472 = vunpack.c.l.b16 %v264
        %v473 = vunpack.c.l.b16 %v265
        %v474 = vunpack.c.h.b16 %v265
        %v475 = vunpack.c.l.b16 %v266
        %v476 = vunpack.c.h.b16 %v266
        %v477 = vunpack.c.l.b16 %v267
        %v478 = vunpack.c.l.b16 %v268
        %v479 = vunpack.c.h.b16 %v268
        %v480 = vunpack.c.l.b16 %v269
        %v481 = vunpack.c.h.b16 %v269
        %v482 = vunpack.c.l.b16 %v270
        %v483 = vunpack.c.l.b16 %v271
        %v484 = vunpack.c.h.b16 %v271
        %v485 = vunpack.c.l.b16 %v272
        %v486 = vunpack.c.h.b16 %v272
        %v487 = vunpack.c.l.b16 %v273
        %v488 = vunpack.c.l.b16 %v274
        %v489 = vunpack.c.h.b16 %v274
        %v490 = vunpack.c.l.b16 %v275
        %v491 = vunpack.c.h.b16 %v275
        %v492 = vunpack.c.l.b16 %v276
        %v493 = vunpack.c.l.b16 %v277
        %v494 = vunpack.c.h.b16 %v277
        %v495 = vunpack.c.l.b16 %v278
        %v496 = vunpack.c.h.b16 %v278
        %v497 = vunpack.c.l.b16 %v279
        %v498 = vunpack.c.l.b16 %v280
        %v499 = vunpack.c.h.b16 %v280
        %v500 = vunpack.c.l.b16 %v281
        %v501 = vunpack.c.h.b16 %v281
        %v502 = vunpack.c.l.b16 %v282
        %v503 = vunpack.c.l.b16 %v283
        %v504 = vunpack.c.h.b16 %v283
        %v505 = vunpack.c.l.b16 %v284
        %v506 = vunpack.c.h.b16 %v284
        %v507 = vunpack.c.l.b16 %v285
        %v508 = vunpack.c.l.b16 %v286
        %v509 = vunpack.c.h.b16 %v286
        %v510 = vunpack.c.l.b16 %v287
        %v511 = vunpack.c.h.b16 %v287
        %v512 = vunpack.c.l.b16 %v288
        %v513 = vunpack.c.l.b16 %v289
        %v514 = vunpack.c.h.b16 %v289
        %v515 = vunpack.c.l.b16 %v290
        %v516 = vunpack.c.h.b16 %v290
        %v517 = vunpack.c.l.b16 %v291
        %v518 = vunpack.c.l.b16 %v292
        %v519 = vunpack.c.h.b16 %v292
        %v520 = vunpack.c.l.b16 %v293
        %v521 = vunpack.c.h.b16 %v293
        %v522 = vunpack.c.l.b16 %v294
        %v523 = vunpack.c.l.b16 %v295
        %v524 = vunpack.c.h.b16 %v295
        %v525 = vunpack.c.l.b16 %v296
        %v526 = vunpack.c.h.b16 %v296
        %v527 = vunpack.c.l.b16 %v297
        %v528 = vunpack.c.l.b16 %v298
        %v529 = vunpack.c.h.b16 %v298
        %v530 = vunpack.c.l.b16 %v299
        %v531 = vunpack.c.h.b16 %v299
        %v532 = vunpack.c.l.b16 %v300
        %v533 = vunpack.c.l.b16 %v301
        %v534 = vunpack.c.h.b16 %v301
        %v535 = vunpack.c.l.b16 %v302
        %v536 = vunpack.c.h.b16 %v302
        %v537 = vunpack.c.l.b16 %v303
        %v538 = vunpack.c.l.b16 %v304
        %v539 = vunpack.c.h.b16 %v304
        %v540 = vunpack.c.l.b16 %v305
        %v541 = vunpack.c.h.b16 %v305
        %v542 = vunpack.c.l.b16 %v306
        %v543 = vpack.c.b16 %v423, %v418
        %v544 = vpack.c.b16 %v424, %v419
        %v545 = vpack.c.b16 %v425, %v420
        %v546 = vpack.c.b16 %v426, %v421
        %v547 = vpack.c.b16 %v427, %v422
        %v548 = vpack.c.b16 %v433, %v428
        %v549 = vpack.c.b16 %v434, %v429
        %v550 = vpack.c.b16 %v435, %v430
        %v551 = vpack.c.b16 %v436, %v431
        %v552 = vpack.c.b16 %v437, %v432
        %v553 = vpack.c.b16 %v443, %v438
        %v554 = vpack.c.b16 %v444, %v439
        %v555 = vpack.c.b16 %v445, %v440
        %v556 = vpack.c.b16 %v446, %v441
        %v557 = vpack.c.b16 %v447, %v442
        %v558 = vpack.c.b16 %v453, %v448
        %v559 = vpack.c.b16 %v454, %v449
        %v560 = vpack.c.b16 %v455, %v450
        %v561 = vpack.c.b16 %v456, %v451
        %v562 = vpack.c.b16 %v457, %v452
        %v563 = vpack.c.b16 %v463, %v458
        %v564 = vpack.c.b16 %v464, %v459
        %v565 = vpack.c.b16 %v465, %v460
        %v566 = vpack.c.b16 %v466, %v461
        %v567 = vpack.c.b16 %v467, %v462
        %v568 = vpack.c.b16 %v473, %v468
        %v569 = vpack.c.b16 %v474, %v469
        %v570 = vpack.c.b16 %v475, %v470
        %v571 = vpack.c.b16 %v476, %v471
        %v572 = vpack.c.b16 %v477, %v472
        %v573 = vpack.c.b16 %v483, %v478
        %v574 = vpack.c.b16 %v484, %v479
        %v575 = vpack.c.b16 %v485, %v480
        %v576 = vpack.c.b16 %v486, %v481
        %v577 = vpack.c.b16 %v487, %v482
        %v578 = vpack.c.b16 %v493, %v488
        %v579 = vpack.c.b16 %v494, %v489
        %v580 = vpack.c.b16 %v495, %v490
        %v581 = vpack.c.b16 %v496, %v491
        %v582 = vpack.c.b16 %v497, %v492
        %v583 = vpack.c.b16 %v503, %v498
        %v584 = vpack.c.b16 %v504, %v499
        %v585 = vpack.c.b16 %v505, %v500
        %v586 = vpack.c.b16 %v506, %v501
        %v587 = vpack.c.b16 %v507, %v502
        %v588 = vpack.c.b16 %v513, %v508
        %v589 = vpack.c.b16 %v514, %v509
        %v590 = vpack.c.b16 %v515, %v510
        %v591 = vpack.c.b16 %v516, %v511
        %v592 = vpack.c.b16 %v517, %v512
        %v593 = vpack.c.b16 %v523, %v518
        %v594 = vpack.c.b16 %v524, %v519
        %v595 = vpack.c.b16 %v525, %v520
        %v596 = vpack.c.b16 %v526, %v521
        %v597 = vpack.c.b16 %v527, %v522
        %v598 = vpack.c.b16 %v533, %v528
        %v599 = vpack.c.b16 %v534, %v529
        %v600 = vpack.c.b16 %v535, %v530
        %v601 = vpack.c.b16 %v536, %v531
        %v602 = vpack.c.b16 %v537, %v532
        %v603 = vpack.c.b16 %v538, %v538
        %v604 = vpack.c.b16 %v539, %v539
        %v605 = vpack.c.b16 %v540, %v540
        %v606 = vpack.c.b16 %v541, %v541
        %v607 = vpack.c.b16 %v542, %v542
        %vm668 = vcmask 588800
        %v670 = vsel %vm668, %v341, 0
        %vm672 = vcmask 1043456
        %v674 = vsel %vm672, %v603, 0
        %v677 = vsel %vm672, %v604, 0
        %v680 = vsel %vm672, %v605, 0
        %v683 = vsel %vm672, %v606, 0
        %v686 = vsel %vm672, %v607, 0
        %688 = vmatprep.subr.bf16.mxu0 %v544
        %689 = vmatpush1.bf16.msra.mxu0 %v543
        %690 = vmatprep.subr.bf16.mxu0 %v549
        %691 = vmatpush1.bf16.msra.mxu0 %v548
        %692 = vmatprep.subr.bf16.mxu0 %v554
        %693 = vmatpush1.bf16.msra.mxu0 %v553
        %694 = vmatprep.subr.bf16.mxu0 %v559
        %695 = vmatpush1.bf16.msra.mxu0 %v558
        %696 = vmatprep.subr.bf16.mxu0 %v564
        %697 = vmatpush1.bf16.msra.mxu0 %v563
        %698 = vmatprep.subr.bf16.mxu0 %v569
        %699 = vmatpush1.bf16.msra.mxu0 %v568
        %700 = vmatprep.subr.bf16.mxu0 %v574
        %701 = vmatpush1.bf16.msra.mxu0 %v573
        %702 = vmatprep.subr.bf16.mxu0 %v579
        %703 = vmatpush1.bf16.msra.mxu0 %v578
        %704 = vmatprep.subr.bf16.mxu0 %v584
        %705 = vmatpush1.bf16.msra.mxu0 %v583
        %706 = vmatprep.subr.bf16.mxu0 %v589
        %707 = vmatpush1.bf16.msra.mxu0 %v588
        %708 = vmatprep.subr.bf16.mxu0 %v594
        %709 = vmatpush1.bf16.msra.mxu0 %v593
        %710 = vmatprep.subr.bf16.mxu0 %v599
        %711 = vmatpush1.bf16.msra.mxu0 %v598
        %712 = vmatprep.subr.bf16.mxu0 %v677
        %713 = vmatpush1.bf16.msra.mxu0 %v674
        %714 = vmatprep.subr.bf16.mxu0 0
        %715 = vmatpush1.bf16.msra.mxu0 0
        %716 = vmatprep.subr.bf16.mxu0 0
        %717 = vmatpush1.bf16.msra.mxu0 0
        %718 = vmatprep.subr.bf16.mxu0 0
        %719 = vmatpush1.bf16.msra.mxu0 0
        %720 = vmatprep.mubr.bf16.mxu0 %v670
        %721 = vmatmul.mubr.bf16.gmra.mrb[0].mxu0 %v340
        %v722 = vpop.f32.mrb[0].mxu0
        %v723 = vadd.f32 %v312, %v722
        %v724 = vpop.f32.mrb[0].mxu0
        %v725 = vadd.f32 %v316, %v724
        %v726 = vpop.f32.mrb[0].mxu0
        %v727 = vadd.f32 %v312, %v726
        %v728 = vpop.f32.mrb[0].mxu0
        %v729 = vadd.f32 %v316, %v728
        %730 = vdwg.mxu0
        %731 = vmatprep.subr.bf16.mxu0 %v546
        %732 = vmatpush1.bf16.msra.mxu0 %v545
        %733 = vmatprep.subr.bf16.mxu0 %v551
        %734 = vmatpush1.bf16.msra.mxu0 %v550
        %735 = vmatprep.subr.bf16.mxu0 %v556
        %736 = vmatpush1.bf16.msra.mxu0 %v555
        %737 = vmatprep.subr.bf16.mxu0 %v561
        %738 = vmatpush1.bf16.msra.mxu0 %v560
        %739 = vmatprep.subr.bf16.mxu0 %v566
        %740 = vmatpush1.bf16.msra.mxu0 %v565
        %741 = vmatprep.subr.bf16.mxu0 %v571
        %742 = vmatpush1.bf16.msra.mxu0 %v570
        %743 = vmatprep.subr.bf16.mxu0 %v576
        %744 = vmatpush1.bf16.msra.mxu0 %v575
        %745 = vmatprep.subr.bf16.mxu0 %v581
        %746 = vmatpush1.bf16.msra.mxu0 %v580
        %747 = vmatprep.subr.bf16.mxu0 %v586
        %748 = vmatpush1.bf16.msra.mxu0 %v585
        %749 = vmatprep.subr.bf16.mxu0 %v591
        %750 = vmatpush1.bf16.msra.mxu0 %v590
        %751 = vmatprep.subr.bf16.mxu0 %v596
        %752 = vmatpush1.bf16.msra.mxu0 %v595
        %753 = vmatprep.subr.bf16.mxu0 %v601
        %754 = vmatpush1.bf16.msra.mxu0 %v600
        %755 = vmatprep.subr.bf16.mxu0 %v683
        %756 = vmatpush1.bf16.msra.mxu0 %v680
        %757 = vmatprep.subr.bf16.mxu0 0
        %758 = vmatpush1.bf16.msra.mxu0 0
        %759 = vmatprep.subr.bf16.mxu0 0
        %760 = vmatpush1.bf16.msra.mxu0 0
        %761 = vmatprep.subr.bf16.mxu0 0
        %762 = vmatpush1.bf16.msra.mxu0 0
        %763 = vmatprep.mubr.bf16.mxu0 %v670
        %764 = vmatmul.mubr.bf16.gmra.mrb[0].mxu0 %v340
        %v765 = vpop.f32.mrb[0].mxu0
        %v766 = vadd.f32 %v320, %v765
        %v767 = vpop.f32.mrb[0].mxu0
        %v768 = vadd.f32 %v324, %v767
        %v769 = vpop.f32.mrb[0].mxu0
        %v770 = vadd.f32 %v320, %v769
        %v771 = vpop.f32.mrb[0].mxu0
        %v772 = vadd.f32 %v324, %v771
        %773 = vdwg.mxu0
        %774 = vmatprep.subr.bf16.mxu0 0
        %775 = vmatpush1.bf16.msra.mxu0 %v547
        %776 = vmatprep.subr.bf16.mxu0 0
        %777 = vmatpush1.bf16.msra.mxu0 %v552
        %778 = vmatprep.subr.bf16.mxu0 0
        %779 = vmatpush1.bf16.msra.mxu0 %v557
        %780 = vmatprep.subr.bf16.mxu0 0
        %781 = vmatpush1.bf16.msra.mxu0 %v562
        %782 = vmatprep.subr.bf16.mxu0 0
        %783 = vmatpush1.bf16.msra.mxu0 %v567
        %784 = vmatprep.subr.bf16.mxu0 0
        %785 = vmatpush1.bf16.msra.mxu0 %v572
        %786 = vmatprep.subr.bf16.mxu0 0
        %787 = vmatpush1.bf16.msra.mxu0 %v577
        %788 = vmatprep.subr.bf16.mxu0 0
        %789 = vmatpush1.bf16.msra.mxu0 %v582
        %790 = vmatprep.subr.bf16.mxu0 0
        %791 = vmatpush1.bf16.msra.mxu0 %v587
        %792 = vmatprep.subr.bf16.mxu0 0
        %793 = vmatpush1.bf16.msra.mxu0 %v592
        %794 = vmatprep.subr.bf16.mxu0 0
        %795 = vmatpush1.bf16.msra.mxu0 %v597
        %796 = vmatprep.subr.bf16.mxu0 0
        %797 = vmatpush1.bf16.msra.mxu0 %v602
        %798 = vmatprep.subr.bf16.mxu0 0
        %799 = vmatpush1.bf16.msra.mxu0 %v686
        %800 = vmatprep.subr.bf16.mxu0 0
        %801 = vmatpush1.bf16.msra.mxu0 0
        %802 = vmatprep.subr.bf16.mxu0 0
        %803 = vmatpush1.bf16.msra.mxu0 0
        %804 = vmatprep.subr.bf16.mxu0 0
        %805 = vmatpush1.bf16.msra.mxu0 0
        %806 = vmatprep.mubr.bf16.mxu0 %v670
        %807 = vmatmul.mubr.bf16.gmra.mrb[0].mxu0 %v340
        %v808 = vpop.f32.mrb[0].mxu0
        %v809 = vadd.f32 %v328, %v808
        %v810 = vpop.f32.mrb[0].mxu0
        %v811 = vpop.f32.mrb[0].mxu0
        %v812 = vadd.f32 %v328, %v811
        %v813 = vpop.f32.mrb[0].mxu0
        %814 = vdwg.mxu0
        %815 = vst [vmem:[%s228] sm:$0xff] %v723
        %816 = vst [vmem:[%s228 + $0x8] sm:$0xff] %v725
        %817 = vst [vmem:[%s228 + $0x10] sm:$0xff] %v766
        %818 = vst [vmem:[%s228 + $0x18] sm:$0xff] %v768
        %vm819 = vcmask 719872
        %820 = vst.msk [vmem:[%s228 + $0x20] sm:$0xff] %vm819, %v809
        %821 = vst [vmem:[%s228 + $0x28] sm:$0xff] %v727
        %822 = vst [vmem:[%s228 + $0x30] sm:$0xff] %v729
        %823 = vst [vmem:[%s228 + $0x38] sm:$0xff] %v770
        %824 = vst [vmem:[%s228 + $0x40] sm:$0xff] %v772
        %825 = vst.msk [vmem:[%s228 + $0x48] sm:$0xff] %vm819, %v812
        %p826 = scmp.lt.s32.totalorder %s20, 1
        %s827 = scalar_select %p826, %s20, 1
        %s828 = smul.addr %s827, 10
        %s829 = smul.addr %s828, 8
        %s830 = scalar_lea.vmem %s3, %s829
        // Predicated region
        $region41: #{han2_forward.2} parent=31 // pred_check
          %p831 = pneg %p111
        $region42: #{han2_forward.2} parent=31 // pred_check_branch
          %833 = sbr.rel (%p831) target = $region44
        $region43: #{han2_forward.2} parent=31 // pred_region
          _
        $region44: #{han2_forward.2} parent=31 // pred_fallthru
          _
      $region32: #{han2_forward.2} parent=5 // pred_fallthru
        _
      %p834 = scmp.le.s32.totalorder 2, %s15
      // Predicated region
      $region45: #{han2_forward.2} parent=5 // pred_check
        %p835 = pneg %p834
      $region46: #{han2_forward.2} parent=5 // pred_check_branch
        %837 = sbr.rel (%p835) target = $region48
      $region47: #{han2_forward.2} parent=5 // pred_region
        %s838 = ssub.s32 %s15, 2
        // Predicated region
        $region49: #{han2_forward.2} parent=47 // pred_check
          %p839 = pneg %p117
        $region50: #{han2_forward.2} parent=47 // pred_check_branch
          %841 = sbr.rel (%p839) target = $region52
        $region51: #{han2_forward.2} parent=47 // pred_region
          %p842 = scmp.lt.s32.totalorder %s21, 1
          %s843 = scalar_select %p842, %s21, 1
          %s844 = smul.addr %s843, 10
          %s845 = smul.addr %s844, 8
          %s846 = scalar_lea.vmem %s3, %s845
        $region52: #{han2_forward.2} parent=47 // pred_fallthru
          _
      $region48: #{han2_forward.2} parent=5 // pred_fallthru
        _
    $region6: #{han2_forward.2} parent=1 // loop_footer
      %s19 = sadd.s32 1, %s15
    $region7: #{han2_forward.2} parent=1 // loop_footer_branch
      %14 = sbr.rel target = $region3
    $region8: #{han2_forward.2} parent=1 // loop_exit
      _
    %847 = vsyncpa [#allocation3], 1
    %s848 = scalar_lea.sflag [#allocation3], 1
    %849 = vsyncpa %s848, 1
    %850 = vsyncpa [#allocation5], 1
    %s851 = scalar_lea.sflag [#allocation5], 1
    %852 = vsyncpa %s851, 1

// kernel: han2_forward.3
$region0: #{han2_forward.3}
  #allocation0 [shape = 'u32[]', space=smem, size = 0x4, offset = 0x4, fixed_abs, tag = 'smem constant byte address 0x4 - core index']
  #allocation1 [shape = 'u32[144,128]{1,0:T(1,128)}', space=vmem, size = 0x12000, scoped, tag = 'internal scratch']
  #allocation2 [shape = 'f32[2,200]{1,0:T(2,128)}', space=vmem, size = 0x800, scoped, tag = 'scratch operand']
  %s0 = inlined_call_operand.vmem [shape: f32[2,8,2,600], index: 0, kind: input, shape index: {}]
  %s1 = inlined_call_operand.vmem [shape: bf16[2,200,600], index: 1, kind: input, shape index: {}]
  %s2 = inlined_call_operand.vmem [shape: f32[2,1,200], index: 2, kind: input, shape index: {}]
  %s3 = inlined_call_operand.vmem [shape: f32[2,2,200], index: 3, kind: output, shape index: {}]
  %s4 = sld [smem:[#allocation0]]
  $region53: #{han2_forward.3} parent=0
    _
  %s6 = ssub.s32 1, %s4
  %s7 = scalar_select 0, %s6, %s4
  loop: start=0, step=1, limit=4
  $region2: #{han2_forward.3} parent=0 // loop_pre_header
    _
  $region3: #{han2_forward.3} parent=0 // loop_header
    %s9 = sphi 0, %s13
    %p10 = scmp.ge.s32.totalorder %s9, 4
    %s16 = sphi 0, %s28
    %s17 = sphi 0, %s24
    %s18 = sphi 0, %s16
    %s19 = sphi 0, %s17
    %s20 = sphi 0, %s18
    %s21 = sphi 0, %s19
    %s39 = sphi 0, %s41
    %s42 = sphi 0, %s39
    %s43 = sphi 0, %s42
    %s59 = sphi 0, %s43
    %s65 = sphi 0, %s67
    %s68 = sphi 0, %s65
    %s69 = sphi 0, %s68
    %s85 = sphi 0, %s69
    %s91 = sphi 0, %s93
    %s94 = sphi 0, %s91
    %s95 = sphi 0, %s94
    %s111 = sphi 0, %s95
    %s117 = sphi 0, %s119
    %s120 = sphi 0, %s117
    %s121 = sphi 0, %s120
    %s137 = sphi 0, %s121
  $region4: #{han2_forward.3} parent=0 // loop_header_branch
    %12 = sbr.rel (%p10) target = $region8
  $region5: #{han2_forward.3} parent=0 // loop_body
    %s14 = ssub.s32 %s9, 1
    %s15 = ssub.s32 %s9, 2
    %s22 = sadd.s32 1, %s17
    %p23 = scmp.ge.s32.totalorder %s22, 1
    %s24 = scalar_select %p23, 0, %s22
    %s25 = sadd.s32 1, %s16
    %s26 = scalar_select %p23, %s25, %s16
    %p27 = scmp.ge.s32.totalorder %s26, 2
    %s28 = scalar_select %p27, 0, %s26
    %s29 = smul.u32 %s16, 2
    %s30 = ssub.s32 1, %s29
    %s31 = smul.u32 %s30, %s17
    %s32 = smul.u32 %s28, 2
    %s33 = ssub.s32 1, %s32
    %s34 = smul.u32 %s33, %s24
    %s35 = ssub.s32 %s16, %s28
    %s36 = ssub.s32 %s31, %s34
    %s37 = sor.u32 %s35, %s36
    %p38 = scmp.eq.s32.totalorder %s37, 0
    %s40 = sadd.s32 %s39, 1
    %s41 = scalar_select %p38, %s39, %s40
    %p44 = pneg %p38
    %p45 = scmp.eq.s32.totalorder %s9, 1
    %p46 = por %p44, %p45
    %p47 = scmp.ne.s32.totalorder %s39, %s42
    %p48 = scmp.eq.s32.totalorder %s9, 0
    %p49 = por %p47, %p48
    %p50 = scmp.ne.s32.totalorder %s39, %s42
    %p51 = scmp.eq.s32.totalorder %s14, 1
    %p52 = por %p50, %p51
    %p53 = scmp.ne.s32.totalorder %s42, %s43
    %p54 = scmp.eq.s32.totalorder %s14, 0
    %p55 = por %p53, %p54
    %p56 = scmp.ne.s32.totalorder %s42, %s43
    %p57 = scmp.eq.s32.totalorder %s15, 1
    %p58 = por %p56, %p57
    %p60 = scmp.ne.s32.totalorder %s43, %s59
    %p61 = scmp.eq.s32.totalorder %s15, 0
    %p62 = por %p60, %p61
    %s63 = ssub.s32 %s16, %s28
    %p64 = scmp.eq.s32.totalorder %s63, 0
    %s66 = sadd.s32 %s65, 1
    %s67 = scalar_select %p64, %s65, %s66
    %p70 = pneg %p64
    %p71 = scmp.eq.s32.totalorder %s9, 1
    %p72 = por %p70, %p71
    %p73 = scmp.ne.s32.totalorder %s65, %s68
    %p74 = scmp.eq.s32.totalorder %s9, 0
    %p75 = por %p73, %p74
    %p76 = scmp.ne.s32.totalorder %s65, %s68
    %p77 = scmp.eq.s32.totalorder %s14, 1
    %p78 = por %p76, %p77
    %p79 = scmp.ne.s32.totalorder %s68, %s69
    %p80 = scmp.eq.s32.totalorder %s14, 0
    %p81 = por %p79, %p80
    %p82 = scmp.ne.s32.totalorder %s68, %s69
    %p83 = scmp.eq.s32.totalorder %s15, 1
    %p84 = por %p82, %p83
    %p86 = scmp.ne.s32.totalorder %s69, %s85
    %p87 = scmp.eq.s32.totalorder %s15, 0
    %p88 = por %p86, %p87
    %s89 = ssub.s32 %s16, %s28
    %p90 = scmp.eq.s32.totalorder %s89, 0
    %s92 = sadd.s32 %s91, 1
    %s93 = scalar_select %p90, %s91, %s92
    %p96 = pneg %p90
    %p97 = scmp.eq.s32.totalorder %s9, 1
    %p98 = por %p96, %p97
    %p99 = scmp.ne.s32.totalorder %s91, %s94
    %p100 = scmp.eq.s32.totalorder %s9, 0
    %p101 = por %p99, %p100
    %p102 = scmp.ne.s32.totalorder %s91, %s94
    %p103 = scmp.eq.s32.totalorder %s14, 1
    %p104 = por %p102, %p103
    %p105 = scmp.ne.s32.totalorder %s94, %s95
    %p106 = scmp.eq.s32.totalorder %s14, 0
    %p107 = por %p105, %p106
    %p108 = scmp.ne.s32.totalorder %s94, %s95
    %p109 = scmp.eq.s32.totalorder %s15, 1
    %p110 = por %p108, %p109
    %p112 = scmp.ne.s32.totalorder %s95, %s111
    %p113 = scmp.eq.s32.totalorder %s15, 0
    %p114 = por %p112, %p113
    %s115 = ssub.s32 %s16, %s28
    %p116 = scmp.eq.s32.totalorder %s115, 0
    %s118 = sadd.s32 %s117, 1
    %s119 = scalar_select %p116, %s117, %s118
    %p122 = pneg %p116
    %p123 = scmp.eq.s32.totalorder %s9, 1
    %p124 = por %p122, %p123
    %p125 = scmp.ne.s32.totalorder %s117, %s120
    %p126 = scmp.eq.s32.totalorder %s9, 0
    %p127 = por %p125, %p126
    %p128 = scmp.ne.s32.totalorder %s117, %s120
    %p129 = scmp.eq.s32.totalorder %s14, 1
    %p130 = por %p128, %p129
    %p131 = scmp.ne.s32.totalorder %s120, %s121
    %p132 = scmp.eq.s32.totalorder %s14, 0
    %p133 = por %p131, %p132
    %p134 = scmp.ne.s32.totalorder %s120, %s121
    %p135 = scmp.eq.s32.totalorder %s15, 1
    %p136 = por %p134, %p135
    %p138 = scmp.ne.s32.totalorder %s121, %s137
    %p139 = scmp.eq.s32.totalorder %s15, 0
    %p140 = por %p138, %p139
    %p141 = scmp.le.s32.totalorder 1, %s9
    %p142 = scmp.lt.s32.totalorder %s9, 3
    %p143 = pnand %p141, %p142
    %p144 = pneg %p143
    // Predicated region
    $region9: #{han2_forward.3} parent=5 // pred_check
      _
    $region10: #{han2_forward.3} parent=5 // pred_check_branch
      %146 = sbr.rel (%p143) target = $region12
    $region11: #{han2_forward.3} parent=5 // pred_region
      %s147 = ssub.s32 %s9, 1
    $region12: #{han2_forward.3} parent=5 // pred_fallthru
      _
    %p148 = scmp.lt.s32.totalorder %s9, 2
    // Predicated region
    $region13: #{han2_forward.3} parent=5 // pred_check
      %p149 = pneg %p148
    $region14: #{han2_forward.3} parent=5 // pred_check_branch
      %151 = sbr.rel (%p149) target = $region16
    $region15: #{han2_forward.3} parent=5 // pred_region
      // Predicated region
      $region17: #{han2_forward.3} parent=15 // pred_check
        %p152 = pneg %p49
      $region18: #{han2_forward.3} parent=15 // pred_check_branch
        %154 = sbr.rel (%p152) target = $region20
      $region19: #{han2_forward.3} parent=15 // pred_region
        %s155 = smul.u32 %s16, 2
        %s156 = ssub.s32 1, %s155
        %s157 = smul.u32 %s156, %s17
        %s158 = smul.u32 8, %s157
        %p159 = scmp.lt.s32.totalorder %s16, 1
        %s160 = scalar_select %p159, %s16, 1
        %p161 = scmp.lt.s32.totalorder %s158, 7
        %s162 = scalar_select %p161, %s158, 7
        %s163 = smul.addr %s162, 5
        %s164 = smul.addr %s160, 40
        %s165 = sadd.s32 %s163, %s164
        %s166 = smul.addr %s165, 2
        %s167 = scalar_lea.vmem %s0, %s166
        %s168 = smul.u32 %s16, 2
        %s169 = ssub.s32 1, %s168
        %s170 = smul.u32 %s169, %s17
        %s171 = smul.u32 8, %s170
      $region20: #{han2_forward.3} parent=15 // pred_fallthru
        _
      // Predicated region
      $region21: #{han2_forward.3} parent=15 // pred_check
        %p172 = pneg %p75
      $region22: #{han2_forward.3} parent=15 // pred_check_branch
        %174 = sbr.rel (%p172) target = $region24
      $region23: #{han2_forward.3} parent=15 // pred_region
        %p175 = scmp.lt.s32.totalorder %s16, 1
        %s176 = scalar_select %p175, %s16, 1
        %s177 = smul.addr %s176, 125
        %s178 = smul.addr %s177, 4
        %s179 = scalar_lea.vmem %s1, %s178
      $region24: #{han2_forward.3} parent=15 // pred_fallthru
        _
      // Predicated region
      $region25: #{han2_forward.3} parent=15 // pred_check
        %p180 = pneg %p101
      $region26: #{han2_forward.3} parent=15 // pred_check_branch
        %182 = sbr.rel (%p180) target = $region28
      $region27: #{han2_forward.3} parent=15 // pred_region
        %p183 = scmp.lt.s32.totalorder %s16, 1
        %s184 = scalar_select %p183, %s16, 1
        %s185 = smul.addr %s184, 2
        %s186 = scalar_lea.vmem %s2, %s185
      $region28: #{han2_forward.3} parent=15 // pred_fallthru
        _
    $region16: #{han2_forward.3} parent=5 // pred_fallthru
      _
    %p187 = scmp.le.s32.totalorder 1, %s9
    %p188 = scmp.lt.s32.totalorder %s9, 3
    %p189 = pnand %p187, %p188
    %p190 = pneg %p189
    // Predicated region
    $region29: #{han2_forward.3} parent=5 // pred_check
      _
    $region30: #{han2_forward.3} parent=5 // pred_check_branch
      %192 = sbr.rel (%p189) target = $region32
    $region31: #{han2_forward.3} parent=5 // pred_region
      %s193 = ssub.s32 %s9, 1
      %s194 = smul.u32 %s18, 2
      %s195 = ssub.s32 1, %s194
      %s196 = smul.u32 %s195, %s19
      %s197 = smul.u32 8, %s196
      %p198 = scmp.lt.s32.totalorder %s18, 1
      %s199 = scalar_select %p198, %s18, 1
      %p200 = scmp.lt.s32.totalorder %s197, 7
      %s201 = scalar_select %p200, %s197, 7
      %s202 = smul.addr %s201, 5
      %s203 = smul.addr %s199, 40
      %s204 = sadd.s32 %s202, %s203
      %s205 = smul.addr %s204, 2
      %s206 = scalar_lea.vmem %s0, %s205
      %p207 = pneg %p55
      %p208 = pneg %p52
      %p209 = scmp.lt.s32.totalorder %s18, 1
      %s210 = scalar_select %p209, %s18, 1
      %s211 = smul.addr %s210, 125
      %s212 = smul.addr %s211, 4
      %s213 = scalar_lea.vmem %s1, %s212
      %p214 = pneg %p81
      %p215 = pneg %p78
      %p216 = scmp.lt.s32.totalorder %s18, 1
      %s217 = scalar_select %p216, %s18, 1
      %s218 = smul.addr %s217, 2
      %s219 = scalar_lea.vmem %s2, %s218
      %p220 = pneg %p107
      %p221 = pneg %p104
      %p222 = pneg %p133
      %p223 = pneg %p130
      %p224 = scmp.lt.s32.totalorder %s18, 1
      %s225 = scalar_select %p224, %s18, 1
      %s226 = smul.addr %s225, 2
      %s227 = smul.addr %s226, 2
      %s228 = scalar_lea.vmem %s3, %s227
      %s229 = smul.u32 %s18, 2
      %s230 = ssub.s32 1, %s229
      %s231 = smul.u32 %s230, %s19
      %s232 = smul.u32 8, %s231
      %p233 = scmp.lt.s32.totalorder %s18, 1
      %s234 = scalar_select %p233, %s18, 1
      %p235 = scmp.lt.s32.totalorder %s232, 7
      %s236 = scalar_select %p235, %s232, 7
      %s237 = smul.addr %s236, 5
      %s238 = smul.addr %s234, 40
      %s239 = sadd.s32 %s237, %s238
      %s240 = smul.addr %s239, 2
      %s241 = scalar_lea.vmem %s0, %s240
      %s242 = smul.u32 %s18, 2
      %s243 = ssub.s32 1, %s242
      %s244 = smul.u32 %s243, %s19
      %s245 = smul.u32 8, %s244
      %p246 = scmp.lt.s32.totalorder %s18, 1
      %s247 = scalar_select %p246, %s18, 1
      %s248 = smul.addr %s247, 125
      %s249 = smul.addr %s248, 4
      %s250 = scalar_lea.vmem %s1, %s249
      %p251 = scmp.lt.s32.totalorder %s18, 1
      %s252 = scalar_select %p251, %s18, 1
      %s253 = smul.addr %s252, 2
      %s254 = scalar_lea.vmem %s2, %s253
      %p255 = scmp.lt.s32.totalorder %s18, 1
      %s256 = scalar_select %p255, %s18, 1
      %s257 = smul.addr %s256, 2
      %s258 = smul.addr %s257, 2
      %s259 = scalar_lea.vmem %s3, %s258
      %p261 = scmp.eq.s32.totalorder %s19, 0
      // Predicated region
      $region33: #{han2_forward.3} parent=31 // pred_check
        %p262 = pneg %p261
      $region34: #{han2_forward.3} parent=31 // pred_check_branch
        %264 = sbr.rel (%p262) target = $region36
      $region35: #{han2_forward.3} parent=31 // pred_region
        %vm265 = vcmask 1041408
        %vm266 = vcmask 584706
        %vm267 = vmor %vm266, %vm265
        %268 = vst.msk [vmem:[#allocation2] sm:$0xf] %vm267, 0.0
      $region36: #{han2_forward.3} parent=31 // pred_fallthru
        _
      %v269 = vld [vmem:[%s250] sm:$0xff]
      %v270 = vld [vmem:[%s250 + $0x8] sm:$0xff]
      %v271 = vld [vmem:[%s250 + $0x10] sm:$0xf]
      %v272 = vld [vmem:[%s250 + $0x14] sm:$0xff]
      %v273 = vld [vmem:[%s250 + $0x1c] sm:$0xff]
      %v274 = vld [vmem:[%s250 + $0x24] sm:$0xf]
      %v275 = vld [vmem:[%s250 + $0x28] sm:$0xff]
      %v276 = vld [vmem:[%s250 + $0x30] sm:$0xff]
      %v277 = vld [vmem:[%s250 + $0x38] sm:$0xf]
      %v278 = vld [vmem:[%s250 + $0x3c] sm:$0xff]
      %v279 = vld [vmem:[%s250 + $0x44] sm:$0xff]
      %v280 = vld [vmem:[%s250 + $0x4c] sm:$0xf]
      %v281 = vld [vmem:[%s250 + $0x50] sm:$0xff]
      %v282 = vld [vmem:[%s250 + $0x58] sm:$0xff]
      %v283 = vld [vmem:[%s250 + $0x60] sm:$0xf]
      %v284 = vld [vmem:[%s250 + $0x64] sm:$0xff]
      %v285 = vld [vmem:[%s250 + $0x6c] sm:$0xff]
      %v286 = vld [vmem:[%s250 + $0x74] sm:$0xf]
      %v287 = vld [vmem:[%s250 + $0x78] sm:$0xff]
      %v288 = vld [vmem:[%s250 + $0x80] sm:$0xff]
      %v289 = vld [vmem:[%s250 + $0x88] sm:$0xf]
      %v290 = vld [vmem:[%s250 + $0x8c] sm:$0xff]
      %v291 = vld [vmem:[%s250 + $0x94] sm:$0xff]
      %v292 = vld [vmem:[%s250 + $0x9c] sm:$0xf]
      %v293 = vld [vmem:[%s250 + $0xa0] sm:$0xff]
      %v294 = vld [vmem:[%s250 + $0xa8] sm:$0xff]
      %v295 = vld [vmem:[%s250 + $0xb0] sm:$0xf]
      %v296 = vld [vmem:[%s250 + $0xb4] sm:$0xff]
      %v297 = vld [vmem:[%s250 + $0xbc] sm:$0xff]
      %v298 = vld [vmem:[%s250 + $0xc4] sm:$0xf]
      %v299 = vld [vmem:[%s250 + $0xc8] sm:$0xff]
      %v300 = vld [vmem:[%s250 + $0xd0] sm:$0xff]
      %v301 = vld [vmem:[%s250 + $0xd8] sm:$0xf]
      %v302 = vld [vmem:[%s250 + $0xdc] sm:$0xff]
      %v303 = vld [vmem:[%s250 + $0xe4] sm:$0xff]
      %v304 = vld [vmem:[%s250 + $0xec] sm:$0xf]
      %v305 = vld [vmem:[%s250 + $0xf0] sm:$0xff]
      %v306 = vld [vmem:[%s250 + $0xf8] sm:$0xff]
      %v307 = vld [vmem:[%s250 + $0x100] sm:$0xf]
      %v308 = vld [vmem:[%s250 + $0x104] sm:$0xff]
      %v309 = vld [vmem:[%s250 + $0x10c] sm:$0xff]
      %v310 = vld [vmem:[%s250 + $0x114] sm:$0xf]
      %v311 = vld [vmem:[%s250 + $0x118] sm:$0xff]
      %v312 = vld [vmem:[%s250 + $0x120] sm:$0xff]
      %v313 = vld [vmem:[%s250 + $0x128] sm:$0xf]
      %v314 = vld [vmem:[%s250 + $0x12c] sm:$0xff]
      %v315 = vld [vmem:[%s250 + $0x134] sm:$0xff]
      %v316 = vld [vmem:[%s250 + $0x13c] sm:$0xf]
      %v317 = vld [vmem:[%s250 + $0x140] sm:$0xff]
      %v318 = vld [vmem:[%s250 + $0x148] sm:$0xff]
      %v319 = vld [vmem:[%s250 + $0x150] sm:$0xf]
      %v320 = vld [vmem:[%s250 + $0x154] sm:$0xff]
      %v321 = vld [vmem:[%s250 + $0x15c] sm:$0xff]
      %v322 = vld [vmem:[%s250 + $0x164] sm:$0xf]
      %v323 = vld [vmem:[%s250 + $0x168] sm:$0xff]
      %v324 = vld [vmem:[%s250 + $0x170] sm:$0xff]
      %v325 = vld [vmem:[%s250 + $0x178] sm:$0xf]
      %v326 = vld [vmem:[%s250 + $0x17c] sm:$0xff]
      %v327 = vld [vmem:[%s250 + $0x184] sm:$0xff]
      %v328 = vld [vmem:[%s250 + $0x18c] sm:$0xf]
      %v329 = vld [vmem:[%s250 + $0x190] sm:$0xff]
      %v330 = vld [vmem:[%s250 + $0x198] sm:$0xff]
      %v331 = vld [vmem:[%s250 + $0x1a0] sm:$0xf]
      %v332 = vld [vmem:[%s250 + $0x1a4] sm:$0xff]
      %v333 = vld [vmem:[%s250 + $0x1ac] sm:$0xff]
      %v334 = vld [vmem:[%s250 + $0x1b4] sm:$0xf]
      %v335 = vld [vmem:[%s250 + $0x1b8] sm:$0xff]
      %v336 = vld [vmem:[%s250 + $0x1c0] sm:$0xff]
      %v337 = vld [vmem:[%s250 + $0x1c8] sm:$0xf]
      %v338 = vld [vmem:[%s250 + $0x1cc] sm:$0xff]
      %v339 = vld [vmem:[%s250 + $0x1d4] sm:$0xff]
      %v340 = vld [vmem:[%s250 + $0x1dc] sm:$0xf]
      %v341 = vld [vmem:[%s250 + $0x1e0] sm:$0xff]
      %v342 = vld [vmem:[%s250 + $0x1e8] sm:$0xff]
      %v343 = vld [vmem:[%s250 + $0x1f0] sm:$0xf]
      %v344 = vld [vmem:[%s254] sm:$0x3]
      %s345 = smul.u32 %s18, 2
      %s346 = ssub.s32 1, %s345
      %s347 = smul.u32 %s18, 7
      %v348 = vld [vmem:[#allocation2] sm:$0xf]
      %s349 = smul.u32 %s347, 5
      %s350 = smul.addr %s349, 2
      %s351 = scalar_lea.vmem %s241, %s350
      %v352 = vld [vmem:[%s351] sm:$0xff]
      %v353 = vld [vmem:[%s351 + $0x8] sm:$0x3]
      %v356 = vunpack.c.l.s4 1983009808
      %v357 = vunpack.c.0.s8 %v356
      %v358 = vlaneseq
      %v359 = vshrl.u32 %v358, 7
      %v360 = vsub.s32 %v357, %v359
      %v361 = vrot.slane %v348, %v360
      %v362 = vcombine.high %v361, %v361
      %v365 = vpack.c.bf16 %v361, %v361
      %v366 = vpack.c.bf16 %v362, %v362
      %v442 = vunpack.c.l.b16 %v269
      %v443 = vunpack.c.h.b16 %v269
      %v444 = vunpack.c.l.b16 %v270
      %v445 = vunpack.c.h.b16 %v270
      %v446 = vunpack.c.l.b16 %v271
      %v447 = vunpack.c.l.b16 %v272
      %v448 = vunpack.c.h.b16 %v272
      %v449 = vunpack.c.l.b16 %v273
      %v450 = vunpack.c.h.b16 %v273
      %v451 = vunpack.c.l.b16 %v274
      %v452 = vunpack.c.l.b16 %v275
      %v453 = vunpack.c.h.b16 %v275
      %v454 = vunpack.c.l.b16 %v276
      %v455 = vunpack.c.h.b16 %v276
      %v456 = vunpack.c.l.b16 %v277
      %v457 = vunpack.c.l.b16 %v278
      %v458 = vunpack.c.h.b16 %v278
      %v459 = vunpack.c.l.b16 %v279
      %v460 = vunpack.c.h.b16 %v279
      %v461 = vunpack.c.l.b16 %v280
      %v462 = vunpack.c.l.b16 %v281
      %v463 = vunpack.c.h.b16 %v281
      %v464 = vunpack.c.l.b16 %v282
      %v465 = vunpack.c.h.b16 %v282
      %v466 = vunpack.c.l.b16 %v283
      %v467 = vunpack.c.l.b16 %v284
      %v468 = vunpack.c.h.b16 %v284
      %v469 = vunpack.c.l.b16 %v285
      %v470 = vunpack.c.h.b16 %v285
      %v471 = vunpack.c.l.b16 %v286
      %v472 = vunpack.c.l.b16 %v287
      %v473 = vunpack.c.h.b16 %v287
      %v474 = vunpack.c.l.b16 %v288
      %v475 = vunpack.c.h.b16 %v288
      %v476 = vunpack.c.l.b16 %v289
      %v477 = vunpack.c.l.b16 %v290
      %v478 = vunpack.c.h.b16 %v290
      %v479 = vunpack.c.l.b16 %v291
      %v480 = vunpack.c.h.b16 %v291
      %v481 = vunpack.c.l.b16 %v292
      %v482 = vunpack.c.l.b16 %v293
      %v483 = vunpack.c.h.b16 %v293
      %v484 = vunpack.c.l.b16 %v294
      %v485 = vunpack.c.h.b16 %v294
      %v486 = vunpack.c.l.b16 %v295
      %v487 = vunpack.c.l.b16 %v296
      %v488 = vunpack.c.h.b16 %v296
      %v489 = vunpack.c.l.b16 %v297
      %v490 = vunpack.c.h.b16 %v297
      %v491 = vunpack.c.l.b16 %v298
      %v492 = vunpack.c.l.b16 %v299
      %v493 = vunpack.c.h.b16 %v299
      %v494 = vunpack.c.l.b16 %v300
      %v495 = vunpack.c.h.b16 %v300
      %v496 = vunpack.c.l.b16 %v301
      %v497 = vunpack.c.l.b16 %v302
      %v498 = vunpack.c.h.b16 %v302
      %v499 = vunpack.c.l.b16 %v303
      %v500 = vunpack.c.h.b16 %v303
      %v501 = vunpack.c.l.b16 %v304
      %v502 = vunpack.c.l.b16 %v305
      %v503 = vunpack.c.h.b16 %v305
      %v504 = vunpack.c.l.b16 %v306
      %v505 = vunpack.c.h.b16 %v306
      %v506 = vunpack.c.l.b16 %v307
      %v507 = vunpack.c.l.b16 %v308
      %v508 = vunpack.c.h.b16 %v308
      %v509 = vunpack.c.l.b16 %v309
      %v510 = vunpack.c.h.b16 %v309
      %v511 = vunpack.c.l.b16 %v310
      %v512 = vunpack.c.l.b16 %v311
      %v513 = vunpack.c.h.b16 %v311
      %v514 = vunpack.c.l.b16 %v312
      %v515 = vunpack.c.h.b16 %v312
      %v516 = vunpack.c.l.b16 %v313
      %v517 = vunpack.c.l.b16 %v314
      %v518 = vunpack.c.h.b16 %v314
      %v519 = vunpack.c.l.b16 %v315
      %v520 = vunpack.c.h.b16 %v315
      %v521 = vunpack.c.l.b16 %v316
      %v522 = vunpack.c.l.b16 %v317
      %v523 = vunpack.c.h.b16 %v317
      %v524 = vunpack.c.l.b16 %v318
      %v525 = vunpack.c.h.b16 %v318
      %v526 = vunpack.c.l.b16 %v319
      %v527 = vunpack.c.l.b16 %v320
      %v528 = vunpack.c.h.b16 %v320
      %v529 = vunpack.c.l.b16 %v321
      %v530 = vunpack.c.h.b16 %v321
      %v531 = vunpack.c.l.b16 %v322
      %v532 = vunpack.c.l.b16 %v323
      %v533 = vunpack.c.h.b16 %v323
      %v534 = vunpack.c.l.b16 %v324
      %v535 = vunpack.c.h.b16 %v324
      %v536 = vunpack.c.l.b16 %v325
      %v537 = vunpack.c.l.b16 %v326
      %v538 = vunpack.c.h.b16 %v326
      %v539 = vunpack.c.l.b16 %v327
      %v540 = vunpack.c.h.b16 %v327
      %v541 = vunpack.c.l.b16 %v328
      %v542 = vunpack.c.l.b16 %v329
      %v543 = vunpack.c.h.b16 %v329
      %v544 = vunpack.c.l.b16 %v330
      %v545 = vunpack.c.h.b16 %v330
      %v546 = vunpack.c.l.b16 %v331
      %v547 = vunpack.c.l.b16 %v332
      %v548 = vunpack.c.h.b16 %v332
      %v549 = vunpack.c.l.b16 %v333
      %v550 = vunpack.c.h.b16 %v333
      %v551 = vunpack.c.l.b16 %v334
      %v552 = vunpack.c.l.b16 %v335
      %v553 = vunpack.c.h.b16 %v335
      %v554 = vunpack.c.l.b16 %v336
      %v555 = vunpack.c.h.b16 %v336
      %v556 = vunpack.c.l.b16 %v337
      %v557 = vunpack.c.l.b16 %v338
      %v558 = vunpack.c.h.b16 %v338
      %v559 = vunpack.c.l.b16 %v339
      %v560 = vunpack.c.h.b16 %v339
      %v561 = vunpack.c.l.b16 %v340
      %v562 = vunpack.c.l.b16 %v341
      %v563 = vunpack.c.h.b16 %v341
      %v564 = vunpack.c.l.b16 %v342
      %v565 = vunpack.c.h.b16 %v342
      %v566 = vunpack.c.l.b16 %v343
      %v567 = vpack.c.b16 %v447, %v442
      %v568 = vpack.c.b16 %v448, %v443
      %v569 = vpack.c.b16 %v449, %v444
      %v570 = vpack.c.b16 %v450, %v445
      %v571 = vpack.c.b16 %v451, %v446
      %v572 = vpack.c.b16 %v457, %v452
      %v573 = vpack.c.b16 %v458, %v453
      %v574 = vpack.c.b16 %v459, %v454
      %v575 = vpack.c.b16 %v460, %v455
      %v576 = vpack.c.b16 %v461, %v456
      %v577 = vpack.c.b16 %v467, %v462
      %v578 = vpack.c.b16 %v468, %v463
      %v579 = vpack.c.b16 %v469, %v464
      %v580 = vpack.c.b16 %v470, %v465
      %v581 = vpack.c.b16 %v471, %v466
      %v582 = vpack.c.b16 %v477, %v472
      %v583 = vpack.c.b16 %v478, %v473
      %v584 = vpack.c.b16 %v479, %v474
      %v585 = vpack.c.b16 %v480, %v475
      %v586 = vpack.c.b16 %v481, %v476
      %v587 = vpack.c.b16 %v487, %v482
      %v588 = vpack.c.b16 %v488, %v483
      %v589 = vpack.c.b16 %v489, %v484
      %v590 = vpack.c.b16 %v490, %v485
      %v591 = vpack.c.b16 %v491, %v486
      %v592 = vpack.c.b16 %v497, %v492
      %v593 = vpack.c.b16 %v498, %v493
      %v594 = vpack.c.b16 %v499, %v494
      %v595 = vpack.c.b16 %v500, %v495
      %v596 = vpack.c.b16 %v501, %v496
      %v597 = vpack.c.b16 %v507, %v502
      %v598 = vpack.c.b16 %v508, %v503
      %v599 = vpack.c.b16 %v509, %v504
      %v600 = vpack.c.b16 %v510, %v505
      %v601 = vpack.c.b16 %v511, %v506
      %v602 = vpack.c.b16 %v517, %v512
      %v603 = vpack.c.b16 %v518, %v513
      %v604 = vpack.c.b16 %v519, %v514
      %v605 = vpack.c.b16 %v520, %v515
      %v606 = vpack.c.b16 %v521, %v516
      %v607 = vpack.c.b16 %v527, %v522
      %v608 = vpack.c.b16 %v528, %v523
      %v609 = vpack.c.b16 %v529, %v524
      %v610 = vpack.c.b16 %v530, %v525
      %v611 = vpack.c.b16 %v531, %v526
      %v612 = vpack.c.b16 %v537, %v532
      %v613 = vpack.c.b16 %v538, %v533
      %v614 = vpack.c.b16 %v539, %v534
      %v615 = vpack.c.b16 %v540, %v535
      %v616 = vpack.c.b16 %v541, %v536
      %v617 = vpack.c.b16 %v547, %v542
      %v618 = vpack.c.b16 %v548, %v543
      %v619 = vpack.c.b16 %v549, %v544
      %v620 = vpack.c.b16 %v550, %v545
      %v621 = vpack.c.b16 %v551, %v546
      %v622 = vpack.c.b16 %v557, %v552
      %v623 = vpack.c.b16 %v558, %v553
      %v624 = vpack.c.b16 %v559, %v554
      %v625 = vpack.c.b16 %v560, %v555
      %v626 = vpack.c.b16 %v561, %v556
      %v627 = vpack.c.b16 %v562, %v562
      %v628 = vpack.c.b16 %v563, %v563
      %v629 = vpack.c.b16 %v564, %v564
      %v630 = vpack.c.b16 %v565, %v565
      %v631 = vpack.c.b16 %v566, %v566
      %vm692 = vcmask 588800
      %v694 = vsel %vm692, %v366, 0
      %vm696 = vcmask 1043456
      %v698 = vsel %vm696, %v627, 0
      %v701 = vsel %vm696, %v628, 0
      %v704 = vsel %vm696, %v629, 0
      %v707 = vsel %vm696, %v630, 0
      %v710 = vsel %vm696, %v631, 0
      %712 = vmatprep.subr.bf16.mxu0 %v568
      %713 = vmatpush1.bf16.msra.mxu0 %v567
      %714 = vmatprep.subr.bf16.mxu0 %v573
      %715 = vmatpush1.bf16.msra.mxu0 %v572
      %716 = vmatprep.subr.bf16.mxu0 %v578
      %717 = vmatpush1.bf16.msra.mxu0 %v577
      %718 = vmatprep.subr.bf16.mxu0 %v583
      %719 = vmatpush1.bf16.msra.mxu0 %v582
      %720 = vmatprep.subr.bf16.mxu0 %v588
      %721 = vmatpush1.bf16.msra.mxu0 %v587
      %722 = vmatprep.subr.bf16.mxu0 %v593
      %723 = vmatpush1.bf16.msra.mxu0 %v592
      %724 = vmatprep.subr.bf16.mxu0 %v598
      %725 = vmatpush1.bf16.msra.mxu0 %v597
      %726 = vmatprep.subr.bf16.mxu0 %v603
      %727 = vmatpush1.bf16.msra.mxu0 %v602
      %728 = vmatprep.subr.bf16.mxu0 %v608
      %729 = vmatpush1.bf16.msra.mxu0 %v607
      %730 = vmatprep.subr.bf16.mxu0 %v613
      %731 = vmatpush1.bf16.msra.mxu0 %v612
      %732 = vmatprep.subr.bf16.mxu0 %v618
      %733 = vmatpush1.bf16.msra.mxu0 %v617
      %734 = vmatprep.subr.bf16.mxu0 %v623
      %735 = vmatpush1.bf16.msra.mxu0 %v622
      %736 = vmatprep.subr.bf16.mxu0 %v701
      %737 = vmatpush1.bf16.msra.mxu0 %v698
      %738 = vmatprep.subr.bf16.mxu0 0
      %739 = vmatpush1.bf16.msra.mxu0 0
      %740 = vmatprep.subr.bf16.mxu0 0
      %741 = vmatpush1.bf16.msra.mxu0 0
      %742 = vmatprep.subr.bf16.mxu0 0
      %743 = vmatpush1.bf16.msra.mxu0 0
      %744 = vmatprep.mubr.bf16.mxu0 %v694
      %745 = vmatmul.mubr.bf16.gmra.mrb[0].mxu0 %v365
      %v746 = vpop.f32.mrb[0].mxu0
      %v747 = vadd.f32 0.0, %v746
      %v748 = vpop.f32.mrb[0].mxu0
      %v749 = vadd.f32 0.0, %v748
      %v750 = vpop.f32.mrb[0].mxu0
      %v751 = vpop.f32.mrb[0].mxu0
      %752 = vdwg.mxu0
      %753 = vmatprep.subr.bf16.mxu0 %v570
      %754 = vmatpush1.bf16.msra.mxu0 %v569
      %755 = vmatprep.subr.bf16.mxu0 %v575
      %756 = vmatpush1.bf16.msra.mxu0 %v574
      %757 = vmatprep.subr.bf16.mxu0 %v580
      %758 = vmatpush1.bf16.msra.mxu0 %v579
      %759 = vmatprep.subr.bf16.mxu0 %v585
      %760 = vmatpush1.bf16.msra.mxu0 %v584
      %761 = vmatprep.subr.bf16.mxu0 %v590
      %762 = vmatpush1.bf16.msra.mxu0 %v589
      %763 = vmatprep.subr.bf16.mxu0 %v595
      %764 = vmatpush1.bf16.msra.mxu0 %v594
      %765 = vmatprep.subr.bf16.mxu0 %v600
      %766 = vmatpush1.bf16.msra.mxu0 %v599
      %767 = vmatprep.subr.bf16.mxu0 %v605
      %768 = vmatpush1.bf16.msra.mxu0 %v604
      %769 = vmatprep.subr.bf16.mxu0 %v610
      %770 = vmatpush1.bf16.msra.mxu0 %v609
      %771 = vmatprep.subr.bf16.mxu0 %v615
      %772 = vmatpush1.bf16.msra.mxu0 %v614
      %773 = vmatprep.subr.bf16.mxu0 %v620
      %774 = vmatpush1.bf16.msra.mxu0 %v619
      %775 = vmatprep.subr.bf16.mxu0 %v625
      %776 = vmatpush1.bf16.msra.mxu0 %v624
      %777 = vmatprep.subr.bf16.mxu0 %v707
      %778 = vmatpush1.bf16.msra.mxu0 %v704
      %779 = vmatprep.subr.bf16.mxu0 0
      %780 = vmatpush1.bf16.msra.mxu0 0
      %781 = vmatprep.subr.bf16.mxu0 0
      %782 = vmatpush1.bf16.msra.mxu0 0
      %783 = vmatprep.subr.bf16.mxu0 0
      %784 = vmatpush1.bf16.msra.mxu0 0
      %785 = vmatprep.mubr.bf16.mxu0 %v694
      %786 = vmatmul.mubr.bf16.gmra.mrb[0].mxu0 %v365
      %v787 = vpop.f32.mrb[0].mxu0
      %v788 = vadd.f32 0.0, %v787
      %v789 = vpop.f32.mrb[0].mxu0
      %v790 = vadd.f32 0.0, %v789
      %v791 = vpop.f32.mrb[0].mxu0
      %v792 = vpop.f32.mrb[0].mxu0
      %793 = vdwg.mxu0
      %794 = vmatprep.subr.bf16.mxu0 0
      %795 = vmatpush1.bf16.msra.mxu0 %v571
      %796 = vmatprep.subr.bf16.mxu0 0
      %797 = vmatpush1.bf16.msra.mxu0 %v576
      %798 = vmatprep.subr.bf16.mxu0 0
      %799 = vmatpush1.bf16.msra.mxu0 %v581
      %800 = vmatprep.subr.bf16.mxu0 0
      %801 = vmatpush1.bf16.msra.mxu0 %v586
      %802 = vmatprep.subr.bf16.mxu0 0
      %803 = vmatpush1.bf16.msra.mxu0 %v591
      %804 = vmatprep.subr.bf16.mxu0 0
      %805 = vmatpush1.bf16.msra.mxu0 %v596
      %806 = vmatprep.subr.bf16.mxu0 0
      %807 = vmatpush1.bf16.msra.mxu0 %v601
      %808 = vmatprep.subr.bf16.mxu0 0
      %809 = vmatpush1.bf16.msra.mxu0 %v606
      %810 = vmatprep.subr.bf16.mxu0 0
      %811 = vmatpush1.bf16.msra.mxu0 %v611
      %812 = vmatprep.subr.bf16.mxu0 0
      %813 = vmatpush1.bf16.msra.mxu0 %v616
      %814 = vmatprep.subr.bf16.mxu0 0
      %815 = vmatpush1.bf16.msra.mxu0 %v621
      %816 = vmatprep.subr.bf16.mxu0 0
      %817 = vmatpush1.bf16.msra.mxu0 %v626
      %818 = vmatprep.subr.bf16.mxu0 0
      %819 = vmatpush1.bf16.msra.mxu0 %v710
      %820 = vmatprep.subr.bf16.mxu0 0
      %821 = vmatpush1.bf16.msra.mxu0 0
      %822 = vmatprep.subr.bf16.mxu0 0
      %823 = vmatpush1.bf16.msra.mxu0 0
      %824 = vmatprep.subr.bf16.mxu0 0
      %825 = vmatpush1.bf16.msra.mxu0 0
      %826 = vmatprep.mubr.bf16.mxu0 %v694
      %827 = vmatmul.mubr.bf16.gmra.mrb[0].mxu0 %v365
      %v828 = vpop.f32.mrb[0].mxu0
      %v829 = vadd.f32 0.0, %v828
      %v830 = vpop.f32.mrb[0].mxu0
      %v831 = vpop.f32.mrb[0].mxu0
      %v832 = vpop.f32.mrb[0].mxu0
      %833 = vdwg.mxu0
      %v836 = vcombine.low %v747, %v749
      %v838 = vunpack.c.l.s4 1983009808
      %v839 = vunpack.c.0.s8 %v838
      %v840 = vlaneseq
      %v841 = vshrl.u32 %v840, 7
      %v842 = vsub.s32 %v839, %v841
      %v843 = vrot.slane %v836, %v842
      %v845 = vadd.f32 %v352, %v843
      %v846 = vxor.u32 %v845, 2147483648
      %v847 = vmul.f32 %v846, 1.442695
      %v848 = vpow.pop %v847
      %v849 = vadd.f32 %v848, 1.0
      %v850 = vrcp.pop %v849
      %v851 = vmul.f32 1.0, %v850
      %853 = vrot.lane.b32.xlu0 %v352, 56
      %v854 = vpop.permute.xlu0 %853
      %v855 = vrot.slane %v854, 2
      %v856 = vrot.slane %v854, 4
      %vm857 = vcmask 457728
      %v858 = vsel %vm857, %v855, %v856
      %v862 = vcombine.low %v749, %v788
      %v864 = vunpack.c.l.s4 1983009808
      %v865 = vunpack.c.0.s8 %v864
      %v866 = vlaneseq
      %v867 = vshrl.u32 %v866, 7
      %v868 = vsub.s32 %v865, %v867
      %v869 = vrot.slane %v862, %v868
      %v871 = vunpack.c.l.s4 1983009808
      %v872 = vunpack.c.0.s8 %v871
      %v873 = vlaneseq
      %v874 = vshrl.u32 %v873, 7
      %v875 = vsub.s32 %v872, %v874
      %v876 = vrot.slane %v790, %v875
      %v877 = vcombine.low %v869, %v876
      %878 = vrot.lane.b32.xlu0 %v877, 56
      %v879 = vpop.permute.xlu0 %878
      %v880 = vrot.slane %v879, 2
      %v881 = vsel %vm857, %v879, %v880
      %v883 = vadd.f32 %v858, %v881
      %v884 = vxor.u32 %v883, 2147483648
      %v885 = vmul.f32 %v884, 1.442695
      %v886 = vpow.pop %v885
      %v887 = vadd.f32 %v886, 1.0
      %v888 = vrcp.pop %v887
      %v889 = vmul.f32 1.0, %v888
      %v891 = vlaneseq
      %v892 = vshrl.u32 %v891, 7
      %v893 = vsub.s32 0, %v892
      %v894 = vrot.slane %v344, %v893
      %v895 = vlaneseq
      %v896 = vshrl.u32 %v895, 7
      %v897 = vsub.s32 1, %v896
      %v898 = vrot.slane %v344, %v897
      %899 = vrot.lane.b32.xlu0 %v894, 16
      %v900 = vpop.permute.xlu0 %899
      %901 = vrot.lane.b32.xlu0 %v898, 16
      %v902 = vpop.permute.xlu0 %901
      %vm903 = vcmask 130048
      %v904 = vsel %vm903, %v900, %v902
      %v907 = vadd.f32 %v790, %v900
      %v908 = vadd.f32 %v829, %v904
      %v911 = vcombine.low %v907, %v908
      %v913 = vunpack.c.l.s4 1983009808
      %v914 = vunpack.c.0.s8 %v913
      %v915 = vlaneseq
      %v916 = vshrl.u32 %v915, 7
      %v917 = vsub.s32 %v914, %v916
      %v918 = vrot.slane %v911, %v917
      %919 = vrot.lane.b32.xlu0 %v918, 112
      %v920 = vpop.permute.xlu0 %919
      %v921 = vrot.slane %v920, 2
      %vm922 = vcmask 916480
      %v923 = vsel %vm922, %v920, %v921
      %v925 = vmul.f32 %v851, %v923
      %927 = vrot.lane.b32.xlu0 %v352, 112
      %v928 = vpop.permute.xlu0 %927
      %929 = vrot.lane.b32.xlu0 %v353, 112
      %v930 = vpop.permute.xlu0 %929
      %v931 = vrot.slane %v928, 6
      %v932 = vrot.slane %v930, 6
      %vm933 = vcmask 1041408
      %v934 = vsel %vm933, %v931, %v932
      %v935 = vsel %vm922, %v934, %v930
      %v937 = vadd.f32 %v935, %v925
      %v938 = vtanh.pop %v937
      %v939 = vsub.f32 1.0, %v889
      %v940 = vmul.f32 %v939, %v938
      %v941 = vmul.f32 %v889, %v348
      %v942 = vadd.f32 %v940, %v941
      %s943 = sadd.s32 %s347, %s346
      %s944 = smul.u32 %s943, 5
      %s945 = smul.addr %s944, 2
      %s946 = scalar_lea.vmem %s241, %s945
      %v947 = vld [vmem:[%s946] sm:$0xff]
      %v948 = vld [vmem:[%s946 + $0x8] sm:$0x3]
      %v951 = vunpack.c.l.s4 1983009808
      %v952 = vunpack.c.0.s8 %v951
      %v953 = vlaneseq
      %v954 = vshrl.u32 %v953, 7
      %v955 = vsub.s32 %v952, %v954
      %v956 = vrot.slane %v942, %v955
      %v957 = vcombine.high %v956, %v956
      %v960 = vpack.c.bf16 %v956, %v956
      %v961 = vpack.c.bf16 %v957, %v957
      %v963 = vsel %vm692, %v961, 0
      %965 = vmatprep.subr.bf16.mxu0 %v568
      %966 = vmatpush1.bf16.msra.mxu0 %v567
      %967 = vmatprep.subr.bf16.mxu0 %v573
      %968 = vmatpush1.bf16.msra.mxu0 %v572
      %969 = vmatprep.subr.bf16.mxu0 %v578
      %970 = vmatpush1.bf16.msra.mxu0 %v577
      %971 = vmatprep.subr.bf16.mxu0 %v583
      %972 = vmatpush1.bf16.msra.mxu0 %v582
      %973 = vmatprep.subr.bf16.mxu0 %v588
      %974 = vmatpush1.bf16.msra.mxu0 %v587
      %975 = vmatprep.subr.bf16.mxu0 %v593
      %976 = vmatpush1.bf16.msra.mxu0 %v592
      %977 = vmatprep.subr.bf16.mxu0 %v598
      %978 = vmatpush1.bf16.msra.mxu0 %v597
      %979 = vmatprep.subr.bf16.mxu0 %v603
      %980 = vmatpush1.bf16.msra.mxu0 %v602
      %981 = vmatprep.subr.bf16.mxu0 %v608
      %982 = vmatpush1.bf16.msra.mxu0 %v607
      %983 = vmatprep.subr.bf16.mxu0 %v613
      %984 = vmatpush1.bf16.msra.mxu0 %v612
      %985 = vmatprep.subr.bf16.mxu0 %v618
      %986 = vmatpush1.bf16.msra.mxu0 %v617
      %987 = vmatprep.subr.bf16.mxu0 %v623
      %988 = vmatpush1.bf16.msra.mxu0 %v622
      %989 = vmatprep.subr.bf16.mxu0 %v701
      %990 = vmatpush1.bf16.msra.mxu0 %v698
      %991 = vmatprep.subr.bf16.mxu0 0
      %992 = vmatpush1.bf16.msra.mxu0 0
      %993 = vmatprep.subr.bf16.mxu0 0
      %994 = vmatpush1.bf16.msra.mxu0 0
      %995 = vmatprep.subr.bf16.mxu0 0
      %996 = vmatpush1.bf16.msra.mxu0 0
      %997 = vmatprep.mubr.bf16.mxu0 %v963
      %998 = vmatmul.mubr.bf16.gmra.mrb[0].mxu0 %v960
      %v999 = vpop.f32.mrb[0].mxu0
      %v1000 = vadd.f32 0.0, %v999
      %v1001 = vpop.f32.mrb[0].mxu0
      %v1002 = vadd.f32 0.0, %v1001
      %v1003 = vpop.f32.mrb[0].mxu0
      %v1004 = vpop.f32.mrb[0].mxu0
      %1005 = vdwg.mxu0
      %1006 = vmatprep.subr.bf16.mxu0 %v570
      %1007 = vmatpush1.bf16.msra.mxu0 %v569
      %1008 = vmatprep.subr.bf16.mxu0 %v575
      %1009 = vmatpush1.bf16.msra.mxu0 %v574
      %1010 = vmatprep.subr.bf16.mxu0 %v580
      %1011 = vmatpush1.bf16.msra.mxu0 %v579
      %1012 = vmatprep.subr.bf16.mxu0 %v585
      %1013 = vmatpush1.bf16.msra.mxu0 %v584
      %1014 = vmatprep.subr.bf16.mxu0 %v590
      %1015 = vmatpush1.bf16.msra.mxu0 %v589
      %1016 = vmatprep.subr.bf16.mxu0 %v595
      %1017 = vmatpush1.bf16.msra.mxu0 %v594
      %1018 = vmatprep.subr.bf16.mxu0 %v600
      %1019 = vmatpush1.bf16.msra.mxu0 %v599
      %1020 = vmatprep.subr.bf16.mxu0 %v605
      %1021 = vmatpush1.bf16.msra.mxu0 %v604
      %1022 = vmatprep.subr.bf16.mxu0 %v610
      %1023 = vmatpush1.bf16.msra.mxu0 %v609
      %1024 = vmatprep.subr.bf16.mxu0 %v615
      %1025 = vmatpush1.bf16.msra.mxu0 %v614
      %1026 = vmatprep.subr.bf16.mxu0 %v620
      %1027 = vmatpush1.bf16.msra.mxu0 %v619
      %1028 = vmatprep.subr.bf16.mxu0 %v625
      %1029 = vmatpush1.bf16.msra.mxu0 %v624
      %1030 = vmatprep.subr.bf16.mxu0 %v707
      %1031 = vmatpush1.bf16.msra.mxu0 %v704
      %1032 = vmatprep.subr.bf16.mxu0 0
      %1033 = vmatpush1.bf16.msra.mxu0 0
      %1034 = vmatprep.subr.bf16.mxu0 0
      %1035 = vmatpush1.bf16.msra.mxu0 0
      %1036 = vmatprep.subr.bf16.mxu0 0
      %1037 = vmatpush1.bf16.msra.mxu0 0
      %1038 = vmatprep.mubr.bf16.mxu0 %v963
      %1039 = vmatmul.mubr.bf16.gmra.mrb[0].mxu0 %v960
      %v1040 = vpop.f32.mrb[0].mxu0
      %v1041 = vadd.f32 0.0, %v1040
      %v1042 = vpop.f32.mrb[0].mxu0
      %v1043 = vadd.f32 0.0, %v1042
      %v1044 = vpop.f32.mrb[0].mxu0
      %v1045 = vpop.f32.mrb[0].mxu0
      %1046 = vdwg.mxu0
      %1047 = vmatprep.subr.bf16.mxu0 0
      %1048 = vmatpush1.bf16.msra.mxu0 %v571
      %1049 = vmatprep.subr.bf16.mxu0 0
      %1050 = vmatpush1.bf16.msra.mxu0 %v576
      %1051 = vmatprep.subr.bf16.mxu0 0
      %1052 = vmatpush1.bf16.msra.mxu0 %v581
      %1053 = vmatprep.subr.bf16.mxu0 0
      %1054 = vmatpush1.bf16.msra.mxu0 %v586
      %1055 = vmatprep.subr.bf16.mxu0 0
      %1056 = vmatpush1.bf16.msra.mxu0 %v591
      %1057 = vmatprep.subr.bf16.mxu0 0
      %1058 = vmatpush1.bf16.msra.mxu0 %v596
      %1059 = vmatprep.subr.bf16.mxu0 0
      %1060 = vmatpush1.bf16.msra.mxu0 %v601
      %1061 = vmatprep.subr.bf16.mxu0 0
      %1062 = vmatpush1.bf16.msra.mxu0 %v606
      %1063 = vmatprep.subr.bf16.mxu0 0
      %1064 = vmatpush1.bf16.msra.mxu0 %v611
      %1065 = vmatprep.subr.bf16.mxu0 0
      %1066 = vmatpush1.bf16.msra.mxu0 %v616
      %1067 = vmatprep.subr.bf16.mxu0 0
      %1068 = vmatpush1.bf16.msra.mxu0 %v621
      %1069 = vmatprep.subr.bf16.mxu0 0
      %1070 = vmatpush1.bf16.msra.mxu0 %v626
      %1071 = vmatprep.subr.bf16.mxu0 0
      %1072 = vmatpush1.bf16.msra.mxu0 %v710
      %1073 = vmatprep.subr.bf16.mxu0 0
      %1074 = vmatpush1.bf16.msra.mxu0 0
      %1075 = vmatprep.subr.bf16.mxu0 0
      %1076 = vmatpush1.bf16.msra.mxu0 0
      %1077 = vmatprep.subr.bf16.mxu0 0
      %1078 = vmatpush1.bf16.msra.mxu0 0
      %1079 = vmatprep.mubr.bf16.mxu0 %v963
      %1080 = vmatmul.mubr.bf16.gmra.mrb[0].mxu0 %v960
      %v1081 = vpop.f32.mrb[0].mxu0
      %v1082 = vadd.f32 0.0, %v1081
      %v1083 = vpop.f32.mrb[0].mxu0
      %v1084 = vpop.f32.mrb[0].mxu0
      %v1085 = vpop.f32.mrb[0].mxu0
      %1086 = vdwg.mxu0
      %v1089 = vcombine.low %v1000, %v1002
      %v1091 = vunpack.c.l.s4 1983009808
      %v1092 = vunpack.c.0.s8 %v1091
      %v1093 = vlaneseq
      %v1094 = vshrl.u32 %v1093, 7
      %v1095 = vsub.s32 %v1092, %v1094
      %v1096 = vrot.slane %v1089, %v1095
      %v1098 = vadd.f32 %v947, %v1096
      %v1099 = vxor.u32 %v1098, 2147483648
      %v1100 = vmul.f32 %v1099, 1.442695
      %v1101 = vpow.pop %v1100
      %v1102 = vadd.f32 %v1101, 1.0
      %v1103 = vrcp.pop %v1102
      %v1104 = vmul.f32 1.0, %v1103
      %1106 = vrot.lane.b32.xlu0 %v947, 56
      %v1107 = vpop.permute.xlu0 %1106
      %v1108 = vrot.slane %v1107, 2
      %v1109 = vrot.slane %v1107, 4
      %v1110 = vsel %vm857, %v1108, %v1109
      %v1114 = vcombine.low %v1002, %v1041
      %v1116 = vunpack.c.l.s4 1983009808
      %v1117 = vunpack.c.0.s8 %v1116
      %v1118 = vlaneseq
      %v1119 = vshrl.u32 %v1118, 7
      %v1120 = vsub.s32 %v1117, %v1119
      %v1121 = vrot.slane %v1114, %v1120
      %v1123 = vunpack.c.l.s4 1983009808
      %v1124 = vunpack.c.0.s8 %v1123
      %v1125 = vlaneseq
      %v1126 = vshrl.u32 %v1125, 7
      %v1127 = vsub.s32 %v1124, %v1126
      %v1128 = vrot.slane %v1043, %v1127
      %v1129 = vcombine.low %v1121, %v1128
      %1130 = vrot.lane.b32.xlu0 %v1129, 56
      %v1131 = vpop.permute.xlu0 %1130
      %v1132 = vrot.slane %v1131, 2
      %v1133 = vsel %vm857, %v1131, %v1132
      %v1135 = vadd.f32 %v1110, %v1133
      %v1136 = vxor.u32 %v1135, 2147483648
      %v1137 = vmul.f32 %v1136, 1.442695
      %v1138 = vpow.pop %v1137
      %v1139 = vadd.f32 %v1138, 1.0
      %v1140 = vrcp.pop %v1139
      %v1141 = vmul.f32 1.0, %v1140
      %v1142 = vadd.f32 %v1043, %v900
      %v1143 = vadd.f32 %v1082, %v904
      %v1146 = vcombine.low %v1142, %v1143
      %v1148 = vunpack.c.l.s4 1983009808
      %v1149 = vunpack.c.0.s8 %v1148
      %v1150 = vlaneseq
      %v1151 = vshrl.u32 %v1150, 7
      %v1152 = vsub.s32 %v1149, %v1151
      %v1153 = vrot.slane %v1146, %v1152
      %1154 = vrot.lane.b32.xlu0 %v1153, 112
      %v1155 = vpop.permute.xlu0 %1154
      %v1156 = vrot.slane %v1155, 2
      %v1157 = vsel %vm922, %v1155, %v1156
      %v1159 = vmul.f32 %v1104, %v1157
      %1161 = vrot.lane.b32.xlu0 %v947, 112
      %v1162 = vpop.permute.xlu0 %1161
      %1163 = vrot.lane.b32.xlu0 %v948, 112
      %v1164 = vpop.permute.xlu0 %1163
      %v1165 = vrot.slane %v1162, 6
      %v1166 = vrot.slane %v1164, 6
      %v1167 = vsel %vm933, %v1165, %v1166
      %v1168 = vsel %vm922, %v1167, %v1164
      %v1170 = vadd.f32 %v1168, %v1159
      %v1171 = vtanh.pop %v1170
      %v1172 = vsub.f32 1.0, %v1141
      %v1173 = vmul.f32 %v1172, %v1171
      %v1174 = vmul.f32 %v1141, %v942
      %v1175 = vadd.f32 %v1173, %v1174
      %s1176 = smul.u32 %s346, 2
      %s1177 = sadd.s32 %s347, %s1176
      %s1178 = smul.u32 %s1177, 5
      %s1179 = smul.addr %s1178, 2
      %s1180 = scalar_lea.vmem %s241, %s1179
      %v1181 = vld [vmem:[%s1180] sm:$0xff]
      %v1182 = vld [vmem:[%s1180 + $0x8] sm:$0x3]
      %v1185 = vunpack.c.l.s4 1983009808
      %v1186 = vunpack.c.0.s8 %v1185
      %v1187 = vlaneseq
      %v1188 = vshrl.u32 %v1187, 7
      %v1189 = vsub.s32 %v1186, %v1188
      %v1190 = vrot.slane %v1175, %v1189
      %v1191 = vcombine.high %v1190, %v1190
      %v1194 = vpack.c.bf16 %v1190, %v1190
      %v1195 = vpack.c.bf16 %v1191, %v1191
      %v1197 = vsel %vm692, %v1195, 0
      %1199 = vmatprep.subr.bf16.mxu0 %v568
      %1200 = vmatpush1.bf16.msra.mxu0 %v567
      %1201 = vmatprep.subr.bf16.mxu0 %v573
      %1202 = vmatpush1.bf16.msra.mxu0 %v572
      %1203 = vmatprep.subr.bf16.mxu0 %v578
      %1204 = vmatpush1.bf16.msra.mxu0 %v577
      %1205 = vmatprep.subr.bf16.mxu0 %v583
      %1206 = vmatpush1.bf16.msra.mxu0 %v582
      %1207 = vmatprep.subr.bf16.mxu0 %v588
      %1208 = vmatpush1.bf16.msra.mxu0 %v587
      %1209 = vmatprep.subr.bf16.mxu0 %v593
      %1210 = vmatpush1.bf16.msra.mxu0 %v592
      %1211 = vmatprep.subr.bf16.mxu0 %v598
      %1212 = vmatpush1.bf16.msra.mxu0 %v597
      %1213 = vmatprep.subr.bf16.mxu0 %v603
      %1214 = vmatpush1.bf16.msra.mxu0 %v602
      %1215 = vmatprep.subr.bf16.mxu0 %v608
      %1216 = vmatpush1.bf16.msra.mxu0 %v607
      %1217 = vmatprep.subr.bf16.mxu0 %v613
      %1218 = vmatpush1.bf16.msra.mxu0 %v612
      %1219 = vmatprep.subr.bf16.mxu0 %v618
      %1220 = vmatpush1.bf16.msra.mxu0 %v617
      %1221 = vmatprep.subr.bf16.mxu0 %v623
      %1222 = vmatpush1.bf16.msra.mxu0 %v622
      %1223 = vmatprep.subr.bf16.mxu0 %v701
      %1224 = vmatpush1.bf16.msra.mxu0 %v698
      %1225 = vmatprep.subr.bf16.mxu0 0
      %1226 = vmatpush1.bf16.msra.mxu0 0
      %1227 = vmatprep.subr.bf16.mxu0 0
      %1228 = vmatpush1.bf16.msra.mxu0 0
      %1229 = vmatprep.subr.bf16.mxu0 0
      %1230 = vmatpush1.bf16.msra.mxu0 0
      %1231 = vmatprep.mubr.bf16.mxu0 %v1197
      %1232 = vmatmul.mubr.bf16.gmra.mrb[0].mxu0 %v1194
      %v1233 = vpop.f32.mrb[0].mxu0
      %v1234 = vadd.f32 0.0, %v1233
      %v1235 = vpop.f32.mrb[0].mxu0
      %v1236 = vadd.f32 0.0, %v1235
      %v1237 = vpop.f32.mrb[0].mxu0
      %v1238 = vpop.f32.mrb[0].mxu0
      %1239 = vdwg.mxu0
      %1240 = vmatprep.subr.bf16.mxu0 %v570
      %1241 = vmatpush1.bf16.msra.mxu0 %v569
      %1242 = vmatprep.subr.bf16.mxu0 %v575
      %1243 = vmatpush1.bf16.msra.mxu0 %v574
      %1244 = vmatprep.subr.bf16.mxu0 %v580
      %1245 = vmatpush1.bf16.msra.mxu0 %v579
      %1246 = vmatprep.subr.bf16.mxu0 %v585
      %1247 = vmatpush1.bf16.msra.mxu0 %v584
      %1248 = vmatprep.subr.bf16.mxu0 %v590
      %1249 = vmatpush1.bf16.msra.mxu0 %v589
      %1250 = vmatprep.subr.bf16.mxu0 %v595
      %1251 = vmatpush1.bf16.msra.mxu0 %v594
      %1252 = vmatprep.subr.bf16.mxu0 %v600
      %1253 = vmatpush1.bf16.msra.mxu0 %v599
      %1254 = vmatprep.subr.bf16.mxu0 %v605
      %1255 = vmatpush1.bf16.msra.mxu0 %v604
      %1256 = vmatprep.subr.bf16.mxu0 %v610
      %1257 = vmatpush1.bf16.msra.mxu0 %v609
      %1258 = vmatprep.subr.bf16.mxu0 %v615
      %1259 = vmatpush1.bf16.msra.mxu0 %v614
      %1260 = vmatprep.subr.bf16.mxu0 %v620
      %1261 = vmatpush1.bf16.msra.mxu0 %v619
      %1262 = vmatprep.subr.bf16.mxu0 %v625
      %1263 = vmatpush1.bf16.msra.mxu0 %v624
      %1264 = vmatprep.subr.bf16.mxu0 %v707
      %1265 = vmatpush1.bf16.msra.mxu0 %v704
      %1266 = vmatprep.subr.bf16.mxu0 0
      %1267 = vmatpush1.bf16.msra.mxu0 0
      %1268 = vmatprep.subr.bf16.mxu0 0
      %1269 = vmatpush1.bf16.msra.mxu0 0
      %1270 = vmatprep.subr.bf16.mxu0 0
      %1271 = vmatpush1.bf16.msra.mxu0 0
      %1272 = vmatprep.mubr.bf16.mxu0 %v1197
      %1273 = vmatmul.mubr.bf16.gmra.mrb[0].mxu0 %v1194
      %v1274 = vpop.f32.mrb[0].mxu0
      %v1275 = vadd.f32 0.0, %v1274
      %v1276 = vpop.f32.mrb[0].mxu0
      %v1277 = vadd.f32 0.0, %v1276
      %v1278 = vpop.f32.mrb[0].mxu0
      %v1279 = vpop.f32.mrb[0].mxu0
      %1280 = vdwg.mxu0
      %1281 = vmatprep.subr.bf16.mxu0 0
      %1282 = vmatpush1.bf16.msra.mxu0 %v571
      %1283 = vmatprep.subr.bf16.mxu0 0
      %1284 = vmatpush1.bf16.msra.mxu0 %v576
      %1285 = vmatprep.subr.bf16.mxu0 0
      %1286 = vmatpush1.bf16.msra.mxu0 %v581
      %1287 = vmatprep.subr.bf16.mxu0 0
      %1288 = vmatpush1.bf16.msra.mxu0 %v586
      %1289 = vmatprep.subr.bf16.mxu0 0
      %1290 = vmatpush1.bf16.msra.mxu0 %v591
      %1291 = vmatprep.subr.bf16.mxu0 0
      %1292 = vmatpush1.bf16.msra.mxu0 %v596
      %1293 = vmatprep.subr.bf16.mxu0 0
      %1294 = vmatpush1.bf16.msra.mxu0 %v601
      %1295 = vmatprep.subr.bf16.mxu0 0
      %1296 = vmatpush1.bf16.msra.mxu0 %v606
      %1297 = vmatprep.subr.bf16.mxu0 0
      %1298 = vmatpush1.bf16.msra.mxu0 %v611
      %1299 = vmatprep.subr.bf16.mxu0 0
      %1300 = vmatpush1.bf16.msra.mxu0 %v616
      %1301 = vmatprep.subr.bf16.mxu0 0
      %1302 = vmatpush1.bf16.msra.mxu0 %v621
      %1303 = vmatprep.subr.bf16.mxu0 0
      %1304 = vmatpush1.bf16.msra.mxu0 %v626
      %1305 = vmatprep.subr.bf16.mxu0 0
      %1306 = vmatpush1.bf16.msra.mxu0 %v710
      %1307 = vmatprep.subr.bf16.mxu0 0
      %1308 = vmatpush1.bf16.msra.mxu0 0
      %1309 = vmatprep.subr.bf16.mxu0 0
      %1310 = vmatpush1.bf16.msra.mxu0 0
      %1311 = vmatprep.subr.bf16.mxu0 0
      %1312 = vmatpush1.bf16.msra.mxu0 0
      %1313 = vmatprep.mubr.bf16.mxu0 %v1197
      %1314 = vmatmul.mubr.bf16.gmra.mrb[0].mxu0 %v1194
      %v1315 = vpop.f32.mrb[0].mxu0
      %v1316 = vadd.f32 0.0, %v1315
      %v1317 = vpop.f32.mrb[0].mxu0
      %v1318 = vpop.f32.mrb[0].mxu0
      %v1319 = vpop.f32.mrb[0].mxu0
      %1320 = vdwg.mxu0
      %v1323 = vcombine.low %v1234, %v1236
      %v1325 = vunpack.c.l.s4 1983009808
      %v1326 = vunpack.c.0.s8 %v1325
      %v1327 = vlaneseq
      %v1328 = vshrl.u32 %v1327, 7
      %v1329 = vsub.s32 %v1326, %v1328
      %v1330 = vrot.slane %v1323, %v1329
      %v1332 = vadd.f32 %v1181, %v1330
      %v1333 = vxor.u32 %v1332, 2147483648
      %v1334 = vmul.f32 %v1333, 1.442695
      %v1335 = vpow.pop %v1334
      %v1336 = vadd.f32 %v1335, 1.0
      %v1337 = vrcp.pop %v1336
      %v1338 = vmul.f32 1.0, %v1337
      %1340 = vrot.lane.b32.xlu0 %v1181, 56
      %v1341 = vpop.permute.xlu0 %1340
      %v1342 = vrot.slane %v1341, 2
      %v1343 = vrot.slane %v1341, 4
      %v1344 = vsel %vm857, %v1342, %v1343
      %v1348 = vcombine.low %v1236, %v1275
      %v1350 = vunpack.c.l.s4 1983009808
      %v1351 = vunpack.c.0.s8 %v1350
      %v1352 = vlaneseq
      %v1353 = vshrl.u32 %v1352, 7
      %v1354 = vsub.s32 %v1351, %v1353
      %v1355 = vrot.slane %v1348, %v1354
      %v1357 = vunpack.c.l.s4 1983009808
      %v1358 = vunpack.c.0.s8 %v1357
      %v1359 = vlaneseq
      %v1360 = vshrl.u32 %v1359, 7
      %v1361 = vsub.s32 %v1358, %v1360
      %v1362 = vrot.slane %v1277, %v1361
      %v1363 = vcombine.low %v1355, %v1362
      %1364 = vrot.lane.b32.xlu0 %v1363, 56
      %v1365 = vpop.permute.xlu0 %1364
      %v1366 = vrot.slane %v1365, 2
      %v1367 = vsel %vm857, %v1365, %v1366
      %v1369 = vadd.f32 %v1344, %v1367
      %v1370 = vxor.u32 %v1369, 2147483648
      %v1371 = vmul.f32 %v1370, 1.442695
      %v1372 = vpow.pop %v1371
      %v1373 = vadd.f32 %v1372, 1.0
      %v1374 = vrcp.pop %v1373
      %v1375 = vmul.f32 1.0, %v1374
      %v1376 = vadd.f32 %v1277, %v900
      %v1377 = vadd.f32 %v1316, %v904
      %v1380 = vcombine.low %v1376, %v1377
      %v1382 = vunpack.c.l.s4 1983009808
      %v1383 = vunpack.c.0.s8 %v1382
      %v1384 = vlaneseq
      %v1385 = vshrl.u32 %v1384, 7
      %v1386 = vsub.s32 %v1383, %v1385
      %v1387 = vrot.slane %v1380, %v1386
      %1388 = vrot.lane.b32.xlu0 %v1387, 112
      %v1389 = vpop.permute.xlu0 %1388
      %v1390 = vrot.slane %v1389, 2
      %v1391 = vsel %vm922, %v1389, %v1390
      %v1393 = vmul.f32 %v1338, %v1391
      %1395 = vrot.lane.b32.xlu0 %v1181, 112
      %v1396 = vpop.permute.xlu0 %1395
      %1397 = vrot.lane.b32.xlu0 %v1182, 112
      %v1398 = vpop.permute.xlu0 %1397
      %v1399 = vrot.slane %v1396, 6
      %v1400 = vrot.slane %v1398, 6
      %v1401 = vsel %vm933, %v1399, %v1400
      %v1402 = vsel %vm922, %v1401, %v1398
      %v1404 = vadd.f32 %v1402, %v1393
      %v1405 = vtanh.pop %v1404
      %v1406 = vsub.f32 1.0, %v1375
      %v1407 = vmul.f32 %v1406, %v1405
      %v1408 = vmul.f32 %v1375, %v1175
      %v1409 = vadd.f32 %v1407, %v1408
      %s1410 = smul.u32 %s346, 3
      %s1411 = sadd.s32 %s347, %s1410
      %s1412 = smul.u32 %s1411, 5
      %s1413 = smul.addr %s1412, 2
      %s1414 = scalar_lea.vmem %s241, %s1413
      %v1415 = vld [vmem:[%s1414] sm:$0xff]
      %v1416 = vld [vmem:[%s1414 + $0x8] sm:$0x3]
      %v1419 = vunpack.c.l.s4 1983009808
      %v1420 = vunpack.c.0.s8 %v1419
      %v1421 = vlaneseq
      %v1422 = vshrl.u32 %v1421, 7
      %v1423 = vsub.s32 %v1420, %v1422
      %v1424 = vrot.slane %v1409, %v1423
      %v1425 = vcombine.high %v1424, %v1424
      %v1428 = vpack.c.bf16 %v1424, %v1424
      %v1429 = vpack.c.bf16 %v1425, %v1425
      %v1431 = vsel %vm692, %v1429, 0
      %1433 = vmatprep.subr.bf16.mxu0 %v568
      %1434 = vmatpush1.bf16.msra.mxu0 %v567
      %1435 = vmatprep.subr.bf16.mxu0 %v573
      %1436 = vmatpush1.bf16.msra.mxu0 %v572
      %1437 = vmatprep.subr.bf16.mxu0 %v578
      %1438 = vmatpush1.bf16.msra.mxu0 %v577
      %1439 = vmatprep.subr.bf16.mxu0 %v583
      %1440 = vmatpush1.bf16.msra.mxu0 %v582
      %1441 = vmatprep.subr.bf16.mxu0 %v588
      %1442 = vmatpush1.bf16.msra.mxu0 %v587
      %1443 = vmatprep.subr.bf16.mxu0 %v593
      %1444 = vmatpush1.bf16.msra.mxu0 %v592
      %1445 = vmatprep.subr.bf16.mxu0 %v598
      %1446 = vmatpush1.bf16.msra.mxu0 %v597
      %1447 = vmatprep.subr.bf16.mxu0 %v603
      %1448 = vmatpush1.bf16.msra.mxu0 %v602
      %1449 = vmatprep.subr.bf16.mxu0 %v608
      %1450 = vmatpush1.bf16.msra.mxu0 %v607
      %1451 = vmatprep.subr.bf16.mxu0 %v613
      %1452 = vmatpush1.bf16.msra.mxu0 %v612
      %1453 = vmatprep.subr.bf16.mxu0 %v618
      %1454 = vmatpush1.bf16.msra.mxu0 %v617
      %1455 = vmatprep.subr.bf16.mxu0 %v623
      %1456 = vmatpush1.bf16.msra.mxu0 %v622
      %1457 = vmatprep.subr.bf16.mxu0 %v701
      %1458 = vmatpush1.bf16.msra.mxu0 %v698
      %1459 = vmatprep.subr.bf16.mxu0 0
      %1460 = vmatpush1.bf16.msra.mxu0 0
      %1461 = vmatprep.subr.bf16.mxu0 0
      %1462 = vmatpush1.bf16.msra.mxu0 0
      %1463 = vmatprep.subr.bf16.mxu0 0
      %1464 = vmatpush1.bf16.msra.mxu0 0
      %1465 = vmatprep.mubr.bf16.mxu0 %v1431
      %1466 = vmatmul.mubr.bf16.gmra.mrb[0].mxu0 %v1428
      %v1467 = vpop.f32.mrb[0].mxu0
      %v1468 = vadd.f32 0.0, %v1467
      %v1469 = vpop.f32.mrb[0].mxu0
      %v1470 = vadd.f32 0.0, %v1469
      %v1471 = vpop.f32.mrb[0].mxu0
      %v1472 = vpop.f32.mrb[0].mxu0
      %1473 = vdwg.mxu0
      %1474 = vmatprep.subr.bf16.mxu0 %v570
      %1475 = vmatpush1.bf16.msra.mxu0 %v569
      %1476 = vmatprep.subr.bf16.mxu0 %v575
      %1477 = vmatpush1.bf16.msra.mxu0 %v574
      %1478 = vmatprep.subr.bf16.mxu0 %v580
      %1479 = vmatpush1.bf16.msra.mxu0 %v579
      %1480 = vmatprep.subr.bf16.mxu0 %v585
      %1481 = vmatpush1.bf16.msra.mxu0 %v584
      %1482 = vmatprep.subr.bf16.mxu0 %v590
      %1483 = vmatpush1.bf16.msra.mxu0 %v589
      %1484 = vmatprep.subr.bf16.mxu0 %v595
      %1485 = vmatpush1.bf16.msra.mxu0 %v594
      %1486 = vmatprep.subr.bf16.mxu0 %v600
      %1487 = vmatpush1.bf16.msra.mxu0 %v599
      %1488 = vmatprep.subr.bf16.mxu0 %v605
      %1489 = vmatpush1.bf16.msra.mxu0 %v604
      %1490 = vmatprep.subr.bf16.mxu0 %v610
      %1491 = vmatpush1.bf16.msra.mxu0 %v609
      %1492 = vmatprep.subr.bf16.mxu0 %v615
      %1493 = vmatpush1.bf16.msra.mxu0 %v614
      %1494 = vmatprep.subr.bf16.mxu0 %v620
      %1495 = vmatpush1.bf16.msra.mxu0 %v619
      %1496 = vmatprep.subr.bf16.mxu0 %v625
      %1497 = vmatpush1.bf16.msra.mxu0 %v624
      %1498 = vmatprep.subr.bf16.mxu0 %v707
      %1499 = vmatpush1.bf16.msra.mxu0 %v704
      %1500 = vmatprep.subr.bf16.mxu0 0
      %1501 = vmatpush1.bf16.msra.mxu0 0
      %1502 = vmatprep.subr.bf16.mxu0 0
      %1503 = vmatpush1.bf16.msra.mxu0 0
      %1504 = vmatprep.subr.bf16.mxu0 0
      %1505 = vmatpush1.bf16.msra.mxu0 0
      %1506 = vmatprep.mubr.bf16.mxu0 %v1431
      %1507 = vmatmul.mubr.bf16.gmra.mrb[0].mxu0 %v1428
      %v1508 = vpop.f32.mrb[0].mxu0
      %v1509 = vadd.f32 0.0, %v1508
      %v1510 = vpop.f32.mrb[0].mxu0
      %v1511 = vadd.f32 0.0, %v1510
      %v1512 = vpop.f32.mrb[0].mxu0
      %v1513 = vpop.f32.mrb[0].mxu0
      %1514 = vdwg.mxu0
      %1515 = vmatprep.subr.bf16.mxu0 0
      %1516 = vmatpush1.bf16.msra.mxu0 %v571
      %1517 = vmatprep.subr.bf16.mxu0 0
      %1518 = vmatpush1.bf16.msra.mxu0 %v576
      %1519 = vmatprep.subr.bf16.mxu0 0
      %1520 = vmatpush1.bf16.msra.mxu0 %v581
      %1521 = vmatprep.subr.bf16.mxu0 0
      %1522 = vmatpush1.bf16.msra.mxu0 %v586
      %1523 = vmatprep.subr.bf16.mxu0 0
      %1524 = vmatpush1.bf16.msra.mxu0 %v591
      %1525 = vmatprep.subr.bf16.mxu0 0
      %1526 = vmatpush1.bf16.msra.mxu0 %v596
      %1527 = vmatprep.subr.bf16.mxu0 0
      %1528 = vmatpush1.bf16.msra.mxu0 %v601
      %1529 = vmatprep.subr.bf16.mxu0 0
      %1530 = vmatpush1.bf16.msra.mxu0 %v606
      %1531 = vmatprep.subr.bf16.mxu0 0
      %1532 = vmatpush1.bf16.msra.mxu0 %v611
      %1533 = vmatprep.subr.bf16.mxu0 0
      %1534 = vmatpush1.bf16.msra.mxu0 %v616
      %1535 = vmatprep.subr.bf16.mxu0 0
      %1536 = vmatpush1.bf16.msra.mxu0 %v621
      %1537 = vmatprep.subr.bf16.mxu0 0
      %1538 = vmatpush1.bf16.msra.mxu0 %v626
      %1539 = vmatprep.subr.bf16.mxu0 0
      %1540 = vmatpush1.bf16.msra.mxu0 %v710
      %1541 = vmatprep.subr.bf16.mxu0 0
      %1542 = vmatpush1.bf16.msra.mxu0 0
      %1543 = vmatprep.subr.bf16.mxu0 0
      %1544 = vmatpush1.bf16.msra.mxu0 0
      %1545 = vmatprep.subr.bf16.mxu0 0
      %1546 = vmatpush1.bf16.msra.mxu0 0
      %1547 = vmatprep.mubr.bf16.mxu0 %v1431
      %1548 = vmatmul.mubr.bf16.gmra.mrb[0].mxu0 %v1428
      %v1549 = vpop.f32.mrb[0].mxu0
      %v1550 = vadd.f32 0.0, %v1549
      %v1551 = vpop.f32.mrb[0].mxu0
      %v1552 = vpop.f32.mrb[0].mxu0
      %v1553 = vpop.f32.mrb[0].mxu0
      %1554 = vdwg.mxu0
      %v1557 = vcombine.low %v1468, %v1470
      %v1559 = vunpack.c.l.s4 1983009808
      %v1560 = vunpack.c.0.s8 %v1559
      %v1561 = vlaneseq
      %v1562 = vshrl.u32 %v1561, 7
      %v1563 = vsub.s32 %v1560, %v1562
      %v1564 = vrot.slane %v1557, %v1563
      %v1566 = vadd.f32 %v1415, %v1564
      %v1567 = vxor.u32 %v1566, 2147483648
      %v1568 = vmul.f32 %v1567, 1.442695
      %v1569 = vpow.pop %v1568
      %v1570 = vadd.f32 %v1569, 1.0
      %v1571 = vrcp.pop %v1570
      %v1572 = vmul.f32 1.0, %v1571
      %1574 = vrot.lane.b32.xlu0 %v1415, 56
      %v1575 = vpop.permute.xlu0 %1574
      %v1576 = vrot.slane %v1575, 2
      %v1577 = vrot.slane %v1575, 4
      %v1578 = vsel %vm857, %v1576, %v1577
      %v1582 = vcombine.low %v1470, %v1509
      %v1584 = vunpack.c.l.s4 1983009808
      %v1585 = vunpack.c.0.s8 %v1584
      %v1586 = vlaneseq
      %v1587 = vshrl.u32 %v1586, 7
      %v1588 = vsub.s32 %v1585, %v1587
      %v1589 = vrot.slane %v1582, %v1588
      %v1591 = vunpack.c.l.s4 1983009808
      %v1592 = vunpack.c.0.s8 %v1591
      %v1593 = vlaneseq
      %v1594 = vshrl.u32 %v1593, 7
      %v1595 = vsub.s32 %v1592, %v1594
      %v1596 = vrot.slane %v1511, %v1595
      %v1597 = vcombine.low %v1589, %v1596
      %1598 = vrot.lane.b32.xlu0 %v1597, 56
      %v1599 = vpop.permute.xlu0 %1598
      %v1600 = vrot.slane %v1599, 2
      %v1601 = vsel %vm857, %v1599, %v1600
      %v1603 = vadd.f32 %v1578, %v1601
      %v1604 = vxor.u32 %v1603, 2147483648
      %v1605 = vmul.f32 %v1604, 1.442695
      %v1606 = vpow.pop %v1605
      %v1607 = vadd.f32 %v1606, 1.0
      %v1608 = vrcp.pop %v1607
      %v1609 = vmul.f32 1.0, %v1608
      %v1610 = vadd.f32 %v1511, %v900
      %v1611 = vadd.f32 %v1550, %v904
      %v1614 = vcombine.low %v1610, %v1611
      %v1616 = vunpack.c.l.s4 1983009808
      %v1617 = vunpack.c.0.s8 %v1616
      %v1618 = vlaneseq
      %v1619 = vshrl.u32 %v1618, 7
      %v1620 = vsub.s32 %v1617, %v1619
      %v1621 = vrot.slane %v1614, %v1620
      %1622 = vrot.lane.b32.xlu0 %v1621, 112
      %v1623 = vpop.permute.xlu0 %1622
      %v1624 = vrot.slane %v1623, 2
      %v1625 = vsel %vm922, %v1623, %v1624
      %v1627 = vmul.f32 %v1572, %v1625
      %1629 = vrot.lane.b32.xlu0 %v1415, 112
      %v1630 = vpop.permute.xlu0 %1629
      %1631 = vrot.lane.b32.xlu0 %v1416, 112
      %v1632 = vpop.permute.xlu0 %1631
      %v1633 = vrot.slane %v1630, 6
      %v1634 = vrot.slane %v1632, 6
      %v1635 = vsel %vm933, %v1633, %v1634
      %v1636 = vsel %vm922, %v1635, %v1632
      %v1638 = vadd.f32 %v1636, %v1627
      %v1639 = vtanh.pop %v1638
      %v1640 = vsub.f32 1.0, %v1609
      %v1641 = vmul.f32 %v1640, %v1639
      %v1642 = vmul.f32 %v1609, %v1409
      %v1643 = vadd.f32 %v1641, %v1642
      %s1644 = smul.u32 %s346, 4
      %s1645 = sadd.s32 %s347, %s1644
      %s1646 = smul.u32 %s1645, 5
      %s1647 = smul.addr %s1646, 2
      %s1648 = scalar_lea.vmem %s241, %s1647
      %v1649 = vld [vmem:[%s1648] sm:$0xff]
      %v1650 = vld [vmem:[%s1648 + $0x8] sm:$0x3]
      %v1653 = vunpack.c.l.s4 1983009808
      %v1654 = vunpack.c.0.s8 %v1653
      %v1655 = vlaneseq
      %v1656 = vshrl.u32 %v1655, 7
      %v1657 = vsub.s32 %v1654, %v1656
      %v1658 = vrot.slane %v1643, %v1657
      %v1659 = vcombine.high %v1658, %v1658
      %v1662 = vpack.c.bf16 %v1658, %v1658
      %v1663 = vpack.c.bf16 %v1659, %v1659
      %v1665 = vsel %vm692, %v1663, 0
      %1667 = vmatprep.subr.bf16.mxu0 %v568
      %1668 = vmatpush1.bf16.msra.mxu0 %v567
      %1669 = vmatprep.subr.bf16.mxu0 %v573
      %1670 = vmatpush1.bf16.msra.mxu0 %v572
      %1671 = vmatprep.subr.bf16.mxu0 %v578
      %1672 = vmatpush1.bf16.msra.mxu0 %v577
      %1673 = vmatprep.subr.bf16.mxu0 %v583
      %1674 = vmatpush1.bf16.msra.mxu0 %v582
      %1675 = vmatprep.subr.bf16.mxu0 %v588
      %1676 = vmatpush1.bf16.msra.mxu0 %v587
      %1677 = vmatprep.subr.bf16.mxu0 %v593
      %1678 = vmatpush1.bf16.msra.mxu0 %v592
      %1679 = vmatprep.subr.bf16.mxu0 %v598
      %1680 = vmatpush1.bf16.msra.mxu0 %v597
      %1681 = vmatprep.subr.bf16.mxu0 %v603
      %1682 = vmatpush1.bf16.msra.mxu0 %v602
      %1683 = vmatprep.subr.bf16.mxu0 %v608
      %1684 = vmatpush1.bf16.msra.mxu0 %v607
      %1685 = vmatprep.subr.bf16.mxu0 %v613
      %1686 = vmatpush1.bf16.msra.mxu0 %v612
      %1687 = vmatprep.subr.bf16.mxu0 %v618
      %1688 = vmatpush1.bf16.msra.mxu0 %v617
      %1689 = vmatprep.subr.bf16.mxu0 %v623
      %1690 = vmatpush1.bf16.msra.mxu0 %v622
      %1691 = vmatprep.subr.bf16.mxu0 %v701
      %1692 = vmatpush1.bf16.msra.mxu0 %v698
      %1693 = vmatprep.subr.bf16.mxu0 0
      %1694 = vmatpush1.bf16.msra.mxu0 0
      %1695 = vmatprep.subr.bf16.mxu0 0
      %1696 = vmatpush1.bf16.msra.mxu0 0
      %1697 = vmatprep.subr.bf16.mxu0 0
      %1698 = vmatpush1.bf16.msra.mxu0 0
      %1699 = vmatprep.mubr.bf16.mxu0 %v1665
      %1700 = vmatmul.mubr.bf16.gmra.mrb[0].mxu0 %v1662
      %v1701 = vpop.f32.mrb[0].mxu0
      %v1702 = vadd.f32 0.0, %v1701
      %v1703 = vpop.f32.mrb[0].mxu0
      %v1704 = vadd.f32 0.0, %v1703
      %v1705 = vpop.f32.mrb[0].mxu0
      %v1706 = vpop.f32.mrb[0].mxu0
      %1707 = vdwg.mxu0
      %1708 = vmatprep.subr.bf16.mxu0 %v570
      %1709 = vmatpush1.bf16.msra.mxu0 %v569
      %1710 = vmatprep.subr.bf16.mxu0 %v575
      %1711 = vmatpush1.bf16.msra.mxu0 %v574
      %1712 = vmatprep.subr.bf16.mxu0 %v580
      %1713 = vmatpush1.bf16.msra.mxu0 %v579
      %1714 = vmatprep.subr.bf16.mxu0 %v585
      %1715 = vmatpush1.bf16.msra.mxu0 %v584
      %1716 = vmatprep.subr.bf16.mxu0 %v590
      %1717 = vmatpush1.bf16.msra.mxu0 %v589
      %1718 = vmatprep.subr.bf16.mxu0 %v595
      %1719 = vmatpush1.bf16.msra.mxu0 %v594
      %1720 = vmatprep.subr.bf16.mxu0 %v600
      %1721 = vmatpush1.bf16.msra.mxu0 %v599
      %1722 = vmatprep.subr.bf16.mxu0 %v605
      %1723 = vmatpush1.bf16.msra.mxu0 %v604
      %1724 = vmatprep.subr.bf16.mxu0 %v610
      %1725 = vmatpush1.bf16.msra.mxu0 %v609
      %1726 = vmatprep.subr.bf16.mxu0 %v615
      %1727 = vmatpush1.bf16.msra.mxu0 %v614
      %1728 = vmatprep.subr.bf16.mxu0 %v620
      %1729 = vmatpush1.bf16.msra.mxu0 %v619
      %1730 = vmatprep.subr.bf16.mxu0 %v625
      %1731 = vmatpush1.bf16.msra.mxu0 %v624
      %1732 = vmatprep.subr.bf16.mxu0 %v707
      %1733 = vmatpush1.bf16.msra.mxu0 %v704
      %1734 = vmatprep.subr.bf16.mxu0 0
      %1735 = vmatpush1.bf16.msra.mxu0 0
      %1736 = vmatprep.subr.bf16.mxu0 0
      %1737 = vmatpush1.bf16.msra.mxu0 0
      %1738 = vmatprep.subr.bf16.mxu0 0
      %1739 = vmatpush1.bf16.msra.mxu0 0
      %1740 = vmatprep.mubr.bf16.mxu0 %v1665
      %1741 = vmatmul.mubr.bf16.gmra.mrb[0].mxu0 %v1662
      %v1742 = vpop.f32.mrb[0].mxu0
      %v1743 = vadd.f32 0.0, %v1742
      %v1744 = vpop.f32.mrb[0].mxu0
      %v1745 = vadd.f32 0.0, %v1744
      %v1746 = vpop.f32.mrb[0].mxu0
      %v1747 = vpop.f32.mrb[0].mxu0
      %1748 = vdwg.mxu0
      %1749 = vmatprep.subr.bf16.mxu0 0
      %1750 = vmatpush1.bf16.msra.mxu0 %v571
      %1751 = vmatprep.subr.bf16.mxu0 0
      %1752 = vmatpush1.bf16.msra.mxu0 %v576
      %1753 = vmatprep.subr.bf16.mxu0 0
      %1754 = vmatpush1.bf16.msra.mxu0 %v581
      %1755 = vmatprep.subr.bf16.mxu0 0
      %1756 = vmatpush1.bf16.msra.mxu0 %v586
      %1757 = vmatprep.subr.bf16.mxu0 0
      %1758 = vmatpush1.bf16.msra.mxu0 %v591
      %1759 = vmatprep.subr.bf16.mxu0 0
      %1760 = vmatpush1.bf16.msra.mxu0 %v596
      %1761 = vmatprep.subr.bf16.mxu0 0
      %1762 = vmatpush1.bf16.msra.mxu0 %v601
      %1763 = vmatprep.subr.bf16.mxu0 0
      %1764 = vmatpush1.bf16.msra.mxu0 %v606
      %1765 = vmatprep.subr.bf16.mxu0 0
      %1766 = vmatpush1.bf16.msra.mxu0 %v611
      %1767 = vmatprep.subr.bf16.mxu0 0
      %1768 = vmatpush1.bf16.msra.mxu0 %v616
      %1769 = vmatprep.subr.bf16.mxu0 0
      %1770 = vmatpush1.bf16.msra.mxu0 %v621
      %1771 = vmatprep.subr.bf16.mxu0 0
      %1772 = vmatpush1.bf16.msra.mxu0 %v626
      %1773 = vmatprep.subr.bf16.mxu0 0
      %1774 = vmatpush1.bf16.msra.mxu0 %v710
      %1775 = vmatprep.subr.bf16.mxu0 0
      %1776 = vmatpush1.bf16.msra.mxu0 0
      %1777 = vmatprep.subr.bf16.mxu0 0
      %1778 = vmatpush1.bf16.msra.mxu0 0
      %1779 = vmatprep.subr.bf16.mxu0 0
      %1780 = vmatpush1.bf16.msra.mxu0 0
      %1781 = vmatprep.mubr.bf16.mxu0 %v1665
      %1782 = vmatmul.mubr.bf16.gmra.mrb[0].mxu0 %v1662
      %v1783 = vpop.f32.mrb[0].mxu0
      %v1784 = vadd.f32 0.0, %v1783
      %v1785 = vpop.f32.mrb[0].mxu0
      %v1786 = vpop.f32.mrb[0].mxu0
      %v1787 = vpop.f32.mrb[0].mxu0
      %1788 = vdwg.mxu0
      %v1791 = vcombine.low %v1702, %v1704
      %v1793 = vunpack.c.l.s4 1983009808
      %v1794 = vunpack.c.0.s8 %v1793
      %v1795 = vlaneseq
      %v1796 = vshrl.u32 %v1795, 7
      %v1797 = vsub.s32 %v1794, %v1796
      %v1798 = vrot.slane %v1791, %v1797
      %v1800 = vadd.f32 %v1649, %v1798
      %v1801 = vxor.u32 %v1800, 2147483648
      %v1802 = vmul.f32 %v1801, 1.442695
      %v1803 = vpow.pop %v1802
      %v1804 = vadd.f32 %v1803, 1.0
      %v1805 = vrcp.pop %v1804
      %v1806 = vmul.f32 1.0, %v1805
      %1808 = vrot.lane.b32.xlu0 %v1649, 56
      %v1809 = vpop.permute.xlu0 %1808
      %v1810 = vrot.slane %v1809, 2
      %v1811 = vrot.slane %v1809, 4
      %v1812 = vsel %vm857, %v1810, %v1811
      %v1816 = vcombine.low %v1704, %v1743
      %v1818 = vunpack.c.l.s4 1983009808
      %v1819 = vunpack.c.0.s8 %v1818
      %v1820 = vlaneseq
      %v1821 = vshrl.u32 %v1820, 7
      %v1822 = vsub.s32 %v1819, %v1821
      %v1823 = vrot.slane %v1816, %v1822
      %v1825 = vunpack.c.l.s4 1983009808
      %v1826 = vunpack.c.0.s8 %v1825
      %v1827 = vlaneseq
      %v1828 = vshrl.u32 %v1827, 7
      %v1829 = vsub.s32 %v1826, %v1828
      %v1830 = vrot.slane %v1745, %v1829
      %v1831 = vcombine.low %v1823, %v1830
      %1832 = vrot.lane.b32.xlu0 %v1831, 56
      %v1833 = vpop.permute.xlu0 %1832
      %v1834 = vrot.slane %v1833, 2
      %v1835 = vsel %vm857, %v1833, %v1834
      %v1837 = vadd.f32 %v1812, %v1835
      %v1838 = vxor.u32 %v1837, 2147483648
      %v1839 = vmul.f32 %v1838, 1.442695
      %v1840 = vpow.pop %v1839
      %v1841 = vadd.f32 %v1840, 1.0
      %v1842 = vrcp.pop %v1841
      %v1843 = vmul.f32 1.0, %v1842
      %v1844 = vadd.f32 %v1745, %v900
      %v1845 = vadd.f32 %v1784, %v904
      %v1848 = vcombine.low %v1844, %v1845
      %v1850 = vunpack.c.l.s4 1983009808
      %v1851 = vunpack.c.0.s8 %v1850
      %v1852 = vlaneseq
      %v1853 = vshrl.u32 %v1852, 7
      %v1854 = vsub.s32 %v1851, %v1853
      %v1855 = vrot.slane %v1848, %v1854
      %1856 = vrot.lane.b32.xlu0 %v1855, 112
      %v1857 = vpop.permute.xlu0 %1856
      %v1858 = vrot.slane %v1857, 2
      %v1859 = vsel %vm922, %v1857, %v1858
      %v1861 = vmul.f32 %v1806, %v1859
      %1863 = vrot.lane.b32.xlu0 %v1649, 112
      %v1864 = vpop.permute.xlu0 %1863
      %1865 = vrot.lane.b32.xlu0 %v1650, 112
      %v1866 = vpop.permute.xlu0 %1865
      %v1867 = vrot.slane %v1864, 6
      %v1868 = vrot.slane %v1866, 6
      %v1869 = vsel %vm933, %v1867, %v1868
      %v1870 = vsel %vm922, %v1869, %v1866
      %v1872 = vadd.f32 %v1870, %v1861
      %v1873 = vtanh.pop %v1872
      %v1874 = vsub.f32 1.0, %v1843
      %v1875 = vmul.f32 %v1874, %v1873
      %v1876 = vmul.f32 %v1843, %v1643
      %v1877 = vadd.f32 %v1875, %v1876
      %s1878 = smul.u32 %s346, 5
      %s1879 = sadd.s32 %s347, %s1878
      %s1880 = smul.u32 %s1879, 5
      %s1881 = smul.addr %s1880, 2
      %s1882 = scalar_lea.vmem %s241, %s1881
      %v1883 = vld [vmem:[%s1882] sm:$0xff]
      %v1884 = vld [vmem:[%s1882 + $0x8] sm:$0x3]
      %v1887 = vunpack.c.l.s4 1983009808
      %v1888 = vunpack.c.0.s8 %v1887
      %v1889 = vlaneseq
      %v1890 = vshrl.u32 %v1889, 7
      %v1891 = vsub.s32 %v1888, %v1890
      %v1892 = vrot.slane %v1877, %v1891
      %v1893 = vcombine.high %v1892, %v1892
      %v1896 = vpack.c.bf16 %v1892, %v1892
      %v1897 = vpack.c.bf16 %v1893, %v1893
      %v1899 = vsel %vm692, %v1897, 0
      %1901 = vmatprep.subr.bf16.mxu0 %v568
      %1902 = vmatpush1.bf16.msra.mxu0 %v567
      %1903 = vmatprep.subr.bf16.mxu0 %v573
      %1904 = vmatpush1.bf16.msra.mxu0 %v572
      %1905 = vmatprep.subr.bf16.mxu0 %v578
      %1906 = vmatpush1.bf16.msra.mxu0 %v577
      %1907 = vmatprep.subr.bf16.mxu0 %v583
      %1908 = vmatpush1.bf16.msra.mxu0 %v582
      %1909 = vmatprep.subr.bf16.mxu0 %v588
      %1910 = vmatpush1.bf16.msra.mxu0 %v587
      %1911 = vmatprep.subr.bf16.mxu0 %v593
      %1912 = vmatpush1.bf16.msra.mxu0 %v592
      %1913 = vmatprep.subr.bf16.mxu0 %v598
      %1914 = vmatpush1.bf16.msra.mxu0 %v597
      %1915 = vmatprep.subr.bf16.mxu0 %v603
      %1916 = vmatpush1.bf16.msra.mxu0 %v602
      %1917 = vmatprep.subr.bf16.mxu0 %v608
      %1918 = vmatpush1.bf16.msra.mxu0 %v607
      %1919 = vmatprep.subr.bf16.mxu0 %v613
      %1920 = vmatpush1.bf16.msra.mxu0 %v612
      %1921 = vmatprep.subr.bf16.mxu0 %v618
      %1922 = vmatpush1.bf16.msra.mxu0 %v617
      %1923 = vmatprep.subr.bf16.mxu0 %v623
      %1924 = vmatpush1.bf16.msra.mxu0 %v622
      %1925 = vmatprep.subr.bf16.mxu0 %v701
      %1926 = vmatpush1.bf16.msra.mxu0 %v698
      %1927 = vmatprep.subr.bf16.mxu0 0
      %1928 = vmatpush1.bf16.msra.mxu0 0
      %1929 = vmatprep.subr.bf16.mxu0 0
      %1930 = vmatpush1.bf16.msra.mxu0 0
      %1931 = vmatprep.subr.bf16.mxu0 0
      %1932 = vmatpush1.bf16.msra.mxu0 0
      %1933 = vmatprep.mubr.bf16.mxu0 %v1899
      %1934 = vmatmul.mubr.bf16.gmra.mrb[0].mxu0 %v1896
      %v1935 = vpop.f32.mrb[0].mxu0
      %v1936 = vadd.f32 0.0, %v1935
      %v1937 = vpop.f32.mrb[0].mxu0
      %v1938 = vadd.f32 0.0, %v1937
      %v1939 = vpop.f32.mrb[0].mxu0
      %v1940 = vpop.f32.mrb[0].mxu0
      %1941 = vdwg.mxu0
      %1942 = vmatprep.subr.bf16.mxu0 %v570
      %1943 = vmatpush1.bf16.msra.mxu0 %v569
      %1944 = vmatprep.subr.bf16.mxu0 %v575
      %1945 = vmatpush1.bf16.msra.mxu0 %v574
      %1946 = vmatprep.subr.bf16.mxu0 %v580
      %1947 = vmatpush1.bf16.msra.mxu0 %v579
      %1948 = vmatprep.subr.bf16.mxu0 %v585
      %1949 = vmatpush1.bf16.msra.mxu0 %v584
      %1950 = vmatprep.subr.bf16.mxu0 %v590
      %1951 = vmatpush1.bf16.msra.mxu0 %v589
      %1952 = vmatprep.subr.bf16.mxu0 %v595
      %1953 = vmatpush1.bf16.msra.mxu0 %v594
      %1954 = vmatprep.subr.bf16.mxu0 %v600
      %1955 = vmatpush1.bf16.msra.mxu0 %v599
      %1956 = vmatprep.subr.bf16.mxu0 %v605
      %1957 = vmatpush1.bf16.msra.mxu0 %v604
      %1958 = vmatprep.subr.bf16.mxu0 %v610
      %1959 = vmatpush1.bf16.msra.mxu0 %v609
      %1960 = vmatprep.subr.bf16.mxu0 %v615
      %1961 = vmatpush1.bf16.msra.mxu0 %v614
      %1962 = vmatprep.subr.bf16.mxu0 %v620
      %1963 = vmatpush1.bf16.msra.mxu0 %v619
      %1964 = vmatprep.subr.bf16.mxu0 %v625
      %1965 = vmatpush1.bf16.msra.mxu0 %v624
      %1966 = vmatprep.subr.bf16.mxu0 %v707
      %1967 = vmatpush1.bf16.msra.mxu0 %v704
      %1968 = vmatprep.subr.bf16.mxu0 0
      %1969 = vmatpush1.bf16.msra.mxu0 0
      %1970 = vmatprep.subr.bf16.mxu0 0
      %1971 = vmatpush1.bf16.msra.mxu0 0
      %1972 = vmatprep.subr.bf16.mxu0 0
      %1973 = vmatpush1.bf16.msra.mxu0 0
      %1974 = vmatprep.mubr.bf16.mxu0 %v1899
      %1975 = vmatmul.mubr.bf16.gmra.mrb[0].mxu0 %v1896
      %v1976 = vpop.f32.mrb[0].mxu0
      %v1977 = vadd.f32 0.0, %v1976
      %v1978 = vpop.f32.mrb[0].mxu0
      %v1979 = vadd.f32 0.0, %v1978
      %v1980 = vpop.f32.mrb[0].mxu0
      %v1981 = vpop.f32.mrb[0].mxu0
      %1982 = vdwg.mxu0
      %1983 = vmatprep.subr.bf16.mxu0 0
      %1984 = vmatpush1.bf16.msra.mxu0 %v571
      %1985 = vmatprep.subr.bf16.mxu0 0
      %1986 = vmatpush1.bf16.msra.mxu0 %v576
      %1987 = vmatprep.subr.bf16.mxu0 0
      %1988 = vmatpush1.bf16.msra.mxu0 %v581
      %1989 = vmatprep.subr.bf16.mxu0 0
      %1990 = vmatpush1.bf16.msra.mxu0 %v586
      %1991 = vmatprep.subr.bf16.mxu0 0
      %1992 = vmatpush1.bf16.msra.mxu0 %v591
      %1993 = vmatprep.subr.bf16.mxu0 0
      %1994 = vmatpush1.bf16.msra.mxu0 %v596
      %1995 = vmatprep.subr.bf16.mxu0 0
      %1996 = vmatpush1.bf16.msra.mxu0 %v601
      %1997 = vmatprep.subr.bf16.mxu0 0
      %1998 = vmatpush1.bf16.msra.mxu0 %v606
      %1999 = vmatprep.subr.bf16.mxu0 0
      %2000 = vmatpush1.bf16.msra.mxu0 %v611
      %2001 = vmatprep.subr.bf16.mxu0 0
      %2002 = vmatpush1.bf16.msra.mxu0 %v616
      %2003 = vmatprep.subr.bf16.mxu0 0
      %2004 = vmatpush1.bf16.msra.mxu0 %v621
      %2005 = vmatprep.subr.bf16.mxu0 0
      %2006 = vmatpush1.bf16.msra.mxu0 %v626
      %2007 = vmatprep.subr.bf16.mxu0 0
      %2008 = vmatpush1.bf16.msra.mxu0 %v710
      %2009 = vmatprep.subr.bf16.mxu0 0
      %2010 = vmatpush1.bf16.msra.mxu0 0
      %2011 = vmatprep.subr.bf16.mxu0 0
      %2012 = vmatpush1.bf16.msra.mxu0 0
      %2013 = vmatprep.subr.bf16.mxu0 0
      %2014 = vmatpush1.bf16.msra.mxu0 0
      %2015 = vmatprep.mubr.bf16.mxu0 %v1899
      %2016 = vmatmul.mubr.bf16.gmra.mrb[0].mxu0 %v1896
      %v2017 = vpop.f32.mrb[0].mxu0
      %v2018 = vadd.f32 0.0, %v2017
      %v2019 = vpop.f32.mrb[0].mxu0
      %v2020 = vpop.f32.mrb[0].mxu0
      %v2021 = vpop.f32.mrb[0].mxu0
      %2022 = vdwg.mxu0
      %v2025 = vcombine.low %v1936, %v1938
      %v2027 = vunpack.c.l.s4 1983009808
      %v2028 = vunpack.c.0.s8 %v2027
      %v2029 = vlaneseq
      %v2030 = vshrl.u32 %v2029, 7
      %v2031 = vsub.s32 %v2028, %v2030
      %v2032 = vrot.slane %v2025, %v2031
      %v2034 = vadd.f32 %v1883, %v2032
      %v2035 = vxor.u32 %v2034, 2147483648
      %v2036 = vmul.f32 %v2035, 1.442695
      %v2037 = vpow.pop %v2036
      %v2038 = vadd.f32 %v2037, 1.0
      %v2039 = vrcp.pop %v2038
      %v2040 = vmul.f32 1.0, %v2039
      %2042 = vrot.lane.b32.xlu0 %v1883, 56
      %v2043 = vpop.permute.xlu0 %2042
      %v2044 = vrot.slane %v2043, 2
      %v2045 = vrot.slane %v2043, 4
      %v2046 = vsel %vm857, %v2044, %v2045
      %v2050 = vcombine.low %v1938, %v1977
      %v2052 = vunpack.c.l.s4 1983009808
      %v2053 = vunpack.c.0.s8 %v2052
      %v2054 = vlaneseq
      %v2055 = vshrl.u32 %v2054, 7
      %v2056 = vsub.s32 %v2053, %v2055
      %v2057 = vrot.slane %v2050, %v2056
      %v2059 = vunpack.c.l.s4 1983009808
      %v2060 = vunpack.c.0.s8 %v2059
      %v2061 = vlaneseq
      %v2062 = vshrl.u32 %v2061, 7
      %v2063 = vsub.s32 %v2060, %v2062
      %v2064 = vrot.slane %v1979, %v2063
      %v2065 = vcombine.low %v2057, %v2064
      %2066 = vrot.lane.b32.xlu0 %v2065, 56
      %v2067 = vpop.permute.xlu0 %2066
      %v2068 = vrot.slane %v2067, 2
      %v2069 = vsel %vm857, %v2067, %v2068
      %v2071 = vadd.f32 %v2046, %v2069
      %v2072 = vxor.u32 %v2071, 2147483648
      %v2073 = vmul.f32 %v2072, 1.442695
      %v2074 = vpow.pop %v2073
      %v2075 = vadd.f32 %v2074, 1.0
      %v2076 = vrcp.pop %v2075
      %v2077 = vmul.f32 1.0, %v2076
      %v2078 = vadd.f32 %v1979, %v900
      %v2079 = vadd.f32 %v2018, %v904
      %v2082 = vcombine.low %v2078, %v2079
      %v2084 = vunpack.c.l.s4 1983009808
      %v2085 = vunpack.c.0.s8 %v2084
      %v2086 = vlaneseq
      %v2087 = vshrl.u32 %v2086, 7
      %v2088 = vsub.s32 %v2085, %v2087
      %v2089 = vrot.slane %v2082, %v2088
      %2090 = vrot.lane.b32.xlu0 %v2089, 112
      %v2091 = vpop.permute.xlu0 %2090
      %v2092 = vrot.slane %v2091, 2
      %v2093 = vsel %vm922, %v2091, %v2092
      %v2095 = vmul.f32 %v2040, %v2093
      %2097 = vrot.lane.b32.xlu0 %v1883, 112
      %v2098 = vpop.permute.xlu0 %2097
      %2099 = vrot.lane.b32.xlu0 %v1884, 112
      %v2100 = vpop.permute.xlu0 %2099
      %v2101 = vrot.slane %v2098, 6
      %v2102 = vrot.slane %v2100, 6
      %v2103 = vsel %vm933, %v2101, %v2102
      %v2104 = vsel %vm922, %v2103, %v2100
      %v2106 = vadd.f32 %v2104, %v2095
      %v2107 = vtanh.pop %v2106
      %v2108 = vsub.f32 1.0, %v2077
      %v2109 = vmul.f32 %v2108, %v2107
      %v2110 = vmul.f32 %v2077, %v1877
      %v2111 = vadd.f32 %v2109, %v2110
      %s2112 = smul.u32 %s346, 6
      %s2113 = sadd.s32 %s347, %s2112
      %s2114 = smul.u32 %s2113, 5
      %s2115 = smul.addr %s2114, 2
      %s2116 = scalar_lea.vmem %s241, %s2115
      %v2117 = vld [vmem:[%s2116] sm:$0xff]
      %v2118 = vld [vmem:[%s2116 + $0x8] sm:$0x3]
      %v2121 = vunpack.c.l.s4 1983009808
      %v2122 = vunpack.c.0.s8 %v2121
      %v2123 = vlaneseq
      %v2124 = vshrl.u32 %v2123, 7
      %v2125 = vsub.s32 %v2122, %v2124
      %v2126 = vrot.slane %v2111, %v2125
      %v2127 = vcombine.high %v2126, %v2126
      %v2130 = vpack.c.bf16 %v2126, %v2126
      %v2131 = vpack.c.bf16 %v2127, %v2127
      %v2133 = vsel %vm692, %v2131, 0
      %2135 = vmatprep.subr.bf16.mxu0 %v568
      %2136 = vmatpush1.bf16.msra.mxu0 %v567
      %2137 = vmatprep.subr.bf16.mxu0 %v573
      %2138 = vmatpush1.bf16.msra.mxu0 %v572
      %2139 = vmatprep.subr.bf16.mxu0 %v578
      %2140 = vmatpush1.bf16.msra.mxu0 %v577
      %2141 = vmatprep.subr.bf16.mxu0 %v583
      %2142 = vmatpush1.bf16.msra.mxu0 %v582
      %2143 = vmatprep.subr.bf16.mxu0 %v588
      %2144 = vmatpush1.bf16.msra.mxu0 %v587
      %2145 = vmatprep.subr.bf16.mxu0 %v593
      %2146 = vmatpush1.bf16.msra.mxu0 %v592
      %2147 = vmatprep.subr.bf16.mxu0 %v598
      %2148 = vmatpush1.bf16.msra.mxu0 %v597
      %2149 = vmatprep.subr.bf16.mxu0 %v603
      %2150 = vmatpush1.bf16.msra.mxu0 %v602
      %2151 = vmatprep.subr.bf16.mxu0 %v608
      %2152 = vmatpush1.bf16.msra.mxu0 %v607
      %2153 = vmatprep.subr.bf16.mxu0 %v613
      %2154 = vmatpush1.bf16.msra.mxu0 %v612
      %2155 = vmatprep.subr.bf16.mxu0 %v618
      %2156 = vmatpush1.bf16.msra.mxu0 %v617
      %2157 = vmatprep.subr.bf16.mxu0 %v623
      %2158 = vmatpush1.bf16.msra.mxu0 %v622
      %2159 = vmatprep.subr.bf16.mxu0 %v701
      %2160 = vmatpush1.bf16.msra.mxu0 %v698
      %2161 = vmatprep.subr.bf16.mxu0 0
      %2162 = vmatpush1.bf16.msra.mxu0 0
      %2163 = vmatprep.subr.bf16.mxu0 0
      %2164 = vmatpush1.bf16.msra.mxu0 0
      %2165 = vmatprep.subr.bf16.mxu0 0
      %2166 = vmatpush1.bf16.msra.mxu0 0
      %2167 = vmatprep.mubr.bf16.mxu0 %v2133
      %2168 = vmatmul.mubr.bf16.gmra.mrb[0].mxu0 %v2130
      %v2169 = vpop.f32.mrb[0].mxu0
      %v2170 = vadd.f32 0.0, %v2169
      %v2171 = vpop.f32.mrb[0].mxu0
      %v2172 = vadd.f32 0.0, %v2171
      %v2173 = vpop.f32.mrb[0].mxu0
      %v2174 = vpop.f32.mrb[0].mxu0
      %2175 = vdwg.mxu0
      %2176 = vmatprep.subr.bf16.mxu0 %v570
      %2177 = vmatpush1.bf16.msra.mxu0 %v569
      %2178 = vmatprep.subr.bf16.mxu0 %v575
      %2179 = vmatpush1.bf16.msra.mxu0 %v574
      %2180 = vmatprep.subr.bf16.mxu0 %v580
      %2181 = vmatpush1.bf16.msra.mxu0 %v579
      %2182 = vmatprep.subr.bf16.mxu0 %v585
      %2183 = vmatpush1.bf16.msra.mxu0 %v584
      %2184 = vmatprep.subr.bf16.mxu0 %v590
      %2185 = vmatpush1.bf16.msra.mxu0 %v589
      %2186 = vmatprep.subr.bf16.mxu0 %v595
      %2187 = vmatpush1.bf16.msra.mxu0 %v594
      %2188 = vmatprep.subr.bf16.mxu0 %v600
      %2189 = vmatpush1.bf16.msra.mxu0 %v599
      %2190 = vmatprep.subr.bf16.mxu0 %v605
      %2191 = vmatpush1.bf16.msra.mxu0 %v604
      %2192 = vmatprep.subr.bf16.mxu0 %v610
      %2193 = vmatpush1.bf16.msra.mxu0 %v609
      %2194 = vmatprep.subr.bf16.mxu0 %v615
      %2195 = vmatpush1.bf16.msra.mxu0 %v614
      %2196 = vmatprep.subr.bf16.mxu0 %v620
      %2197 = vmatpush1.bf16.msra.mxu0 %v619
      %2198 = vmatprep.subr.bf16.mxu0 %v625
      %2199 = vmatpush1.bf16.msra.mxu0 %v624
      %2200 = vmatprep.subr.bf16.mxu0 %v707
      %2201 = vmatpush1.bf16.msra.mxu0 %v704
      %2202 = vmatprep.subr.bf16.mxu0 0
      %2203 = vmatpush1.bf16.msra.mxu0 0
      %2204 = vmatprep.subr.bf16.mxu0 0
      %2205 = vmatpush1.bf16.msra.mxu0 0
      %2206 = vmatprep.subr.bf16.mxu0 0
      %2207 = vmatpush1.bf16.msra.mxu0 0
      %2208 = vmatprep.mubr.bf16.mxu0 %v2133
      %2209 = vmatmul.mubr.bf16.gmra.mrb[0].mxu0 %v2130
      %v2210 = vpop.f32.mrb[0].mxu0
      %v2211 = vadd.f32 0.0, %v2210
      %v2212 = vpop.f32.mrb[0].mxu0
      %v2213 = vadd.f32 0.0, %v2212
      %v2214 = vpop.f32.mrb[0].mxu0
      %v2215 = vpop.f32.mrb[0].mxu0
      %2216 = vdwg.mxu0
      %2217 = vmatprep.subr.bf16.mxu0 0
      %2218 = vmatpush1.bf16.msra.mxu0 %v571
      %2219 = vmatprep.subr.bf16.mxu0 0
      %2220 = vmatpush1.bf16.msra.mxu0 %v576
      %2221 = vmatprep.subr.bf16.mxu0 0
      %2222 = vmatpush1.bf16.msra.mxu0 %v581
      %2223 = vmatprep.subr.bf16.mxu0 0
      %2224 = vmatpush1.bf16.msra.mxu0 %v586
      %2225 = vmatprep.subr.bf16.mxu0 0
      %2226 = vmatpush1.bf16.msra.mxu0 %v591
      %2227 = vmatprep.subr.bf16.mxu0 0
      %2228 = vmatpush1.bf16.msra.mxu0 %v596
      %2229 = vmatprep.subr.bf16.mxu0 0
      %2230 = vmatpush1.bf16.msra.mxu0 %v601
      %2231 = vmatprep.subr.bf16.mxu0 0
      %2232 = vmatpush1.bf16.msra.mxu0 %v606
      %2233 = vmatprep.subr.bf16.mxu0 0
      %2234 = vmatpush1.bf16.msra.mxu0 %v611
      %2235 = vmatprep.subr.bf16.mxu0 0
      %2236 = vmatpush1.bf16.msra.mxu0 %v616
      %2237 = vmatprep.subr.bf16.mxu0 0
      %2238 = vmatpush1.bf16.msra.mxu0 %v621
      %2239 = vmatprep.subr.bf16.mxu0 0
      %2240 = vmatpush1.bf16.msra.mxu0 %v626
      %2241 = vmatprep.subr.bf16.mxu0 0
      %2242 = vmatpush1.bf16.msra.mxu0 %v710
      %2243 = vmatprep.subr.bf16.mxu0 0
      %2244 = vmatpush1.bf16.msra.mxu0 0
      %2245 = vmatprep.subr.bf16.mxu0 0
      %2246 = vmatpush1.bf16.msra.mxu0 0
      %2247 = vmatprep.subr.bf16.mxu0 0
      %2248 = vmatpush1.bf16.msra.mxu0 0
      %2249 = vmatprep.mubr.bf16.mxu0 %v2133
      %2250 = vmatmul.mubr.bf16.gmra.mrb[0].mxu0 %v2130
      %v2251 = vpop.f32.mrb[0].mxu0
      %v2252 = vadd.f32 0.0, %v2251
      %v2253 = vpop.f32.mrb[0].mxu0
      %v2254 = vpop.f32.mrb[0].mxu0
      %v2255 = vpop.f32.mrb[0].mxu0
      %2256 = vdwg.mxu0
      %v2259 = vcombine.low %v2170, %v2172
      %v2261 = vunpack.c.l.s4 1983009808
      %v2262 = vunpack.c.0.s8 %v2261
      %v2263 = vlaneseq
      %v2264 = vshrl.u32 %v2263, 7
      %v2265 = vsub.s32 %v2262, %v2264
      %v2266 = vrot.slane %v2259, %v2265
      %v2268 = vadd.f32 %v2117, %v2266
      %v2269 = vxor.u32 %v2268, 2147483648
      %v2270 = vmul.f32 %v2269, 1.442695
      %v2271 = vpow.pop %v2270
      %v2272 = vadd.f32 %v2271, 1.0
      %v2273 = vrcp.pop %v2272
      %v2274 = vmul.f32 1.0, %v2273
      %2276 = vrot.lane.b32.xlu0 %v2117, 56
      %v2277 = vpop.permute.xlu0 %2276
      %v2278 = vrot.slane %v2277, 2
      %v2279 = vrot.slane %v2277, 4
      %v2280 = vsel %vm857, %v2278, %v2279
      %v2284 = vcombine.low %v2172, %v2211
      %v2286 = vunpack.c.l.s4 1983009808
      %v2287 = vunpack.c.0.s8 %v2286
      %v2288 = vlaneseq
      %v2289 = vshrl.u32 %v2288, 7
      %v2290 = vsub.s32 %v2287, %v2289
      %v2291 = vrot.slane %v2284, %v2290
      %v2293 = vunpack.c.l.s4 1983009808
      %v2294 = vunpack.c.0.s8 %v2293
      %v2295 = vlaneseq
      %v2296 = vshrl.u32 %v2295, 7
      %v2297 = vsub.s32 %v2294, %v2296
      %v2298 = vrot.slane %v2213, %v2297
      %v2299 = vcombine.low %v2291, %v2298
      %2300 = vrot.lane.b32.xlu0 %v2299, 56
      %v2301 = vpop.permute.xlu0 %2300
      %v2302 = vrot.slane %v2301, 2
      %v2303 = vsel %vm857, %v2301, %v2302
      %v2305 = vadd.f32 %v2280, %v2303
      %v2306 = vxor.u32 %v2305, 2147483648
      %v2307 = vmul.f32 %v2306, 1.442695
      %v2308 = vpow.pop %v2307
      %v2309 = vadd.f32 %v2308, 1.0
      %v2310 = vrcp.pop %v2309
      %v2311 = vmul.f32 1.0, %v2310
      %v2312 = vadd.f32 %v2213, %v900
      %v2313 = vadd.f32 %v2252, %v904
      %v2316 = vcombine.low %v2312, %v2313
      %v2318 = vunpack.c.l.s4 1983009808
      %v2319 = vunpack.c.0.s8 %v2318
      %v2320 = vlaneseq
      %v2321 = vshrl.u32 %v2320, 7
      %v2322 = vsub.s32 %v2319, %v2321
      %v2323 = vrot.slane %v2316, %v2322
      %2324 = vrot.lane.b32.xlu0 %v2323, 112
      %v2325 = vpop.permute.xlu0 %2324
      %v2326 = vrot.slane %v2325, 2
      %v2327 = vsel %vm922, %v2325, %v2326
      %v2329 = vmul.f32 %v2274, %v2327
      %2331 = vrot.lane.b32.xlu0 %v2117, 112
      %v2332 = vpop.permute.xlu0 %2331
      %2333 = vrot.lane.b32.xlu0 %v2118, 112
      %v2334 = vpop.permute.xlu0 %2333
      %v2335 = vrot.slane %v2332, 6
      %v2336 = vrot.slane %v2334, 6
      %v2337 = vsel %vm933, %v2335, %v2336
      %v2338 = vsel %vm922, %v2337, %v2334
      %v2340 = vadd.f32 %v2338, %v2329
      %v2341 = vtanh.pop %v2340
      %v2342 = vsub.f32 1.0, %v2311
      %v2343 = vmul.f32 %v2342, %v2341
      %v2344 = vmul.f32 %v2311, %v2111
      %v2345 = vadd.f32 %v2343, %v2344
      %s2346 = smul.u32 %s346, 7
      %s2347 = sadd.s32 %s347, %s2346
      %s2348 = smul.u32 %s2347, 5
      %s2349 = smul.addr %s2348, 2
      %s2350 = scalar_lea.vmem %s241, %s2349
      %v2351 = vld [vmem:[%s2350] sm:$0xff]
      %v2352 = vld [vmem:[%s2350 + $0x8] sm:$0x3]
      %v2355 = vunpack.c.l.s4 1983009808
      %v2356 = vunpack.c.0.s8 %v2355
      %v2357 = vlaneseq
      %v2358 = vshrl.u32 %v2357, 7
      %v2359 = vsub.s32 %v2356, %v2358
      %v2360 = vrot.slane %v2345, %v2359
      %v2361 = vcombine.high %v2360, %v2360
      %v2364 = vpack.c.bf16 %v2360, %v2360
      %v2365 = vpack.c.bf16 %v2361, %v2361
      %v2367 = vsel %vm692, %v2365, 0
      %2369 = vmatprep.subr.bf16.mxu0 %v568
      %2370 = vmatpush1.bf16.msra.mxu0 %v567
      %2371 = vmatprep.subr.bf16.mxu0 %v573
      %2372 = vmatpush1.bf16.msra.mxu0 %v572
      %2373 = vmatprep.subr.bf16.mxu0 %v578
      %2374 = vmatpush1.bf16.msra.mxu0 %v577
      %2375 = vmatprep.subr.bf16.mxu0 %v583
      %2376 = vmatpush1.bf16.msra.mxu0 %v582
      %2377 = vmatprep.subr.bf16.mxu0 %v588
      %2378 = vmatpush1.bf16.msra.mxu0 %v587
      %2379 = vmatprep.subr.bf16.mxu0 %v593
      %2380 = vmatpush1.bf16.msra.mxu0 %v592
      %2381 = vmatprep.subr.bf16.mxu0 %v598
      %2382 = vmatpush1.bf16.msra.mxu0 %v597
      %2383 = vmatprep.subr.bf16.mxu0 %v603
      %2384 = vmatpush1.bf16.msra.mxu0 %v602
      %2385 = vmatprep.subr.bf16.mxu0 %v608
      %2386 = vmatpush1.bf16.msra.mxu0 %v607
      %2387 = vmatprep.subr.bf16.mxu0 %v613
      %2388 = vmatpush1.bf16.msra.mxu0 %v612
      %2389 = vmatprep.subr.bf16.mxu0 %v618
      %2390 = vmatpush1.bf16.msra.mxu0 %v617
      %2391 = vmatprep.subr.bf16.mxu0 %v623
      %2392 = vmatpush1.bf16.msra.mxu0 %v622
      %2393 = vmatprep.subr.bf16.mxu0 %v701
      %2394 = vmatpush1.bf16.msra.mxu0 %v698
      %2395 = vmatprep.subr.bf16.mxu0 0
      %2396 = vmatpush1.bf16.msra.mxu0 0
      %2397 = vmatprep.subr.bf16.mxu0 0
      %2398 = vmatpush1.bf16.msra.mxu0 0
      %2399 = vmatprep.subr.bf16.mxu0 0
      %2400 = vmatpush1.bf16.msra.mxu0 0
      %2401 = vmatprep.mubr.bf16.mxu0 %v2367
      %2402 = vmatmul.mubr.bf16.gmra.mrb[0].mxu0 %v2364
      %v2403 = vpop.f32.mrb[0].mxu0
      %v2404 = vadd.f32 0.0, %v2403
      %v2405 = vpop.f32.mrb[0].mxu0
      %v2406 = vadd.f32 0.0, %v2405
      %v2407 = vpop.f32.mrb[0].mxu0
      %v2408 = vpop.f32.mrb[0].mxu0
      %2409 = vdwg.mxu0
      %2410 = vmatprep.subr.bf16.mxu0 %v570
      %2411 = vmatpush1.bf16.msra.mxu0 %v569
      %2412 = vmatprep.subr.bf16.mxu0 %v575
      %2413 = vmatpush1.bf16.msra.mxu0 %v574
      %2414 = vmatprep.subr.bf16.mxu0 %v580
      %2415 = vmatpush1.bf16.msra.mxu0 %v579
      %2416 = vmatprep.subr.bf16.mxu0 %v585
      %2417 = vmatpush1.bf16.msra.mxu0 %v584
      %2418 = vmatprep.subr.bf16.mxu0 %v590
      %2419 = vmatpush1.bf16.msra.mxu0 %v589
      %2420 = vmatprep.subr.bf16.mxu0 %v595
      %2421 = vmatpush1.bf16.msra.mxu0 %v594
      %2422 = vmatprep.subr.bf16.mxu0 %v600
      %2423 = vmatpush1.bf16.msra.mxu0 %v599
      %2424 = vmatprep.subr.bf16.mxu0 %v605
      %2425 = vmatpush1.bf16.msra.mxu0 %v604
      %2426 = vmatprep.subr.bf16.mxu0 %v610
      %2427 = vmatpush1.bf16.msra.mxu0 %v609
      %2428 = vmatprep.subr.bf16.mxu0 %v615
      %2429 = vmatpush1.bf16.msra.mxu0 %v614
      %2430 = vmatprep.subr.bf16.mxu0 %v620
      %2431 = vmatpush1.bf16.msra.mxu0 %v619
      %2432 = vmatprep.subr.bf16.mxu0 %v625
      %2433 = vmatpush1.bf16.msra.mxu0 %v624
      %2434 = vmatprep.subr.bf16.mxu0 %v707
      %2435 = vmatpush1.bf16.msra.mxu0 %v704
      %2436 = vmatprep.subr.bf16.mxu0 0
      %2437 = vmatpush1.bf16.msra.mxu0 0
      %2438 = vmatprep.subr.bf16.mxu0 0
      %2439 = vmatpush1.bf16.msra.mxu0 0
      %2440 = vmatprep.subr.bf16.mxu0 0
      %2441 = vmatpush1.bf16.msra.mxu0 0
      %2442 = vmatprep.mubr.bf16.mxu0 %v2367
      %2443 = vmatmul.mubr.bf16.gmra.mrb[0].mxu0 %v2364
      %v2444 = vpop.f32.mrb[0].mxu0
      %v2445 = vadd.f32 0.0, %v2444
      %v2446 = vpop.f32.mrb[0].mxu0
      %v2447 = vadd.f32 0.0, %v2446
      %v2448 = vpop.f32.mrb[0].mxu0
      %v2449 = vpop.f32.mrb[0].mxu0
      %2450 = vdwg.mxu0
      %2451 = vmatprep.subr.bf16.mxu0 0
      %2452 = vmatpush1.bf16.msra.mxu0 %v571
      %2453 = vmatprep.subr.bf16.mxu0 0
      %2454 = vmatpush1.bf16.msra.mxu0 %v576
      %2455 = vmatprep.subr.bf16.mxu0 0
      %2456 = vmatpush1.bf16.msra.mxu0 %v581
      %2457 = vmatprep.subr.bf16.mxu0 0
      %2458 = vmatpush1.bf16.msra.mxu0 %v586
      %2459 = vmatprep.subr.bf16.mxu0 0
      %2460 = vmatpush1.bf16.msra.mxu0 %v591
      %2461 = vmatprep.subr.bf16.mxu0 0
      %2462 = vmatpush1.bf16.msra.mxu0 %v596
      %2463 = vmatprep.subr.bf16.mxu0 0
      %2464 = vmatpush1.bf16.msra.mxu0 %v601
      %2465 = vmatprep.subr.bf16.mxu0 0
      %2466 = vmatpush1.bf16.msra.mxu0 %v606
      %2467 = vmatprep.subr.bf16.mxu0 0
      %2468 = vmatpush1.bf16.msra.mxu0 %v611
      %2469 = vmatprep.subr.bf16.mxu0 0
      %2470 = vmatpush1.bf16.msra.mxu0 %v616
      %2471 = vmatprep.subr.bf16.mxu0 0
      %2472 = vmatpush1.bf16.msra.mxu0 %v621
      %2473 = vmatprep.subr.bf16.mxu0 0
      %2474 = vmatpush1.bf16.msra.mxu0 %v626
      %2475 = vmatprep.subr.bf16.mxu0 0
      %2476 = vmatpush1.bf16.msra.mxu0 %v710
      %2477 = vmatprep.subr.bf16.mxu0 0
      %2478 = vmatpush1.bf16.msra.mxu0 0
      %2479 = vmatprep.subr.bf16.mxu0 0
      %2480 = vmatpush1.bf16.msra.mxu0 0
      %2481 = vmatprep.subr.bf16.mxu0 0
      %2482 = vmatpush1.bf16.msra.mxu0 0
      %2483 = vmatprep.mubr.bf16.mxu0 %v2367
      %2484 = vmatmul.mubr.bf16.gmra.mrb[0].mxu0 %v2364
      %v2485 = vpop.f32.mrb[0].mxu0
      %v2486 = vadd.f32 0.0, %v2485
      %v2487 = vpop.f32.mrb[0].mxu0
      %v2488 = vpop.f32.mrb[0].mxu0
      %v2489 = vpop.f32.mrb[0].mxu0
      %2490 = vdwg.mxu0
      %v2493 = vcombine.low %v2404, %v2406
      %v2495 = vunpack.c.l.s4 1983009808
      %v2496 = vunpack.c.0.s8 %v2495
      %v2497 = vlaneseq
      %v2498 = vshrl.u32 %v2497, 7
      %v2499 = vsub.s32 %v2496, %v2498
      %v2500 = vrot.slane %v2493, %v2499
      %v2502 = vadd.f32 %v2351, %v2500
      %v2503 = vxor.u32 %v2502, 2147483648
      %v2504 = vmul.f32 %v2503, 1.442695
      %v2505 = vpow.pop %v2504
      %v2506 = vadd.f32 %v2505, 1.0
      %v2507 = vrcp.pop %v2506
      %v2508 = vmul.f32 1.0, %v2507
      %2510 = vrot.lane.b32.xlu0 %v2351, 56
      %v2511 = vpop.permute.xlu0 %2510
      %v2512 = vrot.slane %v2511, 2
      %v2513 = vrot.slane %v2511, 4
      %v2514 = vsel %vm857, %v2512, %v2513
      %v2518 = vcombine.low %v2406, %v2445
      %v2520 = vunpack.c.l.s4 1983009808
      %v2521 = vunpack.c.0.s8 %v2520
      %v2522 = vlaneseq
      %v2523 = vshrl.u32 %v2522, 7
      %v2524 = vsub.s32 %v2521, %v2523
      %v2525 = vrot.slane %v2518, %v2524
      %v2527 = vunpack.c.l.s4 1983009808
      %v2528 = vunpack.c.0.s8 %v2527
      %v2529 = vlaneseq
      %v2530 = vshrl.u32 %v2529, 7
      %v2531 = vsub.s32 %v2528, %v2530
      %v2532 = vrot.slane %v2447, %v2531
      %v2533 = vcombine.low %v2525, %v2532
      %2534 = vrot.lane.b32.xlu0 %v2533, 56
      %v2535 = vpop.permute.xlu0 %2534
      %v2536 = vrot.slane %v2535, 2
      %v2537 = vsel %vm857, %v2535, %v2536
      %v2539 = vadd.f32 %v2514, %v2537
      %v2540 = vxor.u32 %v2539, 2147483648
      %v2541 = vmul.f32 %v2540, 1.442695
      %v2542 = vpow.pop %v2541
      %v2543 = vadd.f32 %v2542, 1.0
      %v2544 = vrcp.pop %v2543
      %v2545 = vmul.f32 1.0, %v2544
      %v2546 = vadd.f32 %v2447, %v900
      %v2547 = vadd.f32 %v2486, %v904
      %v2550 = vcombine.low %v2546, %v2547
      %v2552 = vunpack.c.l.s4 1983009808
      %v2553 = vunpack.c.0.s8 %v2552
      %v2554 = vlaneseq
      %v2555 = vshrl.u32 %v2554, 7
      %v2556 = vsub.s32 %v2553, %v2555
      %v2557 = vrot.slane %v2550, %v2556
      %2558 = vrot.lane.b32.xlu0 %v2557, 112
      %v2559 = vpop.permute.xlu0 %2558
      %v2560 = vrot.slane %v2559, 2
      %v2561 = vsel %vm922, %v2559, %v2560
      %v2563 = vmul.f32 %v2508, %v2561
      %2565 = vrot.lane.b32.xlu0 %v2351, 112
      %v2566 = vpop.permute.xlu0 %2565
      %2567 = vrot.lane.b32.xlu0 %v2352, 112
      %v2568 = vpop.permute.xlu0 %2567
      %v2569 = vrot.slane %v2566, 6
      %v2570 = vrot.slane %v2568, 6
      %v2571 = vsel %vm933, %v2569, %v2570
      %v2572 = vsel %vm922, %v2571, %v2568
      %v2574 = vadd.f32 %v2572, %v2563
      %v2575 = vtanh.pop %v2574
      %v2576 = vsub.f32 1.0, %v2545
      %v2577 = vmul.f32 %v2576, %v2575
      %v2578 = vmul.f32 %v2545, %v2345
      %v2579 = vadd.f32 %v2577, %v2578
      %vm2580 = vcmask 584706
      %vm2581 = vmor %vm2580, %vm933
      %2582 = vst.msk [vmem:[#allocation2] sm:$0xf] %vm2581, %v2579
      // Predicated region
      $region37: #{han2_forward.3} parent=31 // pred_check
        %p2583 = pneg %p261
      $region38: #{han2_forward.3} parent=31 // pred_check_branch
        %2585 = sbr.rel (%p2583) target = $region40
      $region39: #{han2_forward.3} parent=31 // pred_region
        %2586 = vst.msk [vmem:[%s259] sm:$0xf] %vm2581, %v2579
      $region40: #{han2_forward.3} parent=31 // pred_fallthru
        _
      %p2587 = scmp.lt.s32.totalorder %s18, 1
      %s2588 = scalar_select %p2587, %s18, 1
      %s2589 = smul.addr %s2588, 2
      %s2590 = smul.addr %s2589, 2
      %s2591 = scalar_lea.vmem %s3, %s2590
      // Predicated region
      $region41: #{han2_forward.3} parent=31 // pred_check
        %p2592 = pneg %p130
      $region42: #{han2_forward.3} parent=31 // pred_check_branch
        %2594 = sbr.rel (%p2592) target = $region44
      $region43: #{han2_forward.3} parent=31 // pred_region
        _
      $region44: #{han2_forward.3} parent=31 // pred_fallthru
        _
    $region32: #{han2_forward.3} parent=5 // pred_fallthru
      _
    %p2595 = scmp.le.s32.totalorder 2, %s9
    // Predicated region
    $region45: #{han2_forward.3} parent=5 // pred_check
      %p2596 = pneg %p2595
    $region46: #{han2_forward.3} parent=5 // pred_check_branch
      %2598 = sbr.rel (%p2596) target = $region48
    $region47: #{han2_forward.3} parent=5 // pred_region
      %s2599 = ssub.s32 %s9, 2
      // Predicated region
      $region49: #{han2_forward.3} parent=47 // pred_check
        %p2600 = pneg %p136
      $region50: #{han2_forward.3} parent=47 // pred_check_branch
        %2602 = sbr.rel (%p2600) target = $region52
      $region51: #{han2_forward.3} parent=47 // pred_region
        %p2603 = scmp.lt.s32.totalorder %s20, 1
        %s2604 = scalar_select %p2603, %s20, 1
        %s2605 = smul.addr %s2604, 2
        %s2606 = smul.addr %s2605, 2
        %s2607 = scalar_lea.vmem %s3, %s2606
      $region52: #{han2_forward.3} parent=47 // pred_fallthru
        _
    $region48: #{han2_forward.3} parent=5 // pred_fallthru
      _
  $region6: #{han2_forward.3} parent=0 // loop_footer
    %s13 = sadd.s32 1, %s9
  $region7: #{han2_forward.3} parent=0 // loop_footer_branch
    %8 = sbr.rel target = $region3
  $region8: #{han2_forward.3} parent=0 // loop_exit
    _

</llo_original>
